<compile_context>
chip_gen: v6e
topology: v6e:2x2x1
jax: 0.10.0
libtpu: 0.0.40
codegen_flags: <defaults>
</compile_context>

<pallas_src>
import functools

import jax
import jax.numpy as jnp
from jax.experimental import pallas as pl
from jax.experimental.pallas import tpu as pltpu


def _round_up(x, m):
    return (x + m - 1) // m * m


# ----------------------------------------------------------------------------
# Fused kernel.
#   x_ref  : [4*TB, Cin*S]   bf16  rows = (pool position, batch-in-tile), each
#                                  row flattened in PyTorch (c, hp, wp) order
#   wc_ref : [Cin*S, Cout*S] bf16  kron(Wc^T, I_S): 1x1 conv as one matmul
#   bcb_ref: [1, Cout*S]     f32   conv bias repeated over spatial
#   w1_ref : [Cout*S, Hid]   bf16  fc1 weight (transposed; torch flatten order)
#   b1_ref : [1, Hid]        f32
#   w2_ref : [Hid, NCp]      bf16  fc2 weight, classes padded to 128 lanes
#   b2_ref : [1, NCp]        f32
#   o_ref  : [TB, NCp]       f32
# ----------------------------------------------------------------------------
def fused_kernel(x_ref, wc_ref, bcb_ref, w1_ref, b1_ref, w2_ref, b2_ref, o_ref):
    TB = o_ref.shape[0]

    # One stacked 1x1-conv matmul over all 4 pool positions (M = 4*TB).
    z = jnp.dot(x_ref[...], wc_ref[...],
                preferred_element_type=jnp.float32)          # [4*TB, Cout*S] f32

    # 2x2 maxpool == running max over the 4 position row-blocks (conv is
    # per-pixel, bias constant per channel, ReLU monotone, so
    # maxpool(relu(conv+b)) == relu(max_p(conv_p) + b)).  Row blocks are
    # TB-aligned (TB multiple of 16), so these are cheap aligned slices.
    m = jnp.maximum(z[0 * TB:1 * TB], z[1 * TB:2 * TB])
    m = jnp.maximum(m, z[2 * TB:3 * TB])
    m = jnp.maximum(m, z[3 * TB:4 * TB])
    pooled = jnp.maximum(m + bcb_ref[...], 0.0)              # [TB, Cout*S] f32

    h1 = jnp.dot(pooled.astype(jnp.bfloat16), w1_ref[...],
                 preferred_element_type=jnp.float32) + b1_ref[...]
    h1 = jnp.maximum(h1, 0.0)

    out = jnp.dot(h1.astype(jnp.bfloat16), w2_ref[...],
                  preferred_element_type=jnp.float32) + b2_ref[...]
    o_ref[...] = out.astype(o_ref.dtype)                     # [TB, NCp]


# ----------------------------------------------------------------------------
# One-time parameter preprocessing (hoisted out of the forward pass).
# ----------------------------------------------------------------------------
def prepare_params(params, *, H=14, W=14):
    conv_w = params["conv_w"]              # [Cout, Cin, 1, 1]
    conv_b = params["conv_b"]              # [Cout]
    fc1_w = params["fc1_w"]                # [Hid, Cout*Hp*Wp]  (C,H,W flatten)
    fc1_b = params["fc1_b"]                # [Hid]
    fc2_w = params["fc2_w"]                # [NC, Hid]
    fc2_b = params["fc2_b"]                # [NC]

    Cout, Cin = conv_w.shape[0], conv_w.shape[1]
    Hp, Wp = H // 2, W // 2
    S = Hp * Wp
    NC = fc2_w.shape[0]
    NCp = _round_up(max(NC, 128), 128)     # lane-dense fc2 output

    # 1x1 conv as a [Cin*S, Cout*S] matmul in (c,hp,wp)->(o,hp,wp) flatten
    # order (== PyTorch's flatten order, so fc1_w needs no permutation).
    wc = conv_w.reshape(Cout, Cin).astype(jnp.float32)
    wc_big = jnp.kron(wc.T, jnp.eye(S, dtype=jnp.float32)).astype(jnp.bfloat16)
    bc_big = jnp.repeat(conv_b.astype(jnp.float32), S).reshape(1, Cout * S)

    w1 = fc1_w.T.astype(jnp.bfloat16)                            # [Cout*S, Hid]
    b1 = fc1_b.astype(jnp.float32).reshape(1, -1)
    w2 = jnp.pad(fc2_w.T.astype(jnp.bfloat16), ((0, 0), (0, NCp - NC)))
    b2 = jnp.pad(fc2_b.astype(jnp.float32), (0, NCp - NC)).reshape(1, NCp)

    return {"wc_big": wc_big, "bc_big": bc_big,
            "w1": w1, "b1": b1, "w2": w2, "b2": b2}


# ----------------------------------------------------------------------------
# Forward pass: minimal glue + one fused pallas_call.
# ----------------------------------------------------------------------------
@functools.partial(jax.jit, static_argnums=(2,))
def engine_classifier_forward(x_nchw, prepped, num_classes):
    B, Cin, H, W = x_nchw.shape
    Hp, Wp = H // 2, W // 2
    S = Hp * Wp
    D_in = Cin * S                                  # conv input features / pos
    wc_big = prepped["wc_big"]
    D = wc_big.shape[1]                             # Cout * S
    Hid = prepped["w1"].shape[1]
    NCp = prepped["w2"].shape[1]

    # Batch tiling.  TB multiple of 16 (bf16 sublane packing).  Cap at 128
    # (v5e MXU width) while keeping >=2 grid steps for v7x's two TensorCores;
    # go to 256 only at large batch to feed the v6e/v7x 256x256 MXU and halve
    # per-step pipeline overhead.
    if B <= 128:
        TB = _round_up(B, 16)
        B_pad = TB
    elif B <= 512:
        TB = 128
        B_pad = _round_up(B, TB)
    else:
        TB = 256
        B_pad = _round_up(B, TB)
    n_tiles = B_pad // TB

    # Glue (tiny data, fused XLA transforms): split x into the 4 maxpool
    # positions, each flattened in (c, hp, wp) order, then lay rows out as
    # (tile, position, batch-in-tile) so each grid step's activation DMA is a
    # single contiguous [4*TB, D_in] slab that is already the stacked matmul
    # LHS (position-major within the tile -> aligned row-block max in-kernel).
    x_pos = (x_nchw.astype(jnp.bfloat16)
             .reshape(B, Cin, Hp, 2, Wp, 2)
             .transpose(3, 5, 0, 1, 2, 4)           # (i, j, b, c, hp, wp)
             .reshape(4, B, D_in))
    if B_pad != B:
        x_pos = jnp.pad(x_pos, ((0, 0), (0, B_pad - B), (0, 0)))
    x_stk = (x_pos.reshape(4, n_tiles, TB, D_in)
             .transpose(1, 0, 2, 3)                 # (tile, pos, b_in, feat)
             .reshape(n_tiles * 4 * TB, D_in))

    out = pl.pallas_call(
        fused_kernel,
        out_shape=jax.ShapeDtypeStruct((B_pad, NCp), jnp.float32),
        grid=(n_tiles,),
        in_specs=[
            pl.BlockSpec((4 * TB, D_in), lambda i: (i, 0)),     # activations
            pl.BlockSpec((D_in, D), lambda i: (0, 0)),          # conv (kron)
            pl.BlockSpec((1, D), lambda i: (0, 0)),
            pl.BlockSpec((D, Hid), lambda i: (0, 0)),           # fc1
            pl.BlockSpec((1, Hid), lambda i: (0, 0)),
            pl.BlockSpec((Hid, NCp), lambda i: (0, 0)),         # fc2 (padded)
            pl.BlockSpec((1, NCp), lambda i: (0, 0)),
        ],
        out_specs=pl.BlockSpec((TB, NCp), lambda i: (i, 0)),
        compiler_params=pltpu.CompilerParams(
            dimension_semantics=("parallel",)),
    )(x_stk, wc_big, prepped["bc_big"], prepped["w1"], prepped["b1"],
      prepped["w2"], prepped["b2"])

    return out[:B, :num_classes]


# ----------------------------------------------------------------------------
# Pure-JAX f32 reference (mirrors the PyTorch forward, NCHW).
# ----------------------------------------------------------------------------
def reference_forward(x_nchw, params):
    HI = jax.lax.Precision.HIGHEST
    B, Cin, H, W = x_nchw.shape
    Cout = params["conv_w"].shape[0]
    w = params["conv_w"].reshape(Cout, Cin)
    y = jnp.einsum("bchw,oc->bohw", x_nchw, w, precision=HI) \
        + params["conv_b"].reshape(1, Cout, 1, 1)
    y = jnp.maximum(y, 0.0)
    y = y.reshape(B, Cout, H // 2, 2, W // 2, 2).max(axis=(3, 5))
    y = y.reshape(B, -1)                                    # (C,H,W) flatten
    y = jnp.maximum(jnp.dot(y, params["fc1_w"].T, precision=HI)
                    + params["fc1_b"], 0.0)
    return jnp.dot(y, params["fc2_w"].T, precision=HI) + params["fc2_b"]


if __name__ == "__main__":
    h, num_classes, B = 4, 10, 2
    H = W = 14                    # fc1 in-features = 4h*7*7 -> 14x14 input
    Cout = 4 * h

    key = jax.random.PRNGKey(0)
    ks = jax.random.split(key, 7)
    x = jax.random.normal(ks[0], (B, h, H, W), dtype=jnp.float32)

    params = {
        "conv_w": jax.random.normal(ks[1], (Cout, h, 1, 1), jnp.float32) * 0.05,
        "conv_b": jax.random.normal(ks[2], (Cout,), jnp.float32) * 0.05,
        "fc1_w": jax.random.normal(ks[3], (1024, Cout * 7 * 7), jnp.float32) * 0.02,
        "fc1_b": jax.random.normal(ks[4], (1024,), jnp.float32) * 0.02,
        "fc2_w": jax.random.normal(ks[5], (num_classes, 1024), jnp.float32) * 0.02,
        "fc2_b": jax.random.normal(ks[6], (num_classes,), jnp.float32) * 0.02,
    }

    # One-time parameter preprocessing (hoisted out of the forward path).
    prepped = jax.tree_util.tree_map(jax.block_until_ready,
                                     prepare_params(params, H=H, W=W))

    out = engine_classifier_forward(x, prepped, num_classes)
    out = jax.block_until_ready(out)

    ref = jax.block_until_ready(reference_forward(x, params))
    assert out.shape == (B, num_classes)
    max_diff = float(jnp.max(jnp.abs(out - ref)))
    assert jnp.allclose(out, ref, rtol=1e-2, atol=1e-2), (
        f"mismatch: max abs diff {max_diff}")

    print("KERNEL_OK")
</pallas_src>

<mosaic_0001>
module attributes {stable_mosaic.version = 11 : i64} {
  func.func @fused_kernel(%arg0: i32, %arg1: memref<64x196xbf16, #tpu.memory_space<vmem>>, %arg2: memref<196x784xbf16, #tpu.memory_space<vmem>>, %arg3: memref<1x784xf32, #tpu.memory_space<vmem>>, %arg4: memref<784x1024xbf16, #tpu.memory_space<vmem>>, %arg5: memref<1x1024xf32, #tpu.memory_space<vmem>>, %arg6: memref<1024x128xbf16, #tpu.memory_space<vmem>>, %arg7: memref<1x128xf32, #tpu.memory_space<vmem>>, %arg8: memref<16x128xf32, #tpu.memory_space<vmem>>) attributes {dimension_semantics = [#tpu.dimension_semantics<parallel>], iteration_bounds = array<i64: 1>, scalar_prefetch = 0 : i64, scratch_operands = 0 : i64, tpu.core_type = #tpu.core_type<tc>, window_params = [{transform_indices = @transform_0, window_bounds = array<i64: 64, 196>}, {pipeline_mode = #tpu.pipeline_mode<synchronous>, transform_indices = @transform_1, window_bounds = array<i64: 196, 784>}, {pipeline_mode = #tpu.pipeline_mode<synchronous>, transform_indices = @transform_2, window_bounds = array<i64: 1, 784>}, {pipeline_mode = #tpu.pipeline_mode<synchronous>, transform_indices = @transform_3, window_bounds = array<i64: 784, 1024>}, {pipeline_mode = #tpu.pipeline_mode<synchronous>, transform_indices = @transform_4, window_bounds = array<i64: 1, 1024>}, {pipeline_mode = #tpu.pipeline_mode<synchronous>, transform_indices = @transform_5, window_bounds = array<i64: 1024, 128>}, {pipeline_mode = #tpu.pipeline_mode<synchronous>, transform_indices = @transform_6, window_bounds = array<i64: 1, 128>}, {transform_indices = @transform_7, window_bounds = array<i64: 16, 128>}]} {
    %c0 = arith.constant 0 : index
    %c0_0 = arith.constant 0 : index
    %0 = vector.load %arg1[%c0, %c0_0] : memref<64x196xbf16, #tpu.memory_space<vmem>>, vector<64x196xbf16>
    %c0_1 = arith.constant 0 : index
    %c0_2 = arith.constant 0 : index
    %1 = vector.load %arg2[%c0_1, %c0_2] : memref<196x784xbf16, #tpu.memory_space<vmem>>, vector<196x784xbf16>
    %cst = arith.constant dense<0.000000e+00> : vector<64x784xf32>
    %2 = tpu.matmul %0, %1, %cst {dimension_numbers = #tpu.dot_dimension_numbers<[1], [0], [0], [1], [0, 0, 1, 1], [], []>} : vector<64x196xbf16>, vector<196x784xbf16>, vector<64x784xf32> -> vector<64x784xf32>
    %3 = vector.extract_strided_slice %2 {offsets = [0, 0], sizes = [16, 784], strides = [1, 1]} : vector<64x784xf32> to vector<16x784xf32>
    %4 = vector.extract_strided_slice %2 {offsets = [16, 0], sizes = [16, 784], strides = [1, 1]} : vector<64x784xf32> to vector<16x784xf32>
    %5 = arith.maximumf %3, %4 : vector<16x784xf32>
    %6 = vector.extract_strided_slice %2 {offsets = [32, 0], sizes = [16, 784], strides = [1, 1]} : vector<64x784xf32> to vector<16x784xf32>
    %7 = arith.maximumf %5, %6 : vector<16x784xf32>
    %8 = vector.extract_strided_slice %2 {offsets = [48, 0], sizes = [16, 784], strides = [1, 1]} : vector<64x784xf32> to vector<16x784xf32>
    %9 = arith.maximumf %7, %8 : vector<16x784xf32>
    %c0_3 = arith.constant 0 : index
    %c0_4 = arith.constant 0 : index
    %10 = vector.load %arg3[%c0_3, %c0_4] : memref<1x784xf32, #tpu.memory_space<vmem>>, vector<1x784xf32>
    %11 = vector.broadcast %10 : vector<1x784xf32> to vector<16x784xf32>
    %12 = arith.addf %9, %11 : vector<16x784xf32>
    %cst_5 = arith.constant 0.000000e+00 : f32
    %13 = vector.broadcast %cst_5 : f32 to vector<16x784xf32>
    %14 = arith.maximumf %12, %13 : vector<16x784xf32>
    %15 = arith.truncf %14 : vector<16x784xf32> to vector<16x784xbf16>
    %c0_6 = arith.constant 0 : index
    %c0_7 = arith.constant 0 : index
    %16 = vector.load %arg4[%c0_6, %c0_7] : memref<784x1024xbf16, #tpu.memory_space<vmem>>, vector<784x1024xbf16>
    %cst_8 = arith.constant dense<0.000000e+00> : vector<16x1024xf32>
    %17 = tpu.matmul %15, %16, %cst_8 {dimension_numbers = #tpu.dot_dimension_numbers<[1], [0], [0], [1], [0, 0, 1, 1], [], []>} : vector<16x784xbf16>, vector<784x1024xbf16>, vector<16x1024xf32> -> vector<16x1024xf32>
    %c0_9 = arith.constant 0 : index
    %c0_10 = arith.constant 0 : index
    %18 = vector.load %arg5[%c0_9, %c0_10] : memref<1x1024xf32, #tpu.memory_space<vmem>>, vector<1x1024xf32>
    %19 = vector.broadcast %18 : vector<1x1024xf32> to vector<16x1024xf32>
    %20 = arith.addf %17, %19 : vector<16x1024xf32>
    %cst_11 = arith.constant 0.000000e+00 : f32
    %21 = vector.broadcast %cst_11 : f32 to vector<16x1024xf32>
    %22 = arith.maximumf %20, %21 : vector<16x1024xf32>
    %23 = arith.truncf %22 : vector<16x1024xf32> to vector<16x1024xbf16>
    %c0_12 = arith.constant 0 : index
    %c0_13 = arith.constant 0 : index
    %24 = vector.load %arg6[%c0_12, %c0_13] : memref<1024x128xbf16, #tpu.memory_space<vmem>>, vector<1024x128xbf16>
    %cst_14 = arith.constant dense<0.000000e+00> : vector<16x128xf32>
    %25 = tpu.matmul %23, %24, %cst_14 {dimension_numbers = #tpu.dot_dimension_numbers<[1], [0], [0], [1], [0, 0, 1, 1], [], []>} : vector<16x1024xbf16>, vector<1024x128xbf16>, vector<16x128xf32> -> vector<16x128xf32>
    %c0_15 = arith.constant 0 : index
    %c0_16 = arith.constant 0 : index
    %26 = vector.load %arg7[%c0_15, %c0_16] : memref<1x128xf32, #tpu.memory_space<vmem>>, vector<1x128xf32>
    %27 = vector.broadcast %26 : vector<1x128xf32> to vector<16x128xf32>
    %28 = arith.addf %25, %27 : vector<16x128xf32>
    %c0_17 = arith.constant 0 : index
    %c0_18 = arith.constant 0 : index
    %29 = vector.load %arg8[%c0_17, %c0_18] : memref<16x128xf32, #tpu.memory_space<vmem>>, vector<16x128xf32>
    tpu.vector_store %arg8[%c0_17, %c0_18], %28 {strides = array<i32>} : memref<16x128xf32, #tpu.memory_space<vmem>>, vector<16x128xf32>,
    return
  }
  func.func @transform_0(%arg0: i32) -> (i32, i32) {
    %c0_i32 = arith.constant 0 : i32
    %c0_i32_0 = arith.constant 0 : i32
    return %arg0, %c0_i32 : i32, i32
  }
  func.func @transform_1(%arg0: i32) -> (i32, i32) {
    %c0_i32 = arith.constant 0 : i32
    %c0_i32_0 = arith.constant 0 : i32
    %c0_i32_1 = arith.constant 0 : i32
    return %c0_i32, %c0_i32_0 : i32, i32
  }
  func.func @transform_2(%arg0: i32) -> (i32, i32) {
    %c0_i32 = arith.constant 0 : i32
    %c0_i32_0 = arith.constant 0 : i32
    %c0_i32_1 = arith.constant 0 : i32
    return %c0_i32, %c0_i32_0 : i32, i32
  }
  func.func @transform_3(%arg0: i32) -> (i32, i32) {
    %c0_i32 = arith.constant 0 : i32
    %c0_i32_0 = arith.constant 0 : i32
    %c0_i32_1 = arith.constant 0 : i32
    return %c0_i32, %c0_i32_0 : i32, i32
  }
  func.func @transform_4(%arg0: i32) -> (i32, i32) {
    %c0_i32 = arith.constant 0 : i32
    %c0_i32_0 = arith.constant 0 : i32
    %c0_i32_1 = arith.constant 0 : i32
    return %c0_i32, %c0_i32_0 : i32, i32
  }
  func.func @transform_5(%arg0: i32) -> (i32, i32) {
    %c0_i32 = arith.constant 0 : i32
    %c0_i32_0 = arith.constant 0 : i32
    %c0_i32_1 = arith.constant 0 : i32
    return %c0_i32, %c0_i32_0 : i32, i32
  }
  func.func @transform_6(%arg0: i32) -> (i32, i32) {
    %c0_i32 = arith.constant 0 : i32
    %c0_i32_0 = arith.constant 0 : i32
    %c0_i32_1 = arith.constant 0 : i32
    return %c0_i32, %c0_i32_0 : i32, i32
  }
  func.func @transform_7(%arg0: i32) -> (i32, i32) {
    %c0_i32 = arith.constant 0 : i32
    %c0_i32_0 = arith.constant 0 : i32
    return %arg0, %c0_i32 : i32, i32
  }
}

</mosaic_0001>

<llo_original>
// kernel: engine_classifier_forward.1
$region0: #{engine_classifier_forward.1}
  #allocation0 [shape = 'u32[]', space=smem, size = 0x4, offset = 0x4, fixed_abs, tag = 'smem constant byte address 0x4 - core index']
  #allocation1 [shape = 'u32[144,128]{1,0:T(1,128)}', space=vmem, size = 0x12000, scoped, tag = 'internal scratch']
  %s0 = inlined_call_operand.vmem [shape: bf16[64,196], index: 0, kind: input, shape index: {}]
  %s1 = inlined_call_operand.hbm [shape: bf16[196,784], index: 1, kind: input, shape index: {}]
  %s2 = inlined_call_operand.hbm [shape: f32[1,784], index: 2, kind: input, shape index: {}]
  %s3 = inlined_call_operand.hbm [shape: bf16[784,1024], index: 3, kind: input, shape index: {}]
  %s4 = inlined_call_operand.hbm [shape: f32[1,1024], index: 4, kind: input, shape index: {}]
  %s5 = inlined_call_operand.hbm [shape: bf16[1024,128], index: 5, kind: input, shape index: {}]
  %s6 = inlined_call_operand.hbm [shape: f32[1,128], index: 6, kind: input, shape index: {}]
  %s7 = inlined_call_operand.vmem [shape: f32[16,128], index: 7, kind: output, shape index: {}]
  %s8 = sld [smem:[#allocation0]]
  $region62: #{engine_classifier_forward.1} parent=0
    _
  %s10 = ssub.s32 1, %s8
  %s11 = scalar_select 0, %s10, %s8
  $region1: #{engine_classifier_forward.1} parent=0
    #allocation2 [shape = 'u8[358400]{0}', space=vmem, size = 0x57800, scoped, tag = 'input window, operand 1, single buffered']
    #allocation3 [shape = 's32[1]{0}', space=sflag, size = 0x4, scoped, tag = 'scoped memory for engine_classifier_forward.1']
    #allocation4 [shape = 'u8[3584]{0}', space=vmem, size = 0x1000, scoped, tag = 'input window, operand 2, single buffered']
    #allocation5 [shape = 's32[1]{0}', space=sflag, size = 0x4, scoped, tag = 'scoped memory for engine_classifier_forward.1']
    #allocation6 [shape = 'u8[1605632]{0}', space=vmem, size = 0x188000, scoped, tag = 'input window, operand 3, single buffered']
    #allocation7 [shape = 'u8[4096]{0}', space=vmem, size = 0x1000, scoped, tag = 'input window, operand 4, single buffered']
    #allocation8 [shape = 's32[1]{0}', space=sflag, size = 0x4, scoped, tag = 'scoped memory for engine_classifier_forward.1']
    #allocation9 [shape = 'u8[262144]{0}', space=vmem, size = 0x40000, scoped, tag = 'input window, operand 5, single buffered']
    #allocation10 [shape = 'u8[512]{0}', space=vmem, size = 0x400, scoped, tag = 'input window, operand 6, single buffered']
    #allocation11 [shape = 's32[1]{0}', space=sflag, size = 0x4, scoped, tag = 'scoped memory for engine_classifier_forward.1']
    %12 = vsyncpa [#allocation3], 0
    %13 = vsyncpa [#allocation5], 0
    %14 = vsyncpa [#allocation8], 0
    %15 = vsyncpa [#allocation11], 0
    // Predicated region
    $region2: #{engine_classifier_forward.1} parent=1 // pred_check
      _
    $region3: #{engine_classifier_forward.1} parent=1 // pred_check_branch
      %17 = sbr.rel (0) target = $region5
    $region4: #{engine_classifier_forward.1} parent=1 // pred_region
      _
    $region5: #{engine_classifier_forward.1} parent=1 // pred_fallthru
      _
    // Predicated region
    $region6: #{engine_classifier_forward.1} parent=1 // pred_check
      _
    $region7: #{engine_classifier_forward.1} parent=1 // pred_check_branch
      %19 = sbr.rel (0) target = $region9
    $region8: #{engine_classifier_forward.1} parent=1 // pred_region
      %s21 = ssub.s32 11200, 11200
      %22 = vsyncadd [#allocation3], %s21
      %s23 = sshll.u32 [#allocation2], 4
      %s24 = int_to_ptr.vmem [resolvable:$true] %s23
      %29 = dma.hbm_to_vmem [thread:$0]  %s1, 11200, %s24, [#allocation3], 448, 448, 28
    $region9: #{engine_classifier_forward.1} parent=1 // pred_fallthru
      _
    // Predicated region
    $region10: #{engine_classifier_forward.1} parent=1 // pred_check
      _
    $region11: #{engine_classifier_forward.1} parent=1 // pred_check_branch
      %31 = sbr.rel (0) target = $region13
    $region12: #{engine_classifier_forward.1} parent=1 // pred_region
      %s33 = ssub.s32 112, 112
      %34 = vsyncadd [#allocation5], %s33
      %s36 = sshll.u32 [#allocation4], 4
      %s37 = int_to_ptr.vmem [resolvable:$true] %s36
      %39 = dma.hbm_to_vmem [thread:$0]  %s2, 112, %s37, [#allocation5]
    $region13: #{engine_classifier_forward.1} parent=1 // pred_fallthru
      _
    // Predicated region
    $region14: #{engine_classifier_forward.1} parent=1 // pred_check
      _
    $region15: #{engine_classifier_forward.1} parent=1 // pred_check_branch
      %41 = sbr.rel (0) target = $region17
    $region16: #{engine_classifier_forward.1} parent=1 // pred_region
      %s43 = ssub.s32 50176, 50176
      %44 = vsyncadd [#allocation5], %s43
      %s45 = sshll.u32 [#allocation6], 4
      %s46 = int_to_ptr.vmem [resolvable:$true] %s45
      %51 = dma.hbm_to_vmem [thread:$0]  %s3, 50176, %s46, [#allocation5], 512, 512, 32
    $region17: #{engine_classifier_forward.1} parent=1 // pred_fallthru
      _
    // Predicated region
    $region18: #{engine_classifier_forward.1} parent=1 // pred_check
      _
    $region19: #{engine_classifier_forward.1} parent=1 // pred_check_branch
      %53 = sbr.rel (0) target = $region21
    $region20: #{engine_classifier_forward.1} parent=1 // pred_region
      %s55 = ssub.s32 128, 128
      %56 = vsyncadd [#allocation8], %s55
      %s58 = sshll.u32 [#allocation7], 4
      %s59 = int_to_ptr.vmem [resolvable:$true] %s58
      %61 = dma.hbm_to_vmem [thread:$0]  %s4, 128, %s59, [#allocation8]
    $region21: #{engine_classifier_forward.1} parent=1 // pred_fallthru
      _
    // Predicated region
    $region22: #{engine_classifier_forward.1} parent=1 // pred_check
      _
    $region23: #{engine_classifier_forward.1} parent=1 // pred_check_branch
      %63 = sbr.rel (0) target = $region25
    $region24: #{engine_classifier_forward.1} parent=1 // pred_region
      %s65 = ssub.s32 8192, 8192
      %66 = vsyncadd [#allocation8], %s65
      %s67 = sshll.u32 [#allocation9], 4
      %s68 = int_to_ptr.vmem [resolvable:$true] %s67
      %73 = dma.hbm_to_vmem [thread:$0]  %s5, 8192, %s68, [#allocation8], 64, 64, 4
    $region25: #{engine_classifier_forward.1} parent=1 // pred_fallthru
      _
    // Predicated region
    $region26: #{engine_classifier_forward.1} parent=1 // pred_check
      _
    $region27: #{engine_classifier_forward.1} parent=1 // pred_check_branch
      %75 = sbr.rel (0) target = $region29
    $region28: #{engine_classifier_forward.1} parent=1 // pred_region
      %s77 = ssub.s32 16, 16
      %78 = vsyncadd [#allocation11], %s77
      %s80 = sshll.u32 [#allocation10], 4
      %s81 = int_to_ptr.vmem [resolvable:$true] %s80
      %83 = dma.hbm_to_vmem [thread:$0]  %s6, 16, %s81, [#allocation11]
    $region29: #{engine_classifier_forward.1} parent=1 // pred_fallthru
      _
    // Predicated region
    $region30: #{engine_classifier_forward.1} parent=1 // pred_check
      _
    $region31: #{engine_classifier_forward.1} parent=1 // pred_check_branch
      %85 = sbr.rel (0) target = $region33
    $region32: #{engine_classifier_forward.1} parent=1 // pred_region
      %86 = dma.done [#allocation3], 11200
    $region33: #{engine_classifier_forward.1} parent=1 // pred_fallthru
      _
    // Predicated region
    $region34: #{engine_classifier_forward.1} parent=1 // pred_check
      _
    $region35: #{engine_classifier_forward.1} parent=1 // pred_check_branch
      %88 = sbr.rel (0) target = $region37
    $region36: #{engine_classifier_forward.1} parent=1 // pred_region
      %89 = dma.done [#allocation5], 112
    $region37: #{engine_classifier_forward.1} parent=1 // pred_fallthru
      _
    // Predicated region
    $region38: #{engine_classifier_forward.1} parent=1 // pred_check
      _
    $region39: #{engine_classifier_forward.1} parent=1 // pred_check_branch
      %91 = sbr.rel (0) target = $region41
    $region40: #{engine_classifier_forward.1} parent=1 // pred_region
      %92 = dma.done [#allocation5], 50176
    $region41: #{engine_classifier_forward.1} parent=1 // pred_fallthru
      _
    // Predicated region
    $region42: #{engine_classifier_forward.1} parent=1 // pred_check
      _
    $region43: #{engine_classifier_forward.1} parent=1 // pred_check_branch
      %94 = sbr.rel (0) target = $region45
    $region44: #{engine_classifier_forward.1} parent=1 // pred_region
      %95 = dma.done [#allocation8], 128
    $region45: #{engine_classifier_forward.1} parent=1 // pred_fallthru
      _
    // Predicated region
    $region46: #{engine_classifier_forward.1} parent=1 // pred_check
      _
    $region47: #{engine_classifier_forward.1} parent=1 // pred_check_branch
      %97 = sbr.rel (0) target = $region49
    $region48: #{engine_classifier_forward.1} parent=1 // pred_region
      %98 = dma.done [#allocation8], 8192
    $region49: #{engine_classifier_forward.1} parent=1 // pred_fallthru
      _
    // Predicated region
    $region50: #{engine_classifier_forward.1} parent=1 // pred_check
      _
    $region51: #{engine_classifier_forward.1} parent=1 // pred_check_branch
      %100 = sbr.rel (0) target = $region53
    $region52: #{engine_classifier_forward.1} parent=1 // pred_region
      %101 = dma.done [#allocation11], 16
    $region53: #{engine_classifier_forward.1} parent=1 // pred_fallthru
      _
    %v103 = vld [vmem:[%s0] sm:$0xff]
    %v104 = vld [vmem:[%s0 + $0x8] sm:$0xff]
    %v105 = vld [vmem:[%s0 + $0x10] sm:$0xff]
    %v106 = vld [vmem:[%s0 + $0x18] sm:$0xff]
    %v107 = vld [vmem:[%s0 + $0x20] sm:$0xff]
    %v108 = vld [vmem:[%s0 + $0x28] sm:$0xff]
    %v109 = vld [vmem:[%s0 + $0x30] sm:$0xff]
    %v110 = vld [vmem:[%s0 + $0x38] sm:$0xff]
    %v111 = vld [vmem:[#allocation2] sm:$0xff]
    %v112 = vld [vmem:[#allocation2 + $0x8] sm:$0xff]
    %v113 = vld [vmem:[#allocation2 + $0x10] sm:$0xff]
    %v114 = vld [vmem:[#allocation2 + $0x18] sm:$0xf]
    %v115 = vld [vmem:[#allocation2 + $0x1c] sm:$0xff]
    %v116 = vld [vmem:[#allocation2 + $0x24] sm:$0xff]
    %v117 = vld [vmem:[#allocation2 + $0x2c] sm:$0xff]
    %v118 = vld [vmem:[#allocation2 + $0x34] sm:$0xf]
    %v119 = vld [vmem:[#allocation2 + $0x38] sm:$0xff]
    %v120 = vld [vmem:[#allocation2 + $0x40] sm:$0xff]
    %v121 = vld [vmem:[#allocation2 + $0x48] sm:$0xff]
    %v122 = vld [vmem:[#allocation2 + $0x50] sm:$0xf]
    %v123 = vld [vmem:[#allocation2 + $0x54] sm:$0xff]
    %v124 = vld [vmem:[#allocation2 + $0x5c] sm:$0xff]
    %v125 = vld [vmem:[#allocation2 + $0x64] sm:$0xff]
    %v126 = vld [vmem:[#allocation2 + $0x6c] sm:$0xf]
    %v127 = vld [vmem:[#allocation2 + $0x70] sm:$0xff]
    %v128 = vld [vmem:[#allocation2 + $0x78] sm:$0xff]
    %v129 = vld [vmem:[#allocation2 + $0x80] sm:$0xff]
    %v130 = vld [vmem:[#allocation2 + $0x88] sm:$0xf]
    %v131 = vld [vmem:[#allocation2 + $0x8c] sm:$0xff]
    %v132 = vld [vmem:[#allocation2 + $0x94] sm:$0xff]
    %v133 = vld [vmem:[#allocation2 + $0x9c] sm:$0xff]
    %v134 = vld [vmem:[#allocation2 + $0xa4] sm:$0xf]
    %v135 = vld [vmem:[#allocation2 + $0xa8] sm:$0xff]
    %v136 = vld [vmem:[#allocation2 + $0xb0] sm:$0xff]
    %v137 = vld [vmem:[#allocation2 + $0xb8] sm:$0xff]
    %v138 = vld [vmem:[#allocation2 + $0xc0] sm:$0xf]
    %v139 = vld [vmem:[#allocation2 + $0xc4] sm:$0xff]
    %v140 = vld [vmem:[#allocation2 + $0xcc] sm:$0xff]
    %v141 = vld [vmem:[#allocation2 + $0xd4] sm:$0xff]
    %v142 = vld [vmem:[#allocation2 + $0xdc] sm:$0xf]
    %v143 = vld [vmem:[#allocation2 + $0xe0] sm:$0xff]
    %v144 = vld [vmem:[#allocation2 + $0xe8] sm:$0xff]
    %v145 = vld [vmem:[#allocation2 + $0xf0] sm:$0xff]
    %v146 = vld [vmem:[#allocation2 + $0xf8] sm:$0xf]
    %v147 = vld [vmem:[#allocation2 + $0xfc] sm:$0xff]
    %v148 = vld [vmem:[#allocation2 + $0x104] sm:$0xff]
    %v149 = vld [vmem:[#allocation2 + $0x10c] sm:$0xff]
    %v150 = vld [vmem:[#allocation2 + $0x114] sm:$0xf]
    %v151 = vld [vmem:[#allocation2 + $0x118] sm:$0xff]
    %v152 = vld [vmem:[#allocation2 + $0x120] sm:$0xff]
    %v153 = vld [vmem:[#allocation2 + $0x128] sm:$0xff]
    %v154 = vld [vmem:[#allocation2 + $0x130] sm:$0xf]
    %v155 = vld [vmem:[#allocation2 + $0x134] sm:$0xff]
    %v156 = vld [vmem:[#allocation2 + $0x13c] sm:$0xff]
    %v157 = vld [vmem:[#allocation2 + $0x144] sm:$0xff]
    %v158 = vld [vmem:[#allocation2 + $0x14c] sm:$0xf]
    %v159 = vld [vmem:[#allocation2 + $0x150] sm:$0xff]
    %v160 = vld [vmem:[#allocation2 + $0x158] sm:$0xff]
    %v161 = vld [vmem:[#allocation2 + $0x160] sm:$0xff]
    %v162 = vld [vmem:[#allocation2 + $0x168] sm:$0xf]
    %v163 = vld [vmem:[#allocation2 + $0x16c] sm:$0xff]
    %v164 = vld [vmem:[#allocation2 + $0x174] sm:$0xff]
    %v165 = vld [vmem:[#allocation2 + $0x17c] sm:$0xff]
    %v166 = vld [vmem:[#allocation2 + $0x184] sm:$0xf]
    %v167 = vld [vmem:[#allocation2 + $0x188] sm:$0xff]
    %v168 = vld [vmem:[#allocation2 + $0x190] sm:$0xff]
    %v169 = vld [vmem:[#allocation2 + $0x198] sm:$0xff]
    %v170 = vld [vmem:[#allocation2 + $0x1a0] sm:$0xf]
    %v171 = vld [vmem:[#allocation2 + $0x1a4] sm:$0xff]
    %v172 = vld [vmem:[#allocation2 + $0x1ac] sm:$0xff]
    %v173 = vld [vmem:[#allocation2 + $0x1b4] sm:$0xff]
    %v174 = vld [vmem:[#allocation2 + $0x1bc] sm:$0xf]
    %v175 = vld [vmem:[#allocation2 + $0x1c0] sm:$0xff]
    %v176 = vld [vmem:[#allocation2 + $0x1c8] sm:$0xff]
    %v177 = vld [vmem:[#allocation2 + $0x1d0] sm:$0xff]
    %v178 = vld [vmem:[#allocation2 + $0x1d8] sm:$0xf]
    %v179 = vld [vmem:[#allocation2 + $0x1dc] sm:$0xff]
    %v180 = vld [vmem:[#allocation2 + $0x1e4] sm:$0xff]
    %v181 = vld [vmem:[#allocation2 + $0x1ec] sm:$0xff]
    %v182 = vld [vmem:[#allocation2 + $0x1f4] sm:$0xf]
    %v183 = vld [vmem:[#allocation2 + $0x1f8] sm:$0xff]
    %v184 = vld [vmem:[#allocation2 + $0x200] sm:$0xff]
    %v185 = vld [vmem:[#allocation2 + $0x208] sm:$0xff]
    %v186 = vld [vmem:[#allocation2 + $0x210] sm:$0xf]
    %v187 = vld [vmem:[#allocation2 + $0x214] sm:$0xff]
    %v188 = vld [vmem:[#allocation2 + $0x21c] sm:$0xff]
    %v189 = vld [vmem:[#allocation2 + $0x224] sm:$0xff]
    %v190 = vld [vmem:[#allocation2 + $0x22c] sm:$0xf]
    %v191 = vld [vmem:[#allocation2 + $0x230] sm:$0xff]
    %v192 = vld [vmem:[#allocation2 + $0x238] sm:$0xff]
    %v193 = vld [vmem:[#allocation2 + $0x240] sm:$0xff]
    %v194 = vld [vmem:[#allocation2 + $0x248] sm:$0xf]
    %v195 = vld [vmem:[#allocation2 + $0x24c] sm:$0xff]
    %v196 = vld [vmem:[#allocation2 + $0x254] sm:$0xff]
    %v197 = vld [vmem:[#allocation2 + $0x25c] sm:$0xff]
    %v198 = vld [vmem:[#allocation2 + $0x264] sm:$0xf]
    %v199 = vld [vmem:[#allocation2 + $0x268] sm:$0xff]
    %v200 = vld [vmem:[#allocation2 + $0x270] sm:$0xff]
    %v201 = vld [vmem:[#allocation2 + $0x278] sm:$0xff]
    %v202 = vld [vmem:[#allocation2 + $0x280] sm:$0xf]
    %v203 = vld [vmem:[#allocation2 + $0x284] sm:$0xff]
    %v204 = vld [vmem:[#allocation2 + $0x28c] sm:$0xff]
    %v205 = vld [vmem:[#allocation2 + $0x294] sm:$0xff]
    %v206 = vld [vmem:[#allocation2 + $0x29c] sm:$0xf]
    %v207 = vld [vmem:[#allocation2 + $0x2a0] sm:$0x33]
    %v208 = vld [vmem:[#allocation2 + $0x2a8] sm:$0x33]
    %v209 = vld [vmem:[#allocation2 + $0x2b0] sm:$0x33]
    %v210 = vld [vmem:[#allocation2 + $0x2b8] sm:$0x3]
    %v219 = vunpack.c.l.b16 %v103
    %v220 = vunpack.c.h.b16 %v103
    %v221 = vunpack.c.l.b16 %v104
    %v222 = vunpack.c.h.b16 %v104
    %v223 = vunpack.c.l.b16 %v105
    %v224 = vunpack.c.h.b16 %v105
    %v225 = vunpack.c.l.b16 %v106
    %v226 = vunpack.c.h.b16 %v106
    %v227 = vunpack.c.l.b16 %v107
    %v228 = vunpack.c.h.b16 %v107
    %v229 = vunpack.c.l.b16 %v108
    %v230 = vunpack.c.h.b16 %v108
    %v231 = vunpack.c.l.b16 %v109
    %v232 = vunpack.c.h.b16 %v109
    %v233 = vunpack.c.l.b16 %v110
    %v234 = vunpack.c.h.b16 %v110
    %v235 = vpack.c.b16 %v221, %v219
    %v236 = vpack.c.b16 %v222, %v220
    %v237 = vpack.c.b16 %v225, %v223
    %v238 = vpack.c.b16 %v226, %v224
    %v239 = vpack.c.b16 %v229, %v227
    %v240 = vpack.c.b16 %v230, %v228
    %v241 = vpack.c.b16 %v233, %v231
    %v242 = vpack.c.b16 %v234, %v232
    %v347 = vunpack.c.l.b16 %v111
    %v348 = vunpack.c.h.b16 %v111
    %v349 = vunpack.c.l.b16 %v112
    %v350 = vunpack.c.h.b16 %v112
    %v351 = vunpack.c.l.b16 %v113
    %v352 = vunpack.c.h.b16 %v113
    %v353 = vunpack.c.l.b16 %v114
    %v354 = vunpack.c.l.b16 %v115
    %v355 = vunpack.c.h.b16 %v115
    %v356 = vunpack.c.l.b16 %v116
    %v357 = vunpack.c.h.b16 %v116
    %v358 = vunpack.c.l.b16 %v117
    %v359 = vunpack.c.h.b16 %v117
    %v360 = vunpack.c.l.b16 %v118
    %v361 = vunpack.c.l.b16 %v119
    %v362 = vunpack.c.h.b16 %v119
    %v363 = vunpack.c.l.b16 %v120
    %v364 = vunpack.c.h.b16 %v120
    %v365 = vunpack.c.l.b16 %v121
    %v366 = vunpack.c.h.b16 %v121
    %v367 = vunpack.c.l.b16 %v122
    %v368 = vunpack.c.l.b16 %v123
    %v369 = vunpack.c.h.b16 %v123
    %v370 = vunpack.c.l.b16 %v124
    %v371 = vunpack.c.h.b16 %v124
    %v372 = vunpack.c.l.b16 %v125
    %v373 = vunpack.c.h.b16 %v125
    %v374 = vunpack.c.l.b16 %v126
    %v375 = vunpack.c.l.b16 %v127
    %v376 = vunpack.c.h.b16 %v127
    %v377 = vunpack.c.l.b16 %v128
    %v378 = vunpack.c.h.b16 %v128
    %v379 = vunpack.c.l.b16 %v129
    %v380 = vunpack.c.h.b16 %v129
    %v381 = vunpack.c.l.b16 %v130
    %v382 = vunpack.c.l.b16 %v131
    %v383 = vunpack.c.h.b16 %v131
    %v384 = vunpack.c.l.b16 %v132
    %v385 = vunpack.c.h.b16 %v132
    %v386 = vunpack.c.l.b16 %v133
    %v387 = vunpack.c.h.b16 %v133
    %v388 = vunpack.c.l.b16 %v134
    %v389 = vunpack.c.l.b16 %v135
    %v390 = vunpack.c.h.b16 %v135
    %v391 = vunpack.c.l.b16 %v136
    %v392 = vunpack.c.h.b16 %v136
    %v393 = vunpack.c.l.b16 %v137
    %v394 = vunpack.c.h.b16 %v137
    %v395 = vunpack.c.l.b16 %v138
    %v396 = vunpack.c.l.b16 %v139
    %v397 = vunpack.c.h.b16 %v139
    %v398 = vunpack.c.l.b16 %v140
    %v399 = vunpack.c.h.b16 %v140
    %v400 = vunpack.c.l.b16 %v141
    %v401 = vunpack.c.h.b16 %v141
    %v402 = vunpack.c.l.b16 %v142
    %v403 = vunpack.c.l.b16 %v143
    %v404 = vunpack.c.h.b16 %v143
    %v405 = vunpack.c.l.b16 %v144
    %v406 = vunpack.c.h.b16 %v144
    %v407 = vunpack.c.l.b16 %v145
    %v408 = vunpack.c.h.b16 %v145
    %v409 = vunpack.c.l.b16 %v146
    %v410 = vunpack.c.l.b16 %v147
    %v411 = vunpack.c.h.b16 %v147
    %v412 = vunpack.c.l.b16 %v148
    %v413 = vunpack.c.h.b16 %v148
    %v414 = vunpack.c.l.b16 %v149
    %v415 = vunpack.c.h.b16 %v149
    %v416 = vunpack.c.l.b16 %v150
    %v417 = vunpack.c.l.b16 %v151
    %v418 = vunpack.c.h.b16 %v151
    %v419 = vunpack.c.l.b16 %v152
    %v420 = vunpack.c.h.b16 %v152
    %v421 = vunpack.c.l.b16 %v153
    %v422 = vunpack.c.h.b16 %v153
    %v423 = vunpack.c.l.b16 %v154
    %v424 = vunpack.c.l.b16 %v155
    %v425 = vunpack.c.h.b16 %v155
    %v426 = vunpack.c.l.b16 %v156
    %v427 = vunpack.c.h.b16 %v156
    %v428 = vunpack.c.l.b16 %v157
    %v429 = vunpack.c.h.b16 %v157
    %v430 = vunpack.c.l.b16 %v158
    %v431 = vunpack.c.l.b16 %v159
    %v432 = vunpack.c.h.b16 %v159
    %v433 = vunpack.c.l.b16 %v160
    %v434 = vunpack.c.h.b16 %v160
    %v435 = vunpack.c.l.b16 %v161
    %v436 = vunpack.c.h.b16 %v161
    %v437 = vunpack.c.l.b16 %v162
    %v438 = vunpack.c.l.b16 %v163
    %v439 = vunpack.c.h.b16 %v163
    %v440 = vunpack.c.l.b16 %v164
    %v441 = vunpack.c.h.b16 %v164
    %v442 = vunpack.c.l.b16 %v165
    %v443 = vunpack.c.h.b16 %v165
    %v444 = vunpack.c.l.b16 %v166
    %v445 = vunpack.c.l.b16 %v167
    %v446 = vunpack.c.h.b16 %v167
    %v447 = vunpack.c.l.b16 %v168
    %v448 = vunpack.c.h.b16 %v168
    %v449 = vunpack.c.l.b16 %v169
    %v450 = vunpack.c.h.b16 %v169
    %v451 = vunpack.c.l.b16 %v170
    %v452 = vunpack.c.l.b16 %v171
    %v453 = vunpack.c.h.b16 %v171
    %v454 = vunpack.c.l.b16 %v172
    %v455 = vunpack.c.h.b16 %v172
    %v456 = vunpack.c.l.b16 %v173
    %v457 = vunpack.c.h.b16 %v173
    %v458 = vunpack.c.l.b16 %v174
    %v459 = vunpack.c.l.b16 %v175
    %v460 = vunpack.c.h.b16 %v175
    %v461 = vunpack.c.l.b16 %v176
    %v462 = vunpack.c.h.b16 %v176
    %v463 = vunpack.c.l.b16 %v177
    %v464 = vunpack.c.h.b16 %v177
    %v465 = vunpack.c.l.b16 %v178
    %v466 = vunpack.c.l.b16 %v179
    %v467 = vunpack.c.h.b16 %v179
    %v468 = vunpack.c.l.b16 %v180
    %v469 = vunpack.c.h.b16 %v180
    %v470 = vunpack.c.l.b16 %v181
    %v471 = vunpack.c.h.b16 %v181
    %v472 = vunpack.c.l.b16 %v182
    %v473 = vunpack.c.l.b16 %v183
    %v474 = vunpack.c.h.b16 %v183
    %v475 = vunpack.c.l.b16 %v184
    %v476 = vunpack.c.h.b16 %v184
    %v477 = vunpack.c.l.b16 %v185
    %v478 = vunpack.c.h.b16 %v185
    %v479 = vunpack.c.l.b16 %v186
    %v480 = vunpack.c.l.b16 %v187
    %v481 = vunpack.c.h.b16 %v187
    %v482 = vunpack.c.l.b16 %v188
    %v483 = vunpack.c.h.b16 %v188
    %v484 = vunpack.c.l.b16 %v189
    %v485 = vunpack.c.h.b16 %v189
    %v486 = vunpack.c.l.b16 %v190
    %v487 = vunpack.c.l.b16 %v191
    %v488 = vunpack.c.h.b16 %v191
    %v489 = vunpack.c.l.b16 %v192
    %v490 = vunpack.c.h.b16 %v192
    %v491 = vunpack.c.l.b16 %v193
    %v492 = vunpack.c.h.b16 %v193
    %v493 = vunpack.c.l.b16 %v194
    %v494 = vunpack.c.l.b16 %v195
    %v495 = vunpack.c.h.b16 %v195
    %v496 = vunpack.c.l.b16 %v196
    %v497 = vunpack.c.h.b16 %v196
    %v498 = vunpack.c.l.b16 %v197
    %v499 = vunpack.c.h.b16 %v197
    %v500 = vunpack.c.l.b16 %v198
    %v501 = vunpack.c.l.b16 %v199
    %v502 = vunpack.c.h.b16 %v199
    %v503 = vunpack.c.l.b16 %v200
    %v504 = vunpack.c.h.b16 %v200
    %v505 = vunpack.c.l.b16 %v201
    %v506 = vunpack.c.h.b16 %v201
    %v507 = vunpack.c.l.b16 %v202
    %v508 = vunpack.c.l.b16 %v203
    %v509 = vunpack.c.h.b16 %v203
    %v510 = vunpack.c.l.b16 %v204
    %v511 = vunpack.c.h.b16 %v204
    %v512 = vunpack.c.l.b16 %v205
    %v513 = vunpack.c.h.b16 %v205
    %v514 = vunpack.c.l.b16 %v206
    %v515 = vunpack.c.l.b16 %v207
    %v516 = vunpack.c.h.b16 %v207
    %v517 = vunpack.c.l.b16 %v208
    %v518 = vunpack.c.h.b16 %v208
    %v519 = vunpack.c.l.b16 %v209
    %v520 = vunpack.c.h.b16 %v209
    %v521 = vunpack.c.l.b16 %v210
    %v522 = vpack.c.b16 %v354, %v347
    %v523 = vpack.c.b16 %v355, %v348
    %v524 = vpack.c.b16 %v356, %v349
    %v525 = vpack.c.b16 %v357, %v350
    %v526 = vpack.c.b16 %v358, %v351
    %v527 = vpack.c.b16 %v359, %v352
    %v528 = vpack.c.b16 %v360, %v353
    %v529 = vpack.c.b16 %v368, %v361
    %v530 = vpack.c.b16 %v369, %v362
    %v531 = vpack.c.b16 %v370, %v363
    %v532 = vpack.c.b16 %v371, %v364
    %v533 = vpack.c.b16 %v372, %v365
    %v534 = vpack.c.b16 %v373, %v366
    %v535 = vpack.c.b16 %v374, %v367
    %v536 = vpack.c.b16 %v382, %v375
    %v537 = vpack.c.b16 %v383, %v376
    %v538 = vpack.c.b16 %v384, %v377
    %v539 = vpack.c.b16 %v385, %v378
    %v540 = vpack.c.b16 %v386, %v379
    %v541 = vpack.c.b16 %v387, %v380
    %v542 = vpack.c.b16 %v388, %v381
    %v543 = vpack.c.b16 %v396, %v389
    %v544 = vpack.c.b16 %v397, %v390
    %v545 = vpack.c.b16 %v398, %v391
    %v546 = vpack.c.b16 %v399, %v392
    %v547 = vpack.c.b16 %v400, %v393
    %v548 = vpack.c.b16 %v401, %v394
    %v549 = vpack.c.b16 %v402, %v395
    %v550 = vpack.c.b16 %v410, %v403
    %v551 = vpack.c.b16 %v411, %v404
    %v552 = vpack.c.b16 %v412, %v405
    %v553 = vpack.c.b16 %v413, %v406
    %v554 = vpack.c.b16 %v414, %v407
    %v555 = vpack.c.b16 %v415, %v408
    %v556 = vpack.c.b16 %v416, %v409
    %v557 = vpack.c.b16 %v424, %v417
    %v558 = vpack.c.b16 %v425, %v418
    %v559 = vpack.c.b16 %v426, %v419
    %v560 = vpack.c.b16 %v427, %v420
    %v561 = vpack.c.b16 %v428, %v421
    %v562 = vpack.c.b16 %v429, %v422
    %v563 = vpack.c.b16 %v430, %v423
    %v564 = vpack.c.b16 %v438, %v431
    %v565 = vpack.c.b16 %v439, %v432
    %v566 = vpack.c.b16 %v440, %v433
    %v567 = vpack.c.b16 %v441, %v434
    %v568 = vpack.c.b16 %v442, %v435
    %v569 = vpack.c.b16 %v443, %v436
    %v570 = vpack.c.b16 %v444, %v437
    %v571 = vpack.c.b16 %v452, %v445
    %v572 = vpack.c.b16 %v453, %v446
    %v573 = vpack.c.b16 %v454, %v447
    %v574 = vpack.c.b16 %v455, %v448
    %v575 = vpack.c.b16 %v456, %v449
    %v576 = vpack.c.b16 %v457, %v450
    %v577 = vpack.c.b16 %v458, %v451
    %v578 = vpack.c.b16 %v466, %v459
    %v579 = vpack.c.b16 %v467, %v460
    %v580 = vpack.c.b16 %v468, %v461
    %v581 = vpack.c.b16 %v469, %v462
    %v582 = vpack.c.b16 %v470, %v463
    %v583 = vpack.c.b16 %v471, %v464
    %v584 = vpack.c.b16 %v472, %v465
    %v585 = vpack.c.b16 %v480, %v473
    %v586 = vpack.c.b16 %v481, %v474
    %v587 = vpack.c.b16 %v482, %v475
    %v588 = vpack.c.b16 %v483, %v476
    %v589 = vpack.c.b16 %v484, %v477
    %v590 = vpack.c.b16 %v485, %v478
    %v591 = vpack.c.b16 %v486, %v479
    %v592 = vpack.c.b16 %v494, %v487
    %v593 = vpack.c.b16 %v495, %v488
    %v594 = vpack.c.b16 %v496, %v489
    %v595 = vpack.c.b16 %v497, %v490
    %v596 = vpack.c.b16 %v498, %v491
    %v597 = vpack.c.b16 %v499, %v492
    %v598 = vpack.c.b16 %v500, %v493
    %v599 = vpack.c.b16 %v508, %v501
    %v600 = vpack.c.b16 %v509, %v502
    %v601 = vpack.c.b16 %v510, %v503
    %v602 = vpack.c.b16 %v511, %v504
    %v603 = vpack.c.b16 %v512, %v505
    %v604 = vpack.c.b16 %v513, %v506
    %v605 = vpack.c.b16 %v514, %v507
    %v606 = vpack.c.b16 %v515, %v515
    %v607 = vpack.c.b16 %v516, %v516
    %v608 = vpack.c.b16 %v517, %v517
    %v609 = vpack.c.b16 %v518, %v518
    %v610 = vpack.c.b16 %v519, %v519
    %v611 = vpack.c.b16 %v520, %v520
    %v612 = vpack.c.b16 %v521, %v521
    %vm697 = vcmask 556032
    %v699 = vsel %vm697, %v236, 0
    %v702 = vsel %vm697, %v238, 0
    %v705 = vsel %vm697, %v240, 0
    %v708 = vsel %vm697, %v242, 0
    %vm710 = vcmask 1041408
    %v712 = vsel %vm710, %v606, 0
    %v715 = vsel %vm710, %v607, 0
    %v718 = vsel %vm710, %v608, 0
    %v721 = vsel %vm710, %v609, 0
    %v724 = vsel %vm710, %v610, 0
    %v727 = vsel %vm710, %v611, 0
    %v730 = vsel %vm710, %v612, 0
    %732 = vmatprep.subr.bf16.mxu0 %v572
    %733 = vmatpush1.bf16.msra.mxu0 %v571
    %734 = vmatprep.subr.bf16.mxu0 %v565
    %735 = vmatpush1.bf16.msra.mxu0 %v564
    %736 = vmatprep.subr.bf16.mxu0 %v558
    %737 = vmatpush1.bf16.msra.mxu0 %v557
    %738 = vmatprep.subr.bf16.mxu0 %v551
    %739 = vmatpush1.bf16.msra.mxu0 %v550
    %740 = vmatprep.subr.bf16.mxu0 %v544
    %741 = vmatpush1.bf16.msra.mxu0 %v543
    %742 = vmatprep.subr.bf16.mxu0 %v537
    %743 = vmatpush1.bf16.msra.mxu0 %v536
    %744 = vmatprep.subr.bf16.mxu0 %v530
    %745 = vmatpush1.bf16.msra.mxu0 %v529
    %746 = vmatprep.subr.bf16.mxu0 %v523
    %747 = vmatpush1.bf16.msra.mxu0 %v522
    %748 = vmatprep.subr.bf16.mxu0 0
    %749 = vmatpush2.bf16.msra.mxu0 0
    %750 = vmatprep.subr.bf16.mxu0 0
    %751 = vmatpush2.bf16.msra.mxu0 0
    %752 = vmatprep.subr.bf16.mxu0 0
    %753 = vmatpush2.bf16.msra.mxu0 0
    %754 = vmatprep.subr.bf16.mxu0 %v715
    %755 = vmatpush2.bf16.msra.mxu0 %v712
    %756 = vmatprep.subr.bf16.mxu0 %v600
    %757 = vmatpush2.bf16.msra.mxu0 %v599
    %758 = vmatprep.subr.bf16.mxu0 %v593
    %759 = vmatpush2.bf16.msra.mxu0 %v592
    %760 = vmatprep.subr.bf16.mxu0 %v586
    %761 = vmatpush2.bf16.msra.mxu0 %v585
    %762 = vmatprep.subr.bf16.mxu0 %v579
    %763 = vmatpush2.bf16.msra.mxu0 %v578
    %764 = vmatprep.mubr.bf16.mxu0 %v699
    %765 = vmatmul.mubr.bf16.gmra.mxu0 %v235
    %v766 = vpop.f32.mrf.mxu0
    %v767 = vadd.f32 0.0, %v766
    %v768 = vpop.f32.mrf.mxu0
    %v769 = vadd.f32 0.0, %v768
    %v770 = vpop.f32.mrf.mxu0
    %v771 = vadd.f32 0.0, %v770
    %v772 = vpop.f32.mrf.mxu0
    %v773 = vadd.f32 0.0, %v772
    %774 = vmatprep.mubr.bf16.mxu0 %v702
    %775 = vmatmul.mubr.bf16.gmra.mxu0 %v237
    %v776 = vpop.f32.mrf.mxu0
    %v777 = vadd.f32 0.0, %v776
    %v778 = vpop.f32.mrf.mxu0
    %v779 = vadd.f32 0.0, %v778
    %v780 = vpop.f32.mrf.mxu0
    %v781 = vadd.f32 0.0, %v780
    %v782 = vpop.f32.mrf.mxu0
    %v783 = vadd.f32 0.0, %v782
    %784 = vmatprep.mubr.bf16.mxu0 %v705
    %785 = vmatmul.mubr.bf16.gmra.mxu0 %v239
    %v786 = vpop.f32.mrf.mxu0
    %v787 = vadd.f32 0.0, %v786
    %v788 = vpop.f32.mrf.mxu0
    %v789 = vadd.f32 0.0, %v788
    %v790 = vpop.f32.mrf.mxu0
    %v791 = vadd.f32 0.0, %v790
    %v792 = vpop.f32.mrf.mxu0
    %v793 = vadd.f32 0.0, %v792
    %794 = vmatprep.mubr.bf16.mxu0 %v708
    %795 = vmatmul.mubr.bf16.gmra.mxu0 %v241
    %v796 = vpop.f32.mrf.mxu0
    %v797 = vadd.f32 0.0, %v796
    %v798 = vpop.f32.mrf.mxu0
    %v799 = vadd.f32 0.0, %v798
    %v800 = vpop.f32.mrf.mxu0
    %v801 = vadd.f32 0.0, %v800
    %v802 = vpop.f32.mrf.mxu0
    %v803 = vadd.f32 0.0, %v802
    %804 = vdwg.mxu0
    %805 = vmatprep.subr.bf16.mxu0 %v574
    %806 = vmatpush1.bf16.msra.mxu0 %v573
    %807 = vmatprep.subr.bf16.mxu0 %v567
    %808 = vmatpush1.bf16.msra.mxu0 %v566
    %809 = vmatprep.subr.bf16.mxu0 %v560
    %810 = vmatpush1.bf16.msra.mxu0 %v559
    %811 = vmatprep.subr.bf16.mxu0 %v553
    %812 = vmatpush1.bf16.msra.mxu0 %v552
    %813 = vmatprep.subr.bf16.mxu0 %v546
    %814 = vmatpush1.bf16.msra.mxu0 %v545
    %815 = vmatprep.subr.bf16.mxu0 %v539
    %816 = vmatpush1.bf16.msra.mxu0 %v538
    %817 = vmatprep.subr.bf16.mxu0 %v532
    %818 = vmatpush1.bf16.msra.mxu0 %v531
    %819 = vmatprep.subr.bf16.mxu0 %v525
    %820 = vmatpush1.bf16.msra.mxu0 %v524
    %821 = vmatprep.subr.bf16.mxu0 0
    %822 = vmatpush2.bf16.msra.mxu0 0
    %823 = vmatprep.subr.bf16.mxu0 0
    %824 = vmatpush2.bf16.msra.mxu0 0
    %825 = vmatprep.subr.bf16.mxu0 0
    %826 = vmatpush2.bf16.msra.mxu0 0
    %827 = vmatprep.subr.bf16.mxu0 %v721
    %828 = vmatpush2.bf16.msra.mxu0 %v718
    %829 = vmatprep.subr.bf16.mxu0 %v602
    %830 = vmatpush2.bf16.msra.mxu0 %v601
    %831 = vmatprep.subr.bf16.mxu0 %v595
    %832 = vmatpush2.bf16.msra.mxu0 %v594
    %833 = vmatprep.subr.bf16.mxu0 %v588
    %834 = vmatpush2.bf16.msra.mxu0 %v587
    %835 = vmatprep.subr.bf16.mxu0 %v581
    %836 = vmatpush2.bf16.msra.mxu0 %v580
    %837 = vmatprep.mubr.bf16.mxu0 %v699
    %838 = vmatmul.mubr.bf16.gmra.mxu0 %v235
    %v839 = vpop.f32.mrf.mxu0
    %v840 = vadd.f32 0.0, %v839
    %v841 = vpop.f32.mrf.mxu0
    %v842 = vadd.f32 0.0, %v841
    %v843 = vpop.f32.mrf.mxu0
    %v844 = vadd.f32 0.0, %v843
    %v845 = vpop.f32.mrf.mxu0
    %v846 = vadd.f32 0.0, %v845
    %847 = vmatprep.mubr.bf16.mxu0 %v702
    %848 = vmatmul.mubr.bf16.gmra.mxu0 %v237
    %v849 = vpop.f32.mrf.mxu0
    %v850 = vadd.f32 0.0, %v849
    %v851 = vpop.f32.mrf.mxu0
    %v852 = vadd.f32 0.0, %v851
    %v853 = vpop.f32.mrf.mxu0
    %v854 = vadd.f32 0.0, %v853
    %v855 = vpop.f32.mrf.mxu0
    %v856 = vadd.f32 0.0, %v855
    %857 = vmatprep.mubr.bf16.mxu0 %v705
    %858 = vmatmul.mubr.bf16.gmra.mxu0 %v239
    %v859 = vpop.f32.mrf.mxu0
    %v860 = vadd.f32 0.0, %v859
    %v861 = vpop.f32.mrf.mxu0
    %v862 = vadd.f32 0.0, %v861
    %v863 = vpop.f32.mrf.mxu0
    %v864 = vadd.f32 0.0, %v863
    %v865 = vpop.f32.mrf.mxu0
    %v866 = vadd.f32 0.0, %v865
    %867 = vmatprep.mubr.bf16.mxu0 %v708
    %868 = vmatmul.mubr.bf16.gmra.mxu0 %v241
    %v869 = vpop.f32.mrf.mxu0
    %v870 = vadd.f32 0.0, %v869
    %v871 = vpop.f32.mrf.mxu0
    %v872 = vadd.f32 0.0, %v871
    %v873 = vpop.f32.mrf.mxu0
    %v874 = vadd.f32 0.0, %v873
    %v875 = vpop.f32.mrf.mxu0
    %v876 = vadd.f32 0.0, %v875
    %877 = vdwg.mxu0
    %878 = vmatprep.subr.bf16.mxu0 %v576
    %879 = vmatpush1.bf16.msra.mxu0 %v575
    %880 = vmatprep.subr.bf16.mxu0 %v569
    %881 = vmatpush1.bf16.msra.mxu0 %v568
    %882 = vmatprep.subr.bf16.mxu0 %v562
    %883 = vmatpush1.bf16.msra.mxu0 %v561
    %884 = vmatprep.subr.bf16.mxu0 %v555
    %885 = vmatpush1.bf16.msra.mxu0 %v554
    %886 = vmatprep.subr.bf16.mxu0 %v548
    %887 = vmatpush1.bf16.msra.mxu0 %v547
    %888 = vmatprep.subr.bf16.mxu0 %v541
    %889 = vmatpush1.bf16.msra.mxu0 %v540
    %890 = vmatprep.subr.bf16.mxu0 %v534
    %891 = vmatpush1.bf16.msra.mxu0 %v533
    %892 = vmatprep.subr.bf16.mxu0 %v527
    %893 = vmatpush1.bf16.msra.mxu0 %v526
    %894 = vmatprep.subr.bf16.mxu0 0
    %895 = vmatpush2.bf16.msra.mxu0 0
    %896 = vmatprep.subr.bf16.mxu0 0
    %897 = vmatpush2.bf16.msra.mxu0 0
    %898 = vmatprep.subr.bf16.mxu0 0
    %899 = vmatpush2.bf16.msra.mxu0 0
    %900 = vmatprep.subr.bf16.mxu0 %v727
    %901 = vmatpush2.bf16.msra.mxu0 %v724
    %902 = vmatprep.subr.bf16.mxu0 %v604
    %903 = vmatpush2.bf16.msra.mxu0 %v603
    %904 = vmatprep.subr.bf16.mxu0 %v597
    %905 = vmatpush2.bf16.msra.mxu0 %v596
    %906 = vmatprep.subr.bf16.mxu0 %v590
    %907 = vmatpush2.bf16.msra.mxu0 %v589
    %908 = vmatprep.subr.bf16.mxu0 %v583
    %909 = vmatpush2.bf16.msra.mxu0 %v582
    %910 = vmatprep.mubr.bf16.mxu0 %v699
    %911 = vmatmul.mubr.bf16.gmra.mxu0 %v235
    %v912 = vpop.f32.mrf.mxu0
    %v913 = vadd.f32 0.0, %v912
    %v914 = vpop.f32.mrf.mxu0
    %v915 = vadd.f32 0.0, %v914
    %v916 = vpop.f32.mrf.mxu0
    %v917 = vadd.f32 0.0, %v916
    %v918 = vpop.f32.mrf.mxu0
    %v919 = vadd.f32 0.0, %v918
    %920 = vmatprep.mubr.bf16.mxu0 %v702
    %921 = vmatmul.mubr.bf16.gmra.mxu0 %v237
    %v922 = vpop.f32.mrf.mxu0
    %v923 = vadd.f32 0.0, %v922
    %v924 = vpop.f32.mrf.mxu0
    %v925 = vadd.f32 0.0, %v924
    %v926 = vpop.f32.mrf.mxu0
    %v927 = vadd.f32 0.0, %v926
    %v928 = vpop.f32.mrf.mxu0
    %v929 = vadd.f32 0.0, %v928
    %930 = vmatprep.mubr.bf16.mxu0 %v705
    %931 = vmatmul.mubr.bf16.gmra.mxu0 %v239
    %v932 = vpop.f32.mrf.mxu0
    %v933 = vadd.f32 0.0, %v932
    %v934 = vpop.f32.mrf.mxu0
    %v935 = vadd.f32 0.0, %v934
    %v936 = vpop.f32.mrf.mxu0
    %v937 = vadd.f32 0.0, %v936
    %v938 = vpop.f32.mrf.mxu0
    %v939 = vadd.f32 0.0, %v938
    %940 = vmatprep.mubr.bf16.mxu0 %v708
    %941 = vmatmul.mubr.bf16.gmra.mxu0 %v241
    %v942 = vpop.f32.mrf.mxu0
    %v943 = vadd.f32 0.0, %v942
    %v944 = vpop.f32.mrf.mxu0
    %v945 = vadd.f32 0.0, %v944
    %v946 = vpop.f32.mrf.mxu0
    %v947 = vadd.f32 0.0, %v946
    %v948 = vpop.f32.mrf.mxu0
    %v949 = vadd.f32 0.0, %v948
    %950 = vdwg.mxu0
    %951 = vmatprep.subr.bf16.mxu0 0
    %952 = vmatpush1.bf16.msra.mxu0 %v577
    %953 = vmatprep.subr.bf16.mxu0 0
    %954 = vmatpush1.bf16.msra.mxu0 %v570
    %955 = vmatprep.subr.bf16.mxu0 0
    %956 = vmatpush1.bf16.msra.mxu0 %v563
    %957 = vmatprep.subr.bf16.mxu0 0
    %958 = vmatpush1.bf16.msra.mxu0 %v556
    %959 = vmatprep.subr.bf16.mxu0 0
    %960 = vmatpush1.bf16.msra.mxu0 %v549
    %961 = vmatprep.subr.bf16.mxu0 0
    %962 = vmatpush1.bf16.msra.mxu0 %v542
    %963 = vmatprep.subr.bf16.mxu0 0
    %964 = vmatpush1.bf16.msra.mxu0 %v535
    %965 = vmatprep.subr.bf16.mxu0 0
    %966 = vmatpush1.bf16.msra.mxu0 %v528
    %967 = vmatprep.subr.bf16.mxu0 0
    %968 = vmatpush2.bf16.msra.mxu0 0
    %969 = vmatprep.subr.bf16.mxu0 0
    %970 = vmatpush2.bf16.msra.mxu0 0
    %971 = vmatprep.subr.bf16.mxu0 0
    %972 = vmatpush2.bf16.msra.mxu0 0
    %973 = vmatprep.subr.bf16.mxu0 0
    %974 = vmatpush2.bf16.msra.mxu0 %v730
    %975 = vmatprep.subr.bf16.mxu0 0
    %976 = vmatpush2.bf16.msra.mxu0 %v605
    %977 = vmatprep.subr.bf16.mxu0 0
    %978 = vmatpush2.bf16.msra.mxu0 %v598
    %979 = vmatprep.subr.bf16.mxu0 0
    %980 = vmatpush2.bf16.msra.mxu0 %v591
    %981 = vmatprep.subr.bf16.mxu0 0
    %982 = vmatpush2.bf16.msra.mxu0 %v584
    %983 = vmatprep.mubr.bf16.mxu0 %v699
    %984 = vmatmul.mubr.bf16.gmra.mxu0 %v235
    %v985 = vpop.f32.mrf.mxu0
    %v986 = vadd.f32 0.0, %v985
    %v987 = vpop.f32.mrf.mxu0
    %v988 = vpop.f32.mrf.mxu0
    %v989 = vadd.f32 0.0, %v988
    %v990 = vpop.f32.mrf.mxu0
    %991 = vmatprep.mubr.bf16.mxu0 %v702
    %992 = vmatmul.mubr.bf16.gmra.mxu0 %v237
    %v993 = vpop.f32.mrf.mxu0
    %v994 = vadd.f32 0.0, %v993
    %v995 = vpop.f32.mrf.mxu0
    %v996 = vpop.f32.mrf.mxu0
    %v997 = vadd.f32 0.0, %v996
    %v998 = vpop.f32.mrf.mxu0
    %999 = vmatprep.mubr.bf16.mxu0 %v705
    %1000 = vmatmul.mubr.bf16.gmra.mxu0 %v239
    %v1001 = vpop.f32.mrf.mxu0
    %v1002 = vadd.f32 0.0, %v1001
    %v1003 = vpop.f32.mrf.mxu0
    %v1004 = vpop.f32.mrf.mxu0
    %v1005 = vadd.f32 0.0, %v1004
    %v1006 = vpop.f32.mrf.mxu0
    %1007 = vmatprep.mubr.bf16.mxu0 %v708
    %1008 = vmatmul.mubr.bf16.gmra.mxu0 %v241
    %v1009 = vpop.f32.mrf.mxu0
    %v1010 = vadd.f32 0.0, %v1009
    %v1011 = vpop.f32.mrf.mxu0
    %v1012 = vpop.f32.mrf.mxu0
    %v1013 = vadd.f32 0.0, %v1012
    %v1014 = vpop.f32.mrf.mxu0
    %1015 = vdwg.mxu0
    %v1016 = vmax.f32 %v767, %v777
    %v1017 = vmax.f32 %v769, %v779
    %v1018 = vmax.f32 %v840, %v850
    %v1019 = vmax.f32 %v842, %v852
    %v1020 = vmax.f32 %v913, %v923
    %v1021 = vmax.f32 %v915, %v925
    %v1022 = vmax.f32 %v986, %v994
    %v1023 = vmax.f32 %v771, %v781
    %v1024 = vmax.f32 %v773, %v783
    %v1025 = vmax.f32 %v844, %v854
    %v1026 = vmax.f32 %v846, %v856
    %v1027 = vmax.f32 %v917, %v927
    %v1028 = vmax.f32 %v919, %v929
    %v1029 = vmax.f32 %v989, %v997
    %v1030 = vmax.f32 %v1016, %v787
    %v1031 = vmax.f32 %v1017, %v789
    %v1032 = vmax.f32 %v1018, %v860
    %v1033 = vmax.f32 %v1019, %v862
    %v1034 = vmax.f32 %v1020, %v933
    %v1035 = vmax.f32 %v1021, %v935
    %v1036 = vmax.f32 %v1022, %v1002
    %v1037 = vmax.f32 %v1023, %v791
    %v1038 = vmax.f32 %v1024, %v793
    %v1039 = vmax.f32 %v1025, %v864
    %v1040 = vmax.f32 %v1026, %v866
    %v1041 = vmax.f32 %v1027, %v937
    %v1042 = vmax.f32 %v1028, %v939
    %v1043 = vmax.f32 %v1029, %v1005
    %v1044 = vmax.f32 %v1030, %v797
    %v1045 = vmax.f32 %v1031, %v799
    %v1046 = vmax.f32 %v1032, %v870
    %v1047 = vmax.f32 %v1033, %v872
    %v1048 = vmax.f32 %v1034, %v943
    %v1049 = vmax.f32 %v1035, %v945
    %v1050 = vmax.f32 %v1036, %v1010
    %v1051 = vmax.f32 %v1037, %v801
    %v1052 = vmax.f32 %v1038, %v803
    %v1053 = vmax.f32 %v1039, %v874
    %v1054 = vmax.f32 %v1040, %v876
    %v1055 = vmax.f32 %v1041, %v947
    %v1056 = vmax.f32 %v1042, %v949
    %v1057 = vmax.f32 %v1043, %v1013
    %v1058 = vld [vmem:[#allocation4] sm:$0x7f]
    %v1060 = vlaneseq
    %v1061 = vshrl.u32 %v1060, 7
    %v1062 = vsub.s32 0, %v1061
    %v1063 = vrot.slane %v1058, %v1062
    %v1064 = vlaneseq
    %v1065 = vshrl.u32 %v1064, 7
    %v1066 = vsub.s32 1, %v1065
    %v1067 = vrot.slane %v1058, %v1066
    %v1068 = vlaneseq
    %v1069 = vshrl.u32 %v1068, 7
    %v1070 = vsub.s32 2, %v1069
    %v1071 = vrot.slane %v1058, %v1070
    %v1072 = vlaneseq
    %v1073 = vshrl.u32 %v1072, 7
    %v1074 = vsub.s32 3, %v1073
    %v1075 = vrot.slane %v1058, %v1074
    %v1076 = vlaneseq
    %v1077 = vshrl.u32 %v1076, 7
    %v1078 = vsub.s32 4, %v1077
    %v1079 = vrot.slane %v1058, %v1078
    %v1080 = vlaneseq
    %v1081 = vshrl.u32 %v1080, 7
    %v1082 = vsub.s32 5, %v1081
    %v1083 = vrot.slane %v1058, %v1082
    %v1084 = vlaneseq
    %v1085 = vshrl.u32 %v1084, 7
    %v1086 = vsub.s32 6, %v1085
    %v1087 = vrot.slane %v1058, %v1086
    %v1095 = vadd.f32 %v1044, %v1063
    %v1096 = vadd.f32 %v1045, %v1067
    %v1097 = vadd.f32 %v1046, %v1071
    %v1098 = vadd.f32 %v1047, %v1075
    %v1099 = vadd.f32 %v1048, %v1079
    %v1100 = vadd.f32 %v1049, %v1083
    %v1101 = vadd.f32 %v1050, %v1087
    %v1102 = vadd.f32 %v1051, %v1063
    %v1103 = vadd.f32 %v1052, %v1067
    %v1104 = vadd.f32 %v1053, %v1071
    %v1105 = vadd.f32 %v1054, %v1075
    %v1106 = vadd.f32 %v1055, %v1079
    %v1107 = vadd.f32 %v1056, %v1083
    %v1108 = vadd.f32 %v1057, %v1087
    %v1109 = vmax.f32 %v1095, 0.0
    %v1110 = vmax.f32 %v1096, 0.0
    %v1111 = vmax.f32 %v1097, 0.0
    %v1112 = vmax.f32 %v1098, 0.0
    %v1113 = vmax.f32 %v1099, 0.0
    %v1114 = vmax.f32 %v1100, 0.0
    %v1115 = vmax.f32 %v1101, 0.0
    %v1116 = vmax.f32 %v1102, 0.0
    %v1117 = vmax.f32 %v1103, 0.0
    %v1118 = vmax.f32 %v1104, 0.0
    %v1119 = vmax.f32 %v1105, 0.0
    %v1120 = vmax.f32 %v1106, 0.0
    %v1121 = vmax.f32 %v1107, 0.0
    %v1122 = vmax.f32 %v1108, 0.0
    %v1123 = vpack.c.bf16 %v1116, %v1109
    %v1124 = vpack.c.bf16 %v1117, %v1110
    %v1125 = vpack.c.bf16 %v1118, %v1111
    %v1126 = vpack.c.bf16 %v1119, %v1112
    %v1127 = vpack.c.bf16 %v1120, %v1113
    %v1128 = vpack.c.bf16 %v1121, %v1114
    %v1129 = vpack.c.bf16 %v1122, %v1115
    %v1130 = vld [vmem:[#allocation6] sm:$0xff]
    %v1131 = vld [vmem:[#allocation6 + $0x8] sm:$0xff]
    %v1132 = vld [vmem:[#allocation6 + $0x10] sm:$0xff]
    %v1133 = vld [vmem:[#allocation6 + $0x18] sm:$0xff]
    %v1134 = vld [vmem:[#allocation6 + $0x20] sm:$0xff]
    %v1135 = vld [vmem:[#allocation6 + $0x28] sm:$0xff]
    %v1136 = vld [vmem:[#allocation6 + $0x30] sm:$0xff]
    %v1137 = vld [vmem:[#allocation6 + $0x38] sm:$0xff]
    %v1138 = vld [vmem:[#allocation6 + $0x40] sm:$0xff]
    %v1139 = vld [vmem:[#allocation6 + $0x48] sm:$0xff]
    %v1140 = vld [vmem:[#allocation6 + $0x50] sm:$0xff]
    %v1141 = vld [vmem:[#allocation6 + $0x58] sm:$0xff]
    %v1142 = vld [vmem:[#allocation6 + $0x60] sm:$0xff]
    %v1143 = vld [vmem:[#allocation6 + $0x68] sm:$0xff]
    %v1144 = vld [vmem:[#allocation6 + $0x70] sm:$0xff]
    %v1145 = vld [vmem:[#allocation6 + $0x78] sm:$0xff]
    %v1146 = vld [vmem:[#allocation6 + $0x80] sm:$0xff]
    %v1147 = vld [vmem:[#allocation6 + $0x88] sm:$0xff]
    %v1148 = vld [vmem:[#allocation6 + $0x90] sm:$0xff]
    %v1149 = vld [vmem:[#allocation6 + $0x98] sm:$0xff]
    %v1150 = vld [vmem:[#allocation6 + $0xa0] sm:$0xff]
    %v1151 = vld [vmem:[#allocation6 + $0xa8] sm:$0xff]
    %v1152 = vld [vmem:[#allocation6 + $0xb0] sm:$0xff]
    %v1153 = vld [vmem:[#allocation6 + $0xb8] sm:$0xff]
    %v1154 = vld [vmem:[#allocation6 + $0xc0] sm:$0xff]
    %v1155 = vld [vmem:[#allocation6 + $0xc8] sm:$0xff]
    %v1156 = vld [vmem:[#allocation6 + $0xd0] sm:$0xff]
    %v1157 = vld [vmem:[#allocation6 + $0xd8] sm:$0xff]
    %v1158 = vld [vmem:[#allocation6 + $0xe0] sm:$0xff]
    %v1159 = vld [vmem:[#allocation6 + $0xe8] sm:$0xff]
    %v1160 = vld [vmem:[#allocation6 + $0xf0] sm:$0xff]
    %v1161 = vld [vmem:[#allocation6 + $0xf8] sm:$0xff]
    %v1162 = vld [vmem:[#allocation6 + $0x100] sm:$0xff]
    %v1163 = vld [vmem:[#allocation6 + $0x108] sm:$0xff]
    %v1164 = vld [vmem:[#allocation6 + $0x110] sm:$0xff]
    %v1165 = vld [vmem:[#allocation6 + $0x118] sm:$0xff]
    %v1166 = vld [vmem:[#allocation6 + $0x120] sm:$0xff]
    %v1167 = vld [vmem:[#allocation6 + $0x128] sm:$0xff]
    %v1168 = vld [vmem:[#allocation6 + $0x130] sm:$0xff]
    %v1169 = vld [vmem:[#allocation6 + $0x138] sm:$0xff]
    %v1170 = vld [vmem:[#allocation6 + $0x140] sm:$0xff]
    %v1171 = vld [vmem:[#allocation6 + $0x148] sm:$0xff]
    %v1172 = vld [vmem:[#allocation6 + $0x150] sm:$0xff]
    %v1173 = vld [vmem:[#allocation6 + $0x158] sm:$0xff]
    %v1174 = vld [vmem:[#allocation6 + $0x160] sm:$0xff]
    %v1175 = vld [vmem:[#allocation6 + $0x168] sm:$0xff]
    %v1176 = vld [vmem:[#allocation6 + $0x170] sm:$0xff]
    %v1177 = vld [vmem:[#allocation6 + $0x178] sm:$0xff]
    %v1178 = vld [vmem:[#allocation6 + $0x180] sm:$0xff]
    %v1179 = vld [vmem:[#allocation6 + $0x188] sm:$0xff]
    %v1180 = vld [vmem:[#allocation6 + $0x190] sm:$0xff]
    %v1181 = vld [vmem:[#allocation6 + $0x198] sm:$0xff]
    %v1182 = vld [vmem:[#allocation6 + $0x1a0] sm:$0xff]
    %v1183 = vld [vmem:[#allocation6 + $0x1a8] sm:$0xff]
    %v1184 = vld [vmem:[#allocation6 + $0x1b0] sm:$0xff]
    %v1185 = vld [vmem:[#allocation6 + $0x1b8] sm:$0xff]
    %v1186 = vld [vmem:[#allocation6 + $0x1c0] sm:$0xff]
    %v1187 = vld [vmem:[#allocation6 + $0x1c8] sm:$0xff]
    %v1188 = vld [vmem:[#allocation6 + $0x1d0] sm:$0xff]
    %v1189 = vld [vmem:[#allocation6 + $0x1d8] sm:$0xff]
    %v1190 = vld [vmem:[#allocation6 + $0x1e0] sm:$0xff]
    %v1191 = vld [vmem:[#allocation6 + $0x1e8] sm:$0xff]
    %v1192 = vld [vmem:[#allocation6 + $0x1f0] sm:$0xff]
    %v1193 = vld [vmem:[#allocation6 + $0x1f8] sm:$0xff]
    %v1194 = vld [vmem:[#allocation6 + $0x200] sm:$0xff]
    %v1195 = vld [vmem:[#allocation6 + $0x208] sm:$0xff]
    %v1196 = vld [vmem:[#allocation6 + $0x210] sm:$0xff]
    %v1197 = vld [vmem:[#allocation6 + $0x218] sm:$0xff]
    %v1198 = vld [vmem:[#allocation6 + $0x220] sm:$0xff]
    %v1199 = vld [vmem:[#allocation6 + $0x228] sm:$0xff]
    %v1200 = vld [vmem:[#allocation6 + $0x230] sm:$0xff]
    %v1201 = vld [vmem:[#allocation6 + $0x238] sm:$0xff]
    %v1202 = vld [vmem:[#allocation6 + $0x240] sm:$0xff]
    %v1203 = vld [vmem:[#allocation6 + $0x248] sm:$0xff]
    %v1204 = vld [vmem:[#allocation6 + $0x250] sm:$0xff]
    %v1205 = vld [vmem:[#allocation6 + $0x258] sm:$0xff]
    %v1206 = vld [vmem:[#allocation6 + $0x260] sm:$0xff]
    %v1207 = vld [vmem:[#allocation6 + $0x268] sm:$0xff]
    %v1208 = vld [vmem:[#allocation6 + $0x270] sm:$0xff]
    %v1209 = vld [vmem:[#allocation6 + $0x278] sm:$0xff]
    %v1210 = vld [vmem:[#allocation6 + $0x280] sm:$0xff]
    %v1211 = vld [vmem:[#allocation6 + $0x288] sm:$0xff]
    %v1212 = vld [vmem:[#allocation6 + $0x290] sm:$0xff]
    %v1213 = vld [vmem:[#allocation6 + $0x298] sm:$0xff]
    %v1214 = vld [vmem:[#allocation6 + $0x2a0] sm:$0xff]
    %v1215 = vld [vmem:[#allocation6 + $0x2a8] sm:$0xff]
    %v1216 = vld [vmem:[#allocation6 + $0x2b0] sm:$0xff]
    %v1217 = vld [vmem:[#allocation6 + $0x2b8] sm:$0xff]
    %v1218 = vld [vmem:[#allocation6 + $0x2c0] sm:$0xff]
    %v1219 = vld [vmem:[#allocation6 + $0x2c8] sm:$0xff]
    %v1220 = vld [vmem:[#allocation6 + $0x2d0] sm:$0xff]
    %v1221 = vld [vmem:[#allocation6 + $0x2d8] sm:$0xff]
    %v1222 = vld [vmem:[#allocation6 + $0x2e0] sm:$0xff]
    %v1223 = vld [vmem:[#allocation6 + $0x2e8] sm:$0xff]
    %v1224 = vld [vmem:[#allocation6 + $0x2f0] sm:$0xff]
    %v1225 = vld [vmem:[#allocation6 + $0x2f8] sm:$0xff]
    %v1226 = vld [vmem:[#allocation6 + $0x300] sm:$0xff]
    %v1227 = vld [vmem:[#allocation6 + $0x308] sm:$0xff]
    %v1228 = vld [vmem:[#allocation6 + $0x310] sm:$0xff]
    %v1229 = vld [vmem:[#allocation6 + $0x318] sm:$0xff]
    %v1230 = vld [vmem:[#allocation6 + $0x320] sm:$0xff]
    %v1231 = vld [vmem:[#allocation6 + $0x328] sm:$0xff]
    %v1232 = vld [vmem:[#allocation6 + $0x330] sm:$0xff]
    %v1233 = vld [vmem:[#allocation6 + $0x338] sm:$0xff]
    %v1234 = vld [vmem:[#allocation6 + $0x340] sm:$0xff]
    %v1235 = vld [vmem:[#allocation6 + $0x348] sm:$0xff]
    %v1236 = vld [vmem:[#allocation6 + $0x350] sm:$0xff]
    %v1237 = vld [vmem:[#allocation6 + $0x358] sm:$0xff]
    %v1238 = vld [vmem:[#allocation6 + $0x360] sm:$0xff]
    %v1239 = vld [vmem:[#allocation6 + $0x368] sm:$0xff]
    %v1240 = vld [vmem:[#allocation6 + $0x370] sm:$0xff]
    %v1241 = vld [vmem:[#allocation6 + $0x378] sm:$0xff]
    %v1242 = vld [vmem:[#allocation6 + $0x380] sm:$0xff]
    %v1243 = vld [vmem:[#allocation6 + $0x388] sm:$0xff]
    %v1244 = vld [vmem:[#allocation6 + $0x390] sm:$0xff]
    %v1245 = vld [vmem:[#allocation6 + $0x398] sm:$0xff]
    %v1246 = vld [vmem:[#allocation6 + $0x3a0] sm:$0xff]
    %v1247 = vld [vmem:[#allocation6 + $0x3a8] sm:$0xff]
    %v1248 = vld [vmem:[#allocation6 + $0x3b0] sm:$0xff]
    %v1249 = vld [vmem:[#allocation6 + $0x3b8] sm:$0xff]
    %v1250 = vld [vmem:[#allocation6 + $0x3c0] sm:$0xff]
    %v1251 = vld [vmem:[#allocation6 + $0x3c8] sm:$0xff]
    %v1252 = vld [vmem:[#allocation6 + $0x3d0] sm:$0xff]
    %v1253 = vld [vmem:[#allocation6 + $0x3d8] sm:$0xff]
    %v1254 = vld [vmem:[#allocation6 + $0x3e0] sm:$0xff]
    %v1255 = vld [vmem:[#allocation6 + $0x3e8] sm:$0xff]
    %v1256 = vld [vmem:[#allocation6 + $0x3f0] sm:$0xff]
    %v1257 = vld [vmem:[#allocation6 + $0x3f8] sm:$0xff]
    %v1258 = vld [vmem:[#allocation6 + $0x400] sm:$0xff]
    %v1259 = vld [vmem:[#allocation6 + $0x408] sm:$0xff]
    %v1260 = vld [vmem:[#allocation6 + $0x410] sm:$0xff]
    %v1261 = vld [vmem:[#allocation6 + $0x418] sm:$0xff]
    %v1262 = vld [vmem:[#allocation6 + $0x420] sm:$0xff]
    %v1263 = vld [vmem:[#allocation6 + $0x428] sm:$0xff]
    %v1264 = vld [vmem:[#allocation6 + $0x430] sm:$0xff]
    %v1265 = vld [vmem:[#allocation6 + $0x438] sm:$0xff]
    %v1266 = vld [vmem:[#allocation6 + $0x440] sm:$0xff]
    %v1267 = vld [vmem:[#allocation6 + $0x448] sm:$0xff]
    %v1268 = vld [vmem:[#allocation6 + $0x450] sm:$0xff]
    %v1269 = vld [vmem:[#allocation6 + $0x458] sm:$0xff]
    %v1270 = vld [vmem:[#allocation6 + $0x460] sm:$0xff]
    %v1271 = vld [vmem:[#allocation6 + $0x468] sm:$0xff]
    %v1272 = vld [vmem:[#allocation6 + $0x470] sm:$0xff]
    %v1273 = vld [vmem:[#allocation6 + $0x478] sm:$0xff]
    %v1274 = vld [vmem:[#allocation6 + $0x480] sm:$0xff]
    %v1275 = vld [vmem:[#allocation6 + $0x488] sm:$0xff]
    %v1276 = vld [vmem:[#allocation6 + $0x490] sm:$0xff]
    %v1277 = vld [vmem:[#allocation6 + $0x498] sm:$0xff]
    %v1278 = vld [vmem:[#allocation6 + $0x4a0] sm:$0xff]
    %v1279 = vld [vmem:[#allocation6 + $0x4a8] sm:$0xff]
    %v1280 = vld [vmem:[#allocation6 + $0x4b0] sm:$0xff]
    %v1281 = vld [vmem:[#allocation6 + $0x4b8] sm:$0xff]
    %v1282 = vld [vmem:[#allocation6 + $0x4c0] sm:$0xff]
    %v1283 = vld [vmem:[#allocation6 + $0x4c8] sm:$0xff]
    %v1284 = vld [vmem:[#allocation6 + $0x4d0] sm:$0xff]
    %v1285 = vld [vmem:[#allocation6 + $0x4d8] sm:$0xff]
    %v1286 = vld [vmem:[#allocation6 + $0x4e0] sm:$0xff]
    %v1287 = vld [vmem:[#allocation6 + $0x4e8] sm:$0xff]
    %v1288 = vld [vmem:[#allocation6 + $0x4f0] sm:$0xff]
    %v1289 = vld [vmem:[#allocation6 + $0x4f8] sm:$0xff]
    %v1290 = vld [vmem:[#allocation6 + $0x500] sm:$0xff]
    %v1291 = vld [vmem:[#allocation6 + $0x508] sm:$0xff]
    %v1292 = vld [vmem:[#allocation6 + $0x510] sm:$0xff]
    %v1293 = vld [vmem:[#allocation6 + $0x518] sm:$0xff]
    %v1294 = vld [vmem:[#allocation6 + $0x520] sm:$0xff]
    %v1295 = vld [vmem:[#allocation6 + $0x528] sm:$0xff]
    %v1296 = vld [vmem:[#allocation6 + $0x530] sm:$0xff]
    %v1297 = vld [vmem:[#allocation6 + $0x538] sm:$0xff]
    %v1298 = vld [vmem:[#allocation6 + $0x540] sm:$0xff]
    %v1299 = vld [vmem:[#allocation6 + $0x548] sm:$0xff]
    %v1300 = vld [vmem:[#allocation6 + $0x550] sm:$0xff]
    %v1301 = vld [vmem:[#allocation6 + $0x558] sm:$0xff]
    %v1302 = vld [vmem:[#allocation6 + $0x560] sm:$0xff]
    %v1303 = vld [vmem:[#allocation6 + $0x568] sm:$0xff]
    %v1304 = vld [vmem:[#allocation6 + $0x570] sm:$0xff]
    %v1305 = vld [vmem:[#allocation6 + $0x578] sm:$0xff]
    %v1306 = vld [vmem:[#allocation6 + $0x580] sm:$0xff]
    %v1307 = vld [vmem:[#allocation6 + $0x588] sm:$0xff]
    %v1308 = vld [vmem:[#allocation6 + $0x590] sm:$0xff]
    %v1309 = vld [vmem:[#allocation6 + $0x598] sm:$0xff]
    %v1310 = vld [vmem:[#allocation6 + $0x5a0] sm:$0xff]
    %v1311 = vld [vmem:[#allocation6 + $0x5a8] sm:$0xff]
    %v1312 = vld [vmem:[#allocation6 + $0x5b0] sm:$0xff]
    %v1313 = vld [vmem:[#allocation6 + $0x5b8] sm:$0xff]
    %v1314 = vld [vmem:[#allocation6 + $0x5c0] sm:$0xff]
    %v1315 = vld [vmem:[#allocation6 + $0x5c8] sm:$0xff]
    %v1316 = vld [vmem:[#allocation6 + $0x5d0] sm:$0xff]
    %v1317 = vld [vmem:[#allocation6 + $0x5d8] sm:$0xff]
    %v1318 = vld [vmem:[#allocation6 + $0x5e0] sm:$0xff]
    %v1319 = vld [vmem:[#allocation6 + $0x5e8] sm:$0xff]
    %v1320 = vld [vmem:[#allocation6 + $0x5f0] sm:$0xff]
    %v1321 = vld [vmem:[#allocation6 + $0x5f8] sm:$0xff]
    %v1322 = vld [vmem:[#allocation6 + $0x600] sm:$0xff]
    %v1323 = vld [vmem:[#allocation6 + $0x608] sm:$0xff]
    %v1324 = vld [vmem:[#allocation6 + $0x610] sm:$0xff]
    %v1325 = vld [vmem:[#allocation6 + $0x618] sm:$0xff]
    %v1326 = vld [vmem:[#allocation6 + $0x620] sm:$0xff]
    %v1327 = vld [vmem:[#allocation6 + $0x628] sm:$0xff]
    %v1328 = vld [vmem:[#allocation6 + $0x630] sm:$0xff]
    %v1329 = vld [vmem:[#allocation6 + $0x638] sm:$0xff]
    %v1330 = vld [vmem:[#allocation6 + $0x640] sm:$0xff]
    %v1331 = vld [vmem:[#allocation6 + $0x648] sm:$0xff]
    %v1332 = vld [vmem:[#allocation6 + $0x650] sm:$0xff]
    %v1333 = vld [vmem:[#allocation6 + $0x658] sm:$0xff]
    %v1334 = vld [vmem:[#allocation6 + $0x660] sm:$0xff]
    %v1335 = vld [vmem:[#allocation6 + $0x668] sm:$0xff]
    %v1336 = vld [vmem:[#allocation6 + $0x670] sm:$0xff]
    %v1337 = vld [vmem:[#allocation6 + $0x678] sm:$0xff]
    %v1338 = vld [vmem:[#allocation6 + $0x680] sm:$0xff]
    %v1339 = vld [vmem:[#allocation6 + $0x688] sm:$0xff]
    %v1340 = vld [vmem:[#allocation6 + $0x690] sm:$0xff]
    %v1341 = vld [vmem:[#allocation6 + $0x698] sm:$0xff]
    %v1342 = vld [vmem:[#allocation6 + $0x6a0] sm:$0xff]
    %v1343 = vld [vmem:[#allocation6 + $0x6a8] sm:$0xff]
    %v1344 = vld [vmem:[#allocation6 + $0x6b0] sm:$0xff]
    %v1345 = vld [vmem:[#allocation6 + $0x6b8] sm:$0xff]
    %v1346 = vld [vmem:[#allocation6 + $0x6c0] sm:$0xff]
    %v1347 = vld [vmem:[#allocation6 + $0x6c8] sm:$0xff]
    %v1348 = vld [vmem:[#allocation6 + $0x6d0] sm:$0xff]
    %v1349 = vld [vmem:[#allocation6 + $0x6d8] sm:$0xff]
    %v1350 = vld [vmem:[#allocation6 + $0x6e0] sm:$0xff]
    %v1351 = vld [vmem:[#allocation6 + $0x6e8] sm:$0xff]
    %v1352 = vld [vmem:[#allocation6 + $0x6f0] sm:$0xff]
    %v1353 = vld [vmem:[#allocation6 + $0x6f8] sm:$0xff]
    %v1354 = vld [vmem:[#allocation6 + $0x700] sm:$0xff]
    %v1355 = vld [vmem:[#allocation6 + $0x708] sm:$0xff]
    %v1356 = vld [vmem:[#allocation6 + $0x710] sm:$0xff]
    %v1357 = vld [vmem:[#allocation6 + $0x718] sm:$0xff]
    %v1358 = vld [vmem:[#allocation6 + $0x720] sm:$0xff]
    %v1359 = vld [vmem:[#allocation6 + $0x728] sm:$0xff]
    %v1360 = vld [vmem:[#allocation6 + $0x730] sm:$0xff]
    %v1361 = vld [vmem:[#allocation6 + $0x738] sm:$0xff]
    %v1362 = vld [vmem:[#allocation6 + $0x740] sm:$0xff]
    %v1363 = vld [vmem:[#allocation6 + $0x748] sm:$0xff]
    %v1364 = vld [vmem:[#allocation6 + $0x750] sm:$0xff]
    %v1365 = vld [vmem:[#allocation6 + $0x758] sm:$0xff]
    %v1366 = vld [vmem:[#allocation6 + $0x760] sm:$0xff]
    %v1367 = vld [vmem:[#allocation6 + $0x768] sm:$0xff]
    %v1368 = vld [vmem:[#allocation6 + $0x770] sm:$0xff]
    %v1369 = vld [vmem:[#allocation6 + $0x778] sm:$0xff]
    %v1370 = vld [vmem:[#allocation6 + $0x780] sm:$0xff]
    %v1371 = vld [vmem:[#allocation6 + $0x788] sm:$0xff]
    %v1372 = vld [vmem:[#allocation6 + $0x790] sm:$0xff]
    %v1373 = vld [vmem:[#allocation6 + $0x798] sm:$0xff]
    %v1374 = vld [vmem:[#allocation6 + $0x7a0] sm:$0xff]
    %v1375 = vld [vmem:[#allocation6 + $0x7a8] sm:$0xff]
    %v1376 = vld [vmem:[#allocation6 + $0x7b0] sm:$0xff]
    %v1377 = vld [vmem:[#allocation6 + $0x7b8] sm:$0xff]
    %v1378 = vld [vmem:[#allocation6 + $0x7c0] sm:$0xff]
    %v1379 = vld [vmem:[#allocation6 + $0x7c8] sm:$0xff]
    %v1380 = vld [vmem:[#allocation6 + $0x7d0] sm:$0xff]
    %v1381 = vld [vmem:[#allocation6 + $0x7d8] sm:$0xff]
    %v1382 = vld [vmem:[#allocation6 + $0x7e0] sm:$0xff]
    %v1383 = vld [vmem:[#allocation6 + $0x7e8] sm:$0xff]
    %v1384 = vld [vmem:[#allocation6 + $0x7f0] sm:$0xff]
    %v1385 = vld [vmem:[#allocation6 + $0x7f8] sm:$0xff]
    %v1386 = vld [vmem:[#allocation6 + $0x800] sm:$0xff]
    %v1387 = vld [vmem:[#allocation6 + $0x808] sm:$0xff]
    %v1388 = vld [vmem:[#allocation6 + $0x810] sm:$0xff]
    %v1389 = vld [vmem:[#allocation6 + $0x818] sm:$0xff]
    %v1390 = vld [vmem:[#allocation6 + $0x820] sm:$0xff]
    %v1391 = vld [vmem:[#allocation6 + $0x828] sm:$0xff]
    %v1392 = vld [vmem:[#allocation6 + $0x830] sm:$0xff]
    %v1393 = vld [vmem:[#allocation6 + $0x838] sm:$0xff]
    %v1394 = vld [vmem:[#allocation6 + $0x840] sm:$0xff]
    %v1395 = vld [vmem:[#allocation6 + $0x848] sm:$0xff]
    %v1396 = vld [vmem:[#allocation6 + $0x850] sm:$0xff]
    %v1397 = vld [vmem:[#allocation6 + $0x858] sm:$0xff]
    %v1398 = vld [vmem:[#allocation6 + $0x860] sm:$0xff]
    %v1399 = vld [vmem:[#allocation6 + $0x868] sm:$0xff]
    %v1400 = vld [vmem:[#allocation6 + $0x870] sm:$0xff]
    %v1401 = vld [vmem:[#allocation6 + $0x878] sm:$0xff]
    %v1402 = vld [vmem:[#allocation6 + $0x880] sm:$0xff]
    %v1403 = vld [vmem:[#allocation6 + $0x888] sm:$0xff]
    %v1404 = vld [vmem:[#allocation6 + $0x890] sm:$0xff]
    %v1405 = vld [vmem:[#allocation6 + $0x898] sm:$0xff]
    %v1406 = vld [vmem:[#allocation6 + $0x8a0] sm:$0xff]
    %v1407 = vld [vmem:[#allocation6 + $0x8a8] sm:$0xff]
    %v1408 = vld [vmem:[#allocation6 + $0x8b0] sm:$0xff]
    %v1409 = vld [vmem:[#allocation6 + $0x8b8] sm:$0xff]
    %v1410 = vld [vmem:[#allocation6 + $0x8c0] sm:$0xff]
    %v1411 = vld [vmem:[#allocation6 + $0x8c8] sm:$0xff]
    %v1412 = vld [vmem:[#allocation6 + $0x8d0] sm:$0xff]
    %v1413 = vld [vmem:[#allocation6 + $0x8d8] sm:$0xff]
    %v1414 = vld [vmem:[#allocation6 + $0x8e0] sm:$0xff]
    %v1415 = vld [vmem:[#allocation6 + $0x8e8] sm:$0xff]
    %v1416 = vld [vmem:[#allocation6 + $0x8f0] sm:$0xff]
    %v1417 = vld [vmem:[#allocation6 + $0x8f8] sm:$0xff]
    %v1418 = vld [vmem:[#allocation6 + $0x900] sm:$0xff]
    %v1419 = vld [vmem:[#allocation6 + $0x908] sm:$0xff]
    %v1420 = vld [vmem:[#allocation6 + $0x910] sm:$0xff]
    %v1421 = vld [vmem:[#allocation6 + $0x918] sm:$0xff]
    %v1422 = vld [vmem:[#allocation6 + $0x920] sm:$0xff]
    %v1423 = vld [vmem:[#allocation6 + $0x928] sm:$0xff]
    %v1424 = vld [vmem:[#allocation6 + $0x930] sm:$0xff]
    %v1425 = vld [vmem:[#allocation6 + $0x938] sm:$0xff]
    %v1426 = vld [vmem:[#allocation6 + $0x940] sm:$0xff]
    %v1427 = vld [vmem:[#allocation6 + $0x948] sm:$0xff]
    %v1428 = vld [vmem:[#allocation6 + $0x950] sm:$0xff]
    %v1429 = vld [vmem:[#allocation6 + $0x958] sm:$0xff]
    %v1430 = vld [vmem:[#allocation6 + $0x960] sm:$0xff]
    %v1431 = vld [vmem:[#allocation6 + $0x968] sm:$0xff]
    %v1432 = vld [vmem:[#allocation6 + $0x970] sm:$0xff]
    %v1433 = vld [vmem:[#allocation6 + $0x978] sm:$0xff]
    %v1434 = vld [vmem:[#allocation6 + $0x980] sm:$0xff]
    %v1435 = vld [vmem:[#allocation6 + $0x988] sm:$0xff]
    %v1436 = vld [vmem:[#allocation6 + $0x990] sm:$0xff]
    %v1437 = vld [vmem:[#allocation6 + $0x998] sm:$0xff]
    %v1438 = vld [vmem:[#allocation6 + $0x9a0] sm:$0xff]
    %v1439 = vld [vmem:[#allocation6 + $0x9a8] sm:$0xff]
    %v1440 = vld [vmem:[#allocation6 + $0x9b0] sm:$0xff]
    %v1441 = vld [vmem:[#allocation6 + $0x9b8] sm:$0xff]
    %v1442 = vld [vmem:[#allocation6 + $0x9c0] sm:$0xff]
    %v1443 = vld [vmem:[#allocation6 + $0x9c8] sm:$0xff]
    %v1444 = vld [vmem:[#allocation6 + $0x9d0] sm:$0xff]
    %v1445 = vld [vmem:[#allocation6 + $0x9d8] sm:$0xff]
    %v1446 = vld [vmem:[#allocation6 + $0x9e0] sm:$0xff]
    %v1447 = vld [vmem:[#allocation6 + $0x9e8] sm:$0xff]
    %v1448 = vld [vmem:[#allocation6 + $0x9f0] sm:$0xff]
    %v1449 = vld [vmem:[#allocation6 + $0x9f8] sm:$0xff]
    %v1450 = vld [vmem:[#allocation6 + $0xa00] sm:$0xff]
    %v1451 = vld [vmem:[#allocation6 + $0xa08] sm:$0xff]
    %v1452 = vld [vmem:[#allocation6 + $0xa10] sm:$0xff]
    %v1453 = vld [vmem:[#allocation6 + $0xa18] sm:$0xff]
    %v1454 = vld [vmem:[#allocation6 + $0xa20] sm:$0xff]
    %v1455 = vld [vmem:[#allocation6 + $0xa28] sm:$0xff]
    %v1456 = vld [vmem:[#allocation6 + $0xa30] sm:$0xff]
    %v1457 = vld [vmem:[#allocation6 + $0xa38] sm:$0xff]
    %v1458 = vld [vmem:[#allocation6 + $0xa40] sm:$0xff]
    %v1459 = vld [vmem:[#allocation6 + $0xa48] sm:$0xff]
    %v1460 = vld [vmem:[#allocation6 + $0xa50] sm:$0xff]
    %v1461 = vld [vmem:[#allocation6 + $0xa58] sm:$0xff]
    %v1462 = vld [vmem:[#allocation6 + $0xa60] sm:$0xff]
    %v1463 = vld [vmem:[#allocation6 + $0xa68] sm:$0xff]
    %v1464 = vld [vmem:[#allocation6 + $0xa70] sm:$0xff]
    %v1465 = vld [vmem:[#allocation6 + $0xa78] sm:$0xff]
    %v1466 = vld [vmem:[#allocation6 + $0xa80] sm:$0xff]
    %v1467 = vld [vmem:[#allocation6 + $0xa88] sm:$0xff]
    %v1468 = vld [vmem:[#allocation6 + $0xa90] sm:$0xff]
    %v1469 = vld [vmem:[#allocation6 + $0xa98] sm:$0xff]
    %v1470 = vld [vmem:[#allocation6 + $0xaa0] sm:$0xff]
    %v1471 = vld [vmem:[#allocation6 + $0xaa8] sm:$0xff]
    %v1472 = vld [vmem:[#allocation6 + $0xab0] sm:$0xff]
    %v1473 = vld [vmem:[#allocation6 + $0xab8] sm:$0xff]
    %v1474 = vld [vmem:[#allocation6 + $0xac0] sm:$0xff]
    %v1475 = vld [vmem:[#allocation6 + $0xac8] sm:$0xff]
    %v1476 = vld [vmem:[#allocation6 + $0xad0] sm:$0xff]
    %v1477 = vld [vmem:[#allocation6 + $0xad8] sm:$0xff]
    %v1478 = vld [vmem:[#allocation6 + $0xae0] sm:$0xff]
    %v1479 = vld [vmem:[#allocation6 + $0xae8] sm:$0xff]
    %v1480 = vld [vmem:[#allocation6 + $0xaf0] sm:$0xff]
    %v1481 = vld [vmem:[#allocation6 + $0xaf8] sm:$0xff]
    %v1482 = vld [vmem:[#allocation6 + $0xb00] sm:$0xff]
    %v1483 = vld [vmem:[#allocation6 + $0xb08] sm:$0xff]
    %v1484 = vld [vmem:[#allocation6 + $0xb10] sm:$0xff]
    %v1485 = vld [vmem:[#allocation6 + $0xb18] sm:$0xff]
    %v1486 = vld [vmem:[#allocation6 + $0xb20] sm:$0xff]
    %v1487 = vld [vmem:[#allocation6 + $0xb28] sm:$0xff]
    %v1488 = vld [vmem:[#allocation6 + $0xb30] sm:$0xff]
    %v1489 = vld [vmem:[#allocation6 + $0xb38] sm:$0xff]
    %v1490 = vld [vmem:[#allocation6 + $0xb40] sm:$0xff]
    %v1491 = vld [vmem:[#allocation6 + $0xb48] sm:$0xff]
    %v1492 = vld [vmem:[#allocation6 + $0xb50] sm:$0xff]
    %v1493 = vld [vmem:[#allocation6 + $0xb58] sm:$0xff]
    %v1494 = vld [vmem:[#allocation6 + $0xb60] sm:$0xff]
    %v1495 = vld [vmem:[#allocation6 + $0xb68] sm:$0xff]
    %v1496 = vld [vmem:[#allocation6 + $0xb70] sm:$0xff]
    %v1497 = vld [vmem:[#allocation6 + $0xb78] sm:$0xff]
    %v1498 = vld [vmem:[#allocation6 + $0xb80] sm:$0xff]
    %v1499 = vld [vmem:[#allocation6 + $0xb88] sm:$0xff]
    %v1500 = vld [vmem:[#allocation6 + $0xb90] sm:$0xff]
    %v1501 = vld [vmem:[#allocation6 + $0xb98] sm:$0xff]
    %v1502 = vld [vmem:[#allocation6 + $0xba0] sm:$0xff]
    %v1503 = vld [vmem:[#allocation6 + $0xba8] sm:$0xff]
    %v1504 = vld [vmem:[#allocation6 + $0xbb0] sm:$0xff]
    %v1505 = vld [vmem:[#allocation6 + $0xbb8] sm:$0xff]
    %v1506 = vld [vmem:[#allocation6 + $0xbc0] sm:$0xff]
    %v1507 = vld [vmem:[#allocation6 + $0xbc8] sm:$0xff]
    %v1508 = vld [vmem:[#allocation6 + $0xbd0] sm:$0xff]
    %v1509 = vld [vmem:[#allocation6 + $0xbd8] sm:$0xff]
    %v1510 = vld [vmem:[#allocation6 + $0xbe0] sm:$0xff]
    %v1511 = vld [vmem:[#allocation6 + $0xbe8] sm:$0xff]
    %v1512 = vld [vmem:[#allocation6 + $0xbf0] sm:$0xff]
    %v1513 = vld [vmem:[#allocation6 + $0xbf8] sm:$0xff]
    %v1514 = vld [vmem:[#allocation6 + $0xc00] sm:$0xff]
    %v1515 = vld [vmem:[#allocation6 + $0xc08] sm:$0xff]
    %v1516 = vld [vmem:[#allocation6 + $0xc10] sm:$0xff]
    %v1517 = vld [vmem:[#allocation6 + $0xc18] sm:$0xff]
    %v1518 = vld [vmem:[#allocation6 + $0xc20] sm:$0xff]
    %v1519 = vld [vmem:[#allocation6 + $0xc28] sm:$0xff]
    %v1520 = vld [vmem:[#allocation6 + $0xc30] sm:$0xff]
    %v1521 = vld [vmem:[#allocation6 + $0xc38] sm:$0xff]
    %v1522 = vld [vmem:[#allocation7] sm:$0xff]
    %v1524 = vlaneseq
    %v1525 = vshrl.u32 %v1524, 7
    %v1526 = vsub.s32 0, %v1525
    %v1527 = vrot.slane %v1522, %v1526
    %v1528 = vlaneseq
    %v1529 = vshrl.u32 %v1528, 7
    %v1530 = vsub.s32 1, %v1529
    %v1531 = vrot.slane %v1522, %v1530
    %v1532 = vlaneseq
    %v1533 = vshrl.u32 %v1532, 7
    %v1534 = vsub.s32 2, %v1533
    %v1535 = vrot.slane %v1522, %v1534
    %v1536 = vlaneseq
    %v1537 = vshrl.u32 %v1536, 7
    %v1538 = vsub.s32 3, %v1537
    %v1539 = vrot.slane %v1522, %v1538
    %v1540 = vlaneseq
    %v1541 = vshrl.u32 %v1540, 7
    %v1542 = vsub.s32 4, %v1541
    %v1543 = vrot.slane %v1522, %v1542
    %v1544 = vlaneseq
    %v1545 = vshrl.u32 %v1544, 7
    %v1546 = vsub.s32 5, %v1545
    %v1547 = vrot.slane %v1522, %v1546
    %v1548 = vlaneseq
    %v1549 = vshrl.u32 %v1548, 7
    %v1550 = vsub.s32 6, %v1549
    %v1551 = vrot.slane %v1522, %v1550
    %v1552 = vlaneseq
    %v1553 = vshrl.u32 %v1552, 7
    %v1554 = vsub.s32 7, %v1553
    %v1555 = vrot.slane %v1522, %v1554
    %v1956 = vunpack.c.l.b16 %v1130
    %v1957 = vunpack.c.h.b16 %v1130
    %v1958 = vunpack.c.l.b16 %v1131
    %v1959 = vunpack.c.h.b16 %v1131
    %v1960 = vunpack.c.l.b16 %v1132
    %v1961 = vunpack.c.h.b16 %v1132
    %v1962 = vunpack.c.l.b16 %v1133
    %v1963 = vunpack.c.h.b16 %v1133
    %v1964 = vunpack.c.l.b16 %v1134
    %v1965 = vunpack.c.h.b16 %v1134
    %v1966 = vunpack.c.l.b16 %v1135
    %v1967 = vunpack.c.h.b16 %v1135
    %v1968 = vunpack.c.l.b16 %v1136
    %v1969 = vunpack.c.h.b16 %v1136
    %v1970 = vunpack.c.l.b16 %v1137
    %v1971 = vunpack.c.h.b16 %v1137
    %v1972 = vunpack.c.l.b16 %v1138
    %v1973 = vunpack.c.h.b16 %v1138
    %v1974 = vunpack.c.l.b16 %v1139
    %v1975 = vunpack.c.h.b16 %v1139
    %v1976 = vunpack.c.l.b16 %v1140
    %v1977 = vunpack.c.h.b16 %v1140
    %v1978 = vunpack.c.l.b16 %v1141
    %v1979 = vunpack.c.h.b16 %v1141
    %v1980 = vunpack.c.l.b16 %v1142
    %v1981 = vunpack.c.h.b16 %v1142
    %v1982 = vunpack.c.l.b16 %v1143
    %v1983 = vunpack.c.h.b16 %v1143
    %v1984 = vunpack.c.l.b16 %v1144
    %v1985 = vunpack.c.h.b16 %v1144
    %v1986 = vunpack.c.l.b16 %v1145
    %v1987 = vunpack.c.h.b16 %v1145
    %v1988 = vunpack.c.l.b16 %v1146
    %v1989 = vunpack.c.h.b16 %v1146
    %v1990 = vunpack.c.l.b16 %v1147
    %v1991 = vunpack.c.h.b16 %v1147
    %v1992 = vunpack.c.l.b16 %v1148
    %v1993 = vunpack.c.h.b16 %v1148
    %v1994 = vunpack.c.l.b16 %v1149
    %v1995 = vunpack.c.h.b16 %v1149
    %v1996 = vunpack.c.l.b16 %v1150
    %v1997 = vunpack.c.h.b16 %v1150
    %v1998 = vunpack.c.l.b16 %v1151
    %v1999 = vunpack.c.h.b16 %v1151
    %v2000 = vunpack.c.l.b16 %v1152
    %v2001 = vunpack.c.h.b16 %v1152
    %v2002 = vunpack.c.l.b16 %v1153
    %v2003 = vunpack.c.h.b16 %v1153
    %v2004 = vunpack.c.l.b16 %v1154
    %v2005 = vunpack.c.h.b16 %v1154
    %v2006 = vunpack.c.l.b16 %v1155
    %v2007 = vunpack.c.h.b16 %v1155
    %v2008 = vunpack.c.l.b16 %v1156
    %v2009 = vunpack.c.h.b16 %v1156
    %v2010 = vunpack.c.l.b16 %v1157
    %v2011 = vunpack.c.h.b16 %v1157
    %v2012 = vunpack.c.l.b16 %v1158
    %v2013 = vunpack.c.h.b16 %v1158
    %v2014 = vunpack.c.l.b16 %v1159
    %v2015 = vunpack.c.h.b16 %v1159
    %v2016 = vunpack.c.l.b16 %v1160
    %v2017 = vunpack.c.h.b16 %v1160
    %v2018 = vunpack.c.l.b16 %v1161
    %v2019 = vunpack.c.h.b16 %v1161
    %v2020 = vunpack.c.l.b16 %v1162
    %v2021 = vunpack.c.h.b16 %v1162
    %v2022 = vunpack.c.l.b16 %v1163
    %v2023 = vunpack.c.h.b16 %v1163
    %v2024 = vunpack.c.l.b16 %v1164
    %v2025 = vunpack.c.h.b16 %v1164
    %v2026 = vunpack.c.l.b16 %v1165
    %v2027 = vunpack.c.h.b16 %v1165
    %v2028 = vunpack.c.l.b16 %v1166
    %v2029 = vunpack.c.h.b16 %v1166
    %v2030 = vunpack.c.l.b16 %v1167
    %v2031 = vunpack.c.h.b16 %v1167
    %v2032 = vunpack.c.l.b16 %v1168
    %v2033 = vunpack.c.h.b16 %v1168
    %v2034 = vunpack.c.l.b16 %v1169
    %v2035 = vunpack.c.h.b16 %v1169
    %v2036 = vunpack.c.l.b16 %v1170
    %v2037 = vunpack.c.h.b16 %v1170
    %v2038 = vunpack.c.l.b16 %v1171
    %v2039 = vunpack.c.h.b16 %v1171
    %v2040 = vunpack.c.l.b16 %v1172
    %v2041 = vunpack.c.h.b16 %v1172
    %v2042 = vunpack.c.l.b16 %v1173
    %v2043 = vunpack.c.h.b16 %v1173
    %v2044 = vunpack.c.l.b16 %v1174
    %v2045 = vunpack.c.h.b16 %v1174
    %v2046 = vunpack.c.l.b16 %v1175
    %v2047 = vunpack.c.h.b16 %v1175
    %v2048 = vunpack.c.l.b16 %v1176
    %v2049 = vunpack.c.h.b16 %v1176
    %v2050 = vunpack.c.l.b16 %v1177
    %v2051 = vunpack.c.h.b16 %v1177
    %v2052 = vunpack.c.l.b16 %v1178
    %v2053 = vunpack.c.h.b16 %v1178
    %v2054 = vunpack.c.l.b16 %v1179
    %v2055 = vunpack.c.h.b16 %v1179
    %v2056 = vunpack.c.l.b16 %v1180
    %v2057 = vunpack.c.h.b16 %v1180
    %v2058 = vunpack.c.l.b16 %v1181
    %v2059 = vunpack.c.h.b16 %v1181
    %v2060 = vunpack.c.l.b16 %v1182
    %v2061 = vunpack.c.h.b16 %v1182
    %v2062 = vunpack.c.l.b16 %v1183
    %v2063 = vunpack.c.h.b16 %v1183
    %v2064 = vunpack.c.l.b16 %v1184
    %v2065 = vunpack.c.h.b16 %v1184
    %v2066 = vunpack.c.l.b16 %v1185
    %v2067 = vunpack.c.h.b16 %v1185
    %v2068 = vunpack.c.l.b16 %v1186
    %v2069 = vunpack.c.h.b16 %v1186
    %v2070 = vunpack.c.l.b16 %v1187
    %v2071 = vunpack.c.h.b16 %v1187
    %v2072 = vunpack.c.l.b16 %v1188
    %v2073 = vunpack.c.h.b16 %v1188
    %v2074 = vunpack.c.l.b16 %v1189
    %v2075 = vunpack.c.h.b16 %v1189
    %v2076 = vunpack.c.l.b16 %v1190
    %v2077 = vunpack.c.h.b16 %v1190
    %v2078 = vunpack.c.l.b16 %v1191
    %v2079 = vunpack.c.h.b16 %v1191
    %v2080 = vunpack.c.l.b16 %v1192
    %v2081 = vunpack.c.h.b16 %v1192
    %v2082 = vunpack.c.l.b16 %v1193
    %v2083 = vunpack.c.h.b16 %v1193
    %v2084 = vunpack.c.l.b16 %v1194
    %v2085 = vunpack.c.h.b16 %v1194
    %v2086 = vunpack.c.l.b16 %v1195
    %v2087 = vunpack.c.h.b16 %v1195
    %v2088 = vunpack.c.l.b16 %v1196
    %v2089 = vunpack.c.h.b16 %v1196
    %v2090 = vunpack.c.l.b16 %v1197
    %v2091 = vunpack.c.h.b16 %v1197
    %v2092 = vunpack.c.l.b16 %v1198
    %v2093 = vunpack.c.h.b16 %v1198
    %v2094 = vunpack.c.l.b16 %v1199
    %v2095 = vunpack.c.h.b16 %v1199
    %v2096 = vunpack.c.l.b16 %v1200
    %v2097 = vunpack.c.h.b16 %v1200
    %v2098 = vunpack.c.l.b16 %v1201
    %v2099 = vunpack.c.h.b16 %v1201
    %v2100 = vunpack.c.l.b16 %v1202
    %v2101 = vunpack.c.h.b16 %v1202
    %v2102 = vunpack.c.l.b16 %v1203
    %v2103 = vunpack.c.h.b16 %v1203
    %v2104 = vunpack.c.l.b16 %v1204
    %v2105 = vunpack.c.h.b16 %v1204
    %v2106 = vunpack.c.l.b16 %v1205
    %v2107 = vunpack.c.h.b16 %v1205
    %v2108 = vunpack.c.l.b16 %v1206
    %v2109 = vunpack.c.h.b16 %v1206
    %v2110 = vunpack.c.l.b16 %v1207
    %v2111 = vunpack.c.h.b16 %v1207
    %v2112 = vunpack.c.l.b16 %v1208
    %v2113 = vunpack.c.h.b16 %v1208
    %v2114 = vunpack.c.l.b16 %v1209
    %v2115 = vunpack.c.h.b16 %v1209
    %v2116 = vunpack.c.l.b16 %v1210
    %v2117 = vunpack.c.h.b16 %v1210
    %v2118 = vunpack.c.l.b16 %v1211
    %v2119 = vunpack.c.h.b16 %v1211
    %v2120 = vunpack.c.l.b16 %v1212
    %v2121 = vunpack.c.h.b16 %v1212
    %v2122 = vunpack.c.l.b16 %v1213
    %v2123 = vunpack.c.h.b16 %v1213
    %v2124 = vunpack.c.l.b16 %v1214
    %v2125 = vunpack.c.h.b16 %v1214
    %v2126 = vunpack.c.l.b16 %v1215
    %v2127 = vunpack.c.h.b16 %v1215
    %v2128 = vunpack.c.l.b16 %v1216
    %v2129 = vunpack.c.h.b16 %v1216
    %v2130 = vunpack.c.l.b16 %v1217
    %v2131 = vunpack.c.h.b16 %v1217
    %v2132 = vunpack.c.l.b16 %v1218
    %v2133 = vunpack.c.h.b16 %v1218
    %v2134 = vunpack.c.l.b16 %v1219
    %v2135 = vunpack.c.h.b16 %v1219
    %v2136 = vunpack.c.l.b16 %v1220
    %v2137 = vunpack.c.h.b16 %v1220
    %v2138 = vunpack.c.l.b16 %v1221
    %v2139 = vunpack.c.h.b16 %v1221
    %v2140 = vunpack.c.l.b16 %v1222
    %v2141 = vunpack.c.h.b16 %v1222
    %v2142 = vunpack.c.l.b16 %v1223
    %v2143 = vunpack.c.h.b16 %v1223
    %v2144 = vunpack.c.l.b16 %v1224
    %v2145 = vunpack.c.h.b16 %v1224
    %v2146 = vunpack.c.l.b16 %v1225
    %v2147 = vunpack.c.h.b16 %v1225
    %v2148 = vunpack.c.l.b16 %v1226
    %v2149 = vunpack.c.h.b16 %v1226
    %v2150 = vunpack.c.l.b16 %v1227
    %v2151 = vunpack.c.h.b16 %v1227
    %v2152 = vunpack.c.l.b16 %v1228
    %v2153 = vunpack.c.h.b16 %v1228
    %v2154 = vunpack.c.l.b16 %v1229
    %v2155 = vunpack.c.h.b16 %v1229
    %v2156 = vunpack.c.l.b16 %v1230
    %v2157 = vunpack.c.h.b16 %v1230
    %v2158 = vunpack.c.l.b16 %v1231
    %v2159 = vunpack.c.h.b16 %v1231
    %v2160 = vunpack.c.l.b16 %v1232
    %v2161 = vunpack.c.h.b16 %v1232
    %v2162 = vunpack.c.l.b16 %v1233
    %v2163 = vunpack.c.h.b16 %v1233
    %v2164 = vunpack.c.l.b16 %v1234
    %v2165 = vunpack.c.h.b16 %v1234
    %v2166 = vunpack.c.l.b16 %v1235
    %v2167 = vunpack.c.h.b16 %v1235
    %v2168 = vunpack.c.l.b16 %v1236
    %v2169 = vunpack.c.h.b16 %v1236
    %v2170 = vunpack.c.l.b16 %v1237
    %v2171 = vunpack.c.h.b16 %v1237
    %v2172 = vunpack.c.l.b16 %v1238
    %v2173 = vunpack.c.h.b16 %v1238
    %v2174 = vunpack.c.l.b16 %v1239
    %v2175 = vunpack.c.h.b16 %v1239
    %v2176 = vunpack.c.l.b16 %v1240
    %v2177 = vunpack.c.h.b16 %v1240
    %v2178 = vunpack.c.l.b16 %v1241
    %v2179 = vunpack.c.h.b16 %v1241
    %v2180 = vunpack.c.l.b16 %v1242
    %v2181 = vunpack.c.h.b16 %v1242
    %v2182 = vunpack.c.l.b16 %v1243
    %v2183 = vunpack.c.h.b16 %v1243
    %v2184 = vunpack.c.l.b16 %v1244
    %v2185 = vunpack.c.h.b16 %v1244
    %v2186 = vunpack.c.l.b16 %v1245
    %v2187 = vunpack.c.h.b16 %v1245
    %v2188 = vunpack.c.l.b16 %v1246
    %v2189 = vunpack.c.h.b16 %v1246
    %v2190 = vunpack.c.l.b16 %v1247
    %v2191 = vunpack.c.h.b16 %v1247
    %v2192 = vunpack.c.l.b16 %v1248
    %v2193 = vunpack.c.h.b16 %v1248
    %v2194 = vunpack.c.l.b16 %v1249
    %v2195 = vunpack.c.h.b16 %v1249
    %v2196 = vunpack.c.l.b16 %v1250
    %v2197 = vunpack.c.h.b16 %v1250
    %v2198 = vunpack.c.l.b16 %v1251
    %v2199 = vunpack.c.h.b16 %v1251
    %v2200 = vunpack.c.l.b16 %v1252
    %v2201 = vunpack.c.h.b16 %v1252
    %v2202 = vunpack.c.l.b16 %v1253
    %v2203 = vunpack.c.h.b16 %v1253
    %v2204 = vunpack.c.l.b16 %v1254
    %v2205 = vunpack.c.h.b16 %v1254
    %v2206 = vunpack.c.l.b16 %v1255
    %v2207 = vunpack.c.h.b16 %v1255
    %v2208 = vunpack.c.l.b16 %v1256
    %v2209 = vunpack.c.h.b16 %v1256
    %v2210 = vunpack.c.l.b16 %v1257
    %v2211 = vunpack.c.h.b16 %v1257
    %v2212 = vunpack.c.l.b16 %v1258
    %v2213 = vunpack.c.h.b16 %v1258
    %v2214 = vunpack.c.l.b16 %v1259
    %v2215 = vunpack.c.h.b16 %v1259
    %v2216 = vunpack.c.l.b16 %v1260
    %v2217 = vunpack.c.h.b16 %v1260
    %v2218 = vunpack.c.l.b16 %v1261
    %v2219 = vunpack.c.h.b16 %v1261
    %v2220 = vunpack.c.l.b16 %v1262
    %v2221 = vunpack.c.h.b16 %v1262
    %v2222 = vunpack.c.l.b16 %v1263
    %v2223 = vunpack.c.h.b16 %v1263
    %v2224 = vunpack.c.l.b16 %v1264
    %v2225 = vunpack.c.h.b16 %v1264
    %v2226 = vunpack.c.l.b16 %v1265
    %v2227 = vunpack.c.h.b16 %v1265
    %v2228 = vunpack.c.l.b16 %v1266
    %v2229 = vunpack.c.h.b16 %v1266
    %v2230 = vunpack.c.l.b16 %v1267
    %v2231 = vunpack.c.h.b16 %v1267
    %v2232 = vunpack.c.l.b16 %v1268
    %v2233 = vunpack.c.h.b16 %v1268
    %v2234 = vunpack.c.l.b16 %v1269
    %v2235 = vunpack.c.h.b16 %v1269
    %v2236 = vunpack.c.l.b16 %v1270
    %v2237 = vunpack.c.h.b16 %v1270
    %v2238 = vunpack.c.l.b16 %v1271
    %v2239 = vunpack.c.h.b16 %v1271
    %v2240 = vunpack.c.l.b16 %v1272
    %v2241 = vunpack.c.h.b16 %v1272
    %v2242 = vunpack.c.l.b16 %v1273
    %v2243 = vunpack.c.h.b16 %v1273
    %v2244 = vunpack.c.l.b16 %v1274
    %v2245 = vunpack.c.h.b16 %v1274
    %v2246 = vunpack.c.l.b16 %v1275
    %v2247 = vunpack.c.h.b16 %v1275
    %v2248 = vunpack.c.l.b16 %v1276
    %v2249 = vunpack.c.h.b16 %v1276
    %v2250 = vunpack.c.l.b16 %v1277
    %v2251 = vunpack.c.h.b16 %v1277
    %v2252 = vunpack.c.l.b16 %v1278
    %v2253 = vunpack.c.h.b16 %v1278
    %v2254 = vunpack.c.l.b16 %v1279
    %v2255 = vunpack.c.h.b16 %v1279
    %v2256 = vunpack.c.l.b16 %v1280
    %v2257 = vunpack.c.h.b16 %v1280
    %v2258 = vunpack.c.l.b16 %v1281
    %v2259 = vunpack.c.h.b16 %v1281
    %v2260 = vunpack.c.l.b16 %v1282
    %v2261 = vunpack.c.h.b16 %v1282
    %v2262 = vunpack.c.l.b16 %v1283
    %v2263 = vunpack.c.h.b16 %v1283
    %v2264 = vunpack.c.l.b16 %v1284
    %v2265 = vunpack.c.h.b16 %v1284
    %v2266 = vunpack.c.l.b16 %v1285
    %v2267 = vunpack.c.h.b16 %v1285
    %v2268 = vunpack.c.l.b16 %v1286
    %v2269 = vunpack.c.h.b16 %v1286
    %v2270 = vunpack.c.l.b16 %v1287
    %v2271 = vunpack.c.h.b16 %v1287
    %v2272 = vunpack.c.l.b16 %v1288
    %v2273 = vunpack.c.h.b16 %v1288
    %v2274 = vunpack.c.l.b16 %v1289
    %v2275 = vunpack.c.h.b16 %v1289
    %v2276 = vunpack.c.l.b16 %v1290
    %v2277 = vunpack.c.h.b16 %v1290
    %v2278 = vunpack.c.l.b16 %v1291
    %v2279 = vunpack.c.h.b16 %v1291
    %v2280 = vunpack.c.l.b16 %v1292
    %v2281 = vunpack.c.h.b16 %v1292
    %v2282 = vunpack.c.l.b16 %v1293
    %v2283 = vunpack.c.h.b16 %v1293
    %v2284 = vunpack.c.l.b16 %v1294
    %v2285 = vunpack.c.h.b16 %v1294
    %v2286 = vunpack.c.l.b16 %v1295
    %v2287 = vunpack.c.h.b16 %v1295
    %v2288 = vunpack.c.l.b16 %v1296
    %v2289 = vunpack.c.h.b16 %v1296
    %v2290 = vunpack.c.l.b16 %v1297
    %v2291 = vunpack.c.h.b16 %v1297
    %v2292 = vunpack.c.l.b16 %v1298
    %v2293 = vunpack.c.h.b16 %v1298
    %v2294 = vunpack.c.l.b16 %v1299
    %v2295 = vunpack.c.h.b16 %v1299
    %v2296 = vunpack.c.l.b16 %v1300
    %v2297 = vunpack.c.h.b16 %v1300
    %v2298 = vunpack.c.l.b16 %v1301
    %v2299 = vunpack.c.h.b16 %v1301
    %v2300 = vunpack.c.l.b16 %v1302
    %v2301 = vunpack.c.h.b16 %v1302
    %v2302 = vunpack.c.l.b16 %v1303
    %v2303 = vunpack.c.h.b16 %v1303
    %v2304 = vunpack.c.l.b16 %v1304
    %v2305 = vunpack.c.h.b16 %v1304
    %v2306 = vunpack.c.l.b16 %v1305
    %v2307 = vunpack.c.h.b16 %v1305
    %v2308 = vunpack.c.l.b16 %v1306
    %v2309 = vunpack.c.h.b16 %v1306
    %v2310 = vunpack.c.l.b16 %v1307
    %v2311 = vunpack.c.h.b16 %v1307
    %v2312 = vunpack.c.l.b16 %v1308
    %v2313 = vunpack.c.h.b16 %v1308
    %v2314 = vunpack.c.l.b16 %v1309
    %v2315 = vunpack.c.h.b16 %v1309
    %v2316 = vunpack.c.l.b16 %v1310
    %v2317 = vunpack.c.h.b16 %v1310
    %v2318 = vunpack.c.l.b16 %v1311
    %v2319 = vunpack.c.h.b16 %v1311
    %v2320 = vunpack.c.l.b16 %v1312
    %v2321 = vunpack.c.h.b16 %v1312
    %v2322 = vunpack.c.l.b16 %v1313
    %v2323 = vunpack.c.h.b16 %v1313
    %v2324 = vunpack.c.l.b16 %v1314
    %v2325 = vunpack.c.h.b16 %v1314
    %v2326 = vunpack.c.l.b16 %v1315
    %v2327 = vunpack.c.h.b16 %v1315
    %v2328 = vunpack.c.l.b16 %v1316
    %v2329 = vunpack.c.h.b16 %v1316
    %v2330 = vunpack.c.l.b16 %v1317
    %v2331 = vunpack.c.h.b16 %v1317
    %v2332 = vunpack.c.l.b16 %v1318
    %v2333 = vunpack.c.h.b16 %v1318
    %v2334 = vunpack.c.l.b16 %v1319
    %v2335 = vunpack.c.h.b16 %v1319
    %v2336 = vunpack.c.l.b16 %v1320
    %v2337 = vunpack.c.h.b16 %v1320
    %v2338 = vunpack.c.l.b16 %v1321
    %v2339 = vunpack.c.h.b16 %v1321
    %v2340 = vunpack.c.l.b16 %v1322
    %v2341 = vunpack.c.h.b16 %v1322
    %v2342 = vunpack.c.l.b16 %v1323
    %v2343 = vunpack.c.h.b16 %v1323
    %v2344 = vunpack.c.l.b16 %v1324
    %v2345 = vunpack.c.h.b16 %v1324
    %v2346 = vunpack.c.l.b16 %v1325
    %v2347 = vunpack.c.h.b16 %v1325
    %v2348 = vunpack.c.l.b16 %v1326
    %v2349 = vunpack.c.h.b16 %v1326
    %v2350 = vunpack.c.l.b16 %v1327
    %v2351 = vunpack.c.h.b16 %v1327
    %v2352 = vunpack.c.l.b16 %v1328
    %v2353 = vunpack.c.h.b16 %v1328
    %v2354 = vunpack.c.l.b16 %v1329
    %v2355 = vunpack.c.h.b16 %v1329
    %v2356 = vunpack.c.l.b16 %v1330
    %v2357 = vunpack.c.h.b16 %v1330
    %v2358 = vunpack.c.l.b16 %v1331
    %v2359 = vunpack.c.h.b16 %v1331
    %v2360 = vunpack.c.l.b16 %v1332
    %v2361 = vunpack.c.h.b16 %v1332
    %v2362 = vunpack.c.l.b16 %v1333
    %v2363 = vunpack.c.h.b16 %v1333
    %v2364 = vunpack.c.l.b16 %v1334
    %v2365 = vunpack.c.h.b16 %v1334
    %v2366 = vunpack.c.l.b16 %v1335
    %v2367 = vunpack.c.h.b16 %v1335
    %v2368 = vunpack.c.l.b16 %v1336
    %v2369 = vunpack.c.h.b16 %v1336
    %v2370 = vunpack.c.l.b16 %v1337
    %v2371 = vunpack.c.h.b16 %v1337
    %v2372 = vunpack.c.l.b16 %v1338
    %v2373 = vunpack.c.h.b16 %v1338
    %v2374 = vunpack.c.l.b16 %v1339
    %v2375 = vunpack.c.h.b16 %v1339
    %v2376 = vunpack.c.l.b16 %v1340
    %v2377 = vunpack.c.h.b16 %v1340
    %v2378 = vunpack.c.l.b16 %v1341
    %v2379 = vunpack.c.h.b16 %v1341
    %v2380 = vunpack.c.l.b16 %v1342
    %v2381 = vunpack.c.h.b16 %v1342
    %v2382 = vunpack.c.l.b16 %v1343
    %v2383 = vunpack.c.h.b16 %v1343
    %v2384 = vunpack.c.l.b16 %v1344
    %v2385 = vunpack.c.h.b16 %v1344
    %v2386 = vunpack.c.l.b16 %v1345
    %v2387 = vunpack.c.h.b16 %v1345
    %v2388 = vunpack.c.l.b16 %v1346
    %v2389 = vunpack.c.h.b16 %v1346
    %v2390 = vunpack.c.l.b16 %v1347
    %v2391 = vunpack.c.h.b16 %v1347
    %v2392 = vunpack.c.l.b16 %v1348
    %v2393 = vunpack.c.h.b16 %v1348
    %v2394 = vunpack.c.l.b16 %v1349
    %v2395 = vunpack.c.h.b16 %v1349
    %v2396 = vunpack.c.l.b16 %v1350
    %v2397 = vunpack.c.h.b16 %v1350
    %v2398 = vunpack.c.l.b16 %v1351
    %v2399 = vunpack.c.h.b16 %v1351
    %v2400 = vunpack.c.l.b16 %v1352
    %v2401 = vunpack.c.h.b16 %v1352
    %v2402 = vunpack.c.l.b16 %v1353
    %v2403 = vunpack.c.h.b16 %v1353
    %v2404 = vunpack.c.l.b16 %v1354
    %v2405 = vunpack.c.h.b16 %v1354
    %v2406 = vunpack.c.l.b16 %v1355
    %v2407 = vunpack.c.h.b16 %v1355
    %v2408 = vunpack.c.l.b16 %v1356
    %v2409 = vunpack.c.h.b16 %v1356
    %v2410 = vunpack.c.l.b16 %v1357
    %v2411 = vunpack.c.h.b16 %v1357
    %v2412 = vunpack.c.l.b16 %v1358
    %v2413 = vunpack.c.h.b16 %v1358
    %v2414 = vunpack.c.l.b16 %v1359
    %v2415 = vunpack.c.h.b16 %v1359
    %v2416 = vunpack.c.l.b16 %v1360
    %v2417 = vunpack.c.h.b16 %v1360
    %v2418 = vunpack.c.l.b16 %v1361
    %v2419 = vunpack.c.h.b16 %v1361
    %v2420 = vunpack.c.l.b16 %v1362
    %v2421 = vunpack.c.h.b16 %v1362
    %v2422 = vunpack.c.l.b16 %v1363
    %v2423 = vunpack.c.h.b16 %v1363
    %v2424 = vunpack.c.l.b16 %v1364
    %v2425 = vunpack.c.h.b16 %v1364
    %v2426 = vunpack.c.l.b16 %v1365
    %v2427 = vunpack.c.h.b16 %v1365
    %v2428 = vunpack.c.l.b16 %v1366
    %v2429 = vunpack.c.h.b16 %v1366
    %v2430 = vunpack.c.l.b16 %v1367
    %v2431 = vunpack.c.h.b16 %v1367
    %v2432 = vunpack.c.l.b16 %v1368
    %v2433 = vunpack.c.h.b16 %v1368
    %v2434 = vunpack.c.l.b16 %v1369
    %v2435 = vunpack.c.h.b16 %v1369
    %v2436 = vunpack.c.l.b16 %v1370
    %v2437 = vunpack.c.h.b16 %v1370
    %v2438 = vunpack.c.l.b16 %v1371
    %v2439 = vunpack.c.h.b16 %v1371
    %v2440 = vunpack.c.l.b16 %v1372
    %v2441 = vunpack.c.h.b16 %v1372
    %v2442 = vunpack.c.l.b16 %v1373
    %v2443 = vunpack.c.h.b16 %v1373
    %v2444 = vunpack.c.l.b16 %v1374
    %v2445 = vunpack.c.h.b16 %v1374
    %v2446 = vunpack.c.l.b16 %v1375
    %v2447 = vunpack.c.h.b16 %v1375
    %v2448 = vunpack.c.l.b16 %v1376
    %v2449 = vunpack.c.h.b16 %v1376
    %v2450 = vunpack.c.l.b16 %v1377
    %v2451 = vunpack.c.h.b16 %v1377
    %v2452 = vunpack.c.l.b16 %v1378
    %v2453 = vunpack.c.h.b16 %v1378
    %v2454 = vunpack.c.l.b16 %v1379
    %v2455 = vunpack.c.h.b16 %v1379
    %v2456 = vunpack.c.l.b16 %v1380
    %v2457 = vunpack.c.h.b16 %v1380
    %v2458 = vunpack.c.l.b16 %v1381
    %v2459 = vunpack.c.h.b16 %v1381
    %v2460 = vunpack.c.l.b16 %v1382
    %v2461 = vunpack.c.h.b16 %v1382
    %v2462 = vunpack.c.l.b16 %v1383
    %v2463 = vunpack.c.h.b16 %v1383
    %v2464 = vunpack.c.l.b16 %v1384
    %v2465 = vunpack.c.h.b16 %v1384
    %v2466 = vunpack.c.l.b16 %v1385
    %v2467 = vunpack.c.h.b16 %v1385
    %v2468 = vunpack.c.l.b16 %v1386
    %v2469 = vunpack.c.h.b16 %v1386
    %v2470 = vunpack.c.l.b16 %v1387
    %v2471 = vunpack.c.h.b16 %v1387
    %v2472 = vunpack.c.l.b16 %v1388
    %v2473 = vunpack.c.h.b16 %v1388
    %v2474 = vunpack.c.l.b16 %v1389
    %v2475 = vunpack.c.h.b16 %v1389
    %v2476 = vunpack.c.l.b16 %v1390
    %v2477 = vunpack.c.h.b16 %v1390
    %v2478 = vunpack.c.l.b16 %v1391
    %v2479 = vunpack.c.h.b16 %v1391
    %v2480 = vunpack.c.l.b16 %v1392
    %v2481 = vunpack.c.h.b16 %v1392
    %v2482 = vunpack.c.l.b16 %v1393
    %v2483 = vunpack.c.h.b16 %v1393
    %v2484 = vunpack.c.l.b16 %v1394
    %v2485 = vunpack.c.h.b16 %v1394
    %v2486 = vunpack.c.l.b16 %v1395
    %v2487 = vunpack.c.h.b16 %v1395
    %v2488 = vunpack.c.l.b16 %v1396
    %v2489 = vunpack.c.h.b16 %v1396
    %v2490 = vunpack.c.l.b16 %v1397
    %v2491 = vunpack.c.h.b16 %v1397
    %v2492 = vunpack.c.l.b16 %v1398
    %v2493 = vunpack.c.h.b16 %v1398
    %v2494 = vunpack.c.l.b16 %v1399
    %v2495 = vunpack.c.h.b16 %v1399
    %v2496 = vunpack.c.l.b16 %v1400
    %v2497 = vunpack.c.h.b16 %v1400
    %v2498 = vunpack.c.l.b16 %v1401
    %v2499 = vunpack.c.h.b16 %v1401
    %v2500 = vunpack.c.l.b16 %v1402
    %v2501 = vunpack.c.h.b16 %v1402
    %v2502 = vunpack.c.l.b16 %v1403
    %v2503 = vunpack.c.h.b16 %v1403
    %v2504 = vunpack.c.l.b16 %v1404
    %v2505 = vunpack.c.h.b16 %v1404
    %v2506 = vunpack.c.l.b16 %v1405
    %v2507 = vunpack.c.h.b16 %v1405
    %v2508 = vunpack.c.l.b16 %v1406
    %v2509 = vunpack.c.h.b16 %v1406
    %v2510 = vunpack.c.l.b16 %v1407
    %v2511 = vunpack.c.h.b16 %v1407
    %v2512 = vunpack.c.l.b16 %v1408
    %v2513 = vunpack.c.h.b16 %v1408
    %v2514 = vunpack.c.l.b16 %v1409
    %v2515 = vunpack.c.h.b16 %v1409
    %v2516 = vunpack.c.l.b16 %v1410
    %v2517 = vunpack.c.h.b16 %v1410
    %v2518 = vunpack.c.l.b16 %v1411
    %v2519 = vunpack.c.h.b16 %v1411
    %v2520 = vunpack.c.l.b16 %v1412
    %v2521 = vunpack.c.h.b16 %v1412
    %v2522 = vunpack.c.l.b16 %v1413
    %v2523 = vunpack.c.h.b16 %v1413
    %v2524 = vunpack.c.l.b16 %v1414
    %v2525 = vunpack.c.h.b16 %v1414
    %v2526 = vunpack.c.l.b16 %v1415
    %v2527 = vunpack.c.h.b16 %v1415
    %v2528 = vunpack.c.l.b16 %v1416
    %v2529 = vunpack.c.h.b16 %v1416
    %v2530 = vunpack.c.l.b16 %v1417
    %v2531 = vunpack.c.h.b16 %v1417
    %v2532 = vunpack.c.l.b16 %v1418
    %v2533 = vunpack.c.h.b16 %v1418
    %v2534 = vunpack.c.l.b16 %v1419
    %v2535 = vunpack.c.h.b16 %v1419
    %v2536 = vunpack.c.l.b16 %v1420
    %v2537 = vunpack.c.h.b16 %v1420
    %v2538 = vunpack.c.l.b16 %v1421
    %v2539 = vunpack.c.h.b16 %v1421
    %v2540 = vunpack.c.l.b16 %v1422
    %v2541 = vunpack.c.h.b16 %v1422
    %v2542 = vunpack.c.l.b16 %v1423
    %v2543 = vunpack.c.h.b16 %v1423
    %v2544 = vunpack.c.l.b16 %v1424
    %v2545 = vunpack.c.h.b16 %v1424
    %v2546 = vunpack.c.l.b16 %v1425
    %v2547 = vunpack.c.h.b16 %v1425
    %v2548 = vunpack.c.l.b16 %v1426
    %v2549 = vunpack.c.h.b16 %v1426
    %v2550 = vunpack.c.l.b16 %v1427
    %v2551 = vunpack.c.h.b16 %v1427
    %v2552 = vunpack.c.l.b16 %v1428
    %v2553 = vunpack.c.h.b16 %v1428
    %v2554 = vunpack.c.l.b16 %v1429
    %v2555 = vunpack.c.h.b16 %v1429
    %v2556 = vunpack.c.l.b16 %v1430
    %v2557 = vunpack.c.h.b16 %v1430
    %v2558 = vunpack.c.l.b16 %v1431
    %v2559 = vunpack.c.h.b16 %v1431
    %v2560 = vunpack.c.l.b16 %v1432
    %v2561 = vunpack.c.h.b16 %v1432
    %v2562 = vunpack.c.l.b16 %v1433
    %v2563 = vunpack.c.h.b16 %v1433
    %v2564 = vunpack.c.l.b16 %v1434
    %v2565 = vunpack.c.h.b16 %v1434
    %v2566 = vunpack.c.l.b16 %v1435
    %v2567 = vunpack.c.h.b16 %v1435
    %v2568 = vunpack.c.l.b16 %v1436
    %v2569 = vunpack.c.h.b16 %v1436
    %v2570 = vunpack.c.l.b16 %v1437
    %v2571 = vunpack.c.h.b16 %v1437
    %v2572 = vunpack.c.l.b16 %v1438
    %v2573 = vunpack.c.h.b16 %v1438
    %v2574 = vunpack.c.l.b16 %v1439
    %v2575 = vunpack.c.h.b16 %v1439
    %v2576 = vunpack.c.l.b16 %v1440
    %v2577 = vunpack.c.h.b16 %v1440
    %v2578 = vunpack.c.l.b16 %v1441
    %v2579 = vunpack.c.h.b16 %v1441
    %v2580 = vunpack.c.l.b16 %v1442
    %v2581 = vunpack.c.h.b16 %v1442
    %v2582 = vunpack.c.l.b16 %v1443
    %v2583 = vunpack.c.h.b16 %v1443
    %v2584 = vunpack.c.l.b16 %v1444
    %v2585 = vunpack.c.h.b16 %v1444
    %v2586 = vunpack.c.l.b16 %v1445
    %v2587 = vunpack.c.h.b16 %v1445
    %v2588 = vunpack.c.l.b16 %v1446
    %v2589 = vunpack.c.h.b16 %v1446
    %v2590 = vunpack.c.l.b16 %v1447
    %v2591 = vunpack.c.h.b16 %v1447
    %v2592 = vunpack.c.l.b16 %v1448
    %v2593 = vunpack.c.h.b16 %v1448
    %v2594 = vunpack.c.l.b16 %v1449
    %v2595 = vunpack.c.h.b16 %v1449
    %v2596 = vunpack.c.l.b16 %v1450
    %v2597 = vunpack.c.h.b16 %v1450
    %v2598 = vunpack.c.l.b16 %v1451
    %v2599 = vunpack.c.h.b16 %v1451
    %v2600 = vunpack.c.l.b16 %v1452
    %v2601 = vunpack.c.h.b16 %v1452
    %v2602 = vunpack.c.l.b16 %v1453
    %v2603 = vunpack.c.h.b16 %v1453
    %v2604 = vunpack.c.l.b16 %v1454
    %v2605 = vunpack.c.h.b16 %v1454
    %v2606 = vunpack.c.l.b16 %v1455
    %v2607 = vunpack.c.h.b16 %v1455
    %v2608 = vunpack.c.l.b16 %v1456
    %v2609 = vunpack.c.h.b16 %v1456
    %v2610 = vunpack.c.l.b16 %v1457
    %v2611 = vunpack.c.h.b16 %v1457
    %v2612 = vunpack.c.l.b16 %v1458
    %v2613 = vunpack.c.h.b16 %v1458
    %v2614 = vunpack.c.l.b16 %v1459
    %v2615 = vunpack.c.h.b16 %v1459
    %v2616 = vunpack.c.l.b16 %v1460
    %v2617 = vunpack.c.h.b16 %v1460
    %v2618 = vunpack.c.l.b16 %v1461
    %v2619 = vunpack.c.h.b16 %v1461
    %v2620 = vunpack.c.l.b16 %v1462
    %v2621 = vunpack.c.h.b16 %v1462
    %v2622 = vunpack.c.l.b16 %v1463
    %v2623 = vunpack.c.h.b16 %v1463
    %v2624 = vunpack.c.l.b16 %v1464
    %v2625 = vunpack.c.h.b16 %v1464
    %v2626 = vunpack.c.l.b16 %v1465
    %v2627 = vunpack.c.h.b16 %v1465
    %v2628 = vunpack.c.l.b16 %v1466
    %v2629 = vunpack.c.h.b16 %v1466
    %v2630 = vunpack.c.l.b16 %v1467
    %v2631 = vunpack.c.h.b16 %v1467
    %v2632 = vunpack.c.l.b16 %v1468
    %v2633 = vunpack.c.h.b16 %v1468
    %v2634 = vunpack.c.l.b16 %v1469
    %v2635 = vunpack.c.h.b16 %v1469
    %v2636 = vunpack.c.l.b16 %v1470
    %v2637 = vunpack.c.h.b16 %v1470
    %v2638 = vunpack.c.l.b16 %v1471
    %v2639 = vunpack.c.h.b16 %v1471
    %v2640 = vunpack.c.l.b16 %v1472
    %v2641 = vunpack.c.h.b16 %v1472
    %v2642 = vunpack.c.l.b16 %v1473
    %v2643 = vunpack.c.h.b16 %v1473
    %v2644 = vunpack.c.l.b16 %v1474
    %v2645 = vunpack.c.h.b16 %v1474
    %v2646 = vunpack.c.l.b16 %v1475
    %v2647 = vunpack.c.h.b16 %v1475
    %v2648 = vunpack.c.l.b16 %v1476
    %v2649 = vunpack.c.h.b16 %v1476
    %v2650 = vunpack.c.l.b16 %v1477
    %v2651 = vunpack.c.h.b16 %v1477
    %v2652 = vunpack.c.l.b16 %v1478
    %v2653 = vunpack.c.h.b16 %v1478
    %v2654 = vunpack.c.l.b16 %v1479
    %v2655 = vunpack.c.h.b16 %v1479
    %v2656 = vunpack.c.l.b16 %v1480
    %v2657 = vunpack.c.h.b16 %v1480
    %v2658 = vunpack.c.l.b16 %v1481
    %v2659 = vunpack.c.h.b16 %v1481
    %v2660 = vunpack.c.l.b16 %v1482
    %v2661 = vunpack.c.h.b16 %v1482
    %v2662 = vunpack.c.l.b16 %v1483
    %v2663 = vunpack.c.h.b16 %v1483
    %v2664 = vunpack.c.l.b16 %v1484
    %v2665 = vunpack.c.h.b16 %v1484
    %v2666 = vunpack.c.l.b16 %v1485
    %v2667 = vunpack.c.h.b16 %v1485
    %v2668 = vunpack.c.l.b16 %v1486
    %v2669 = vunpack.c.h.b16 %v1486
    %v2670 = vunpack.c.l.b16 %v1487
    %v2671 = vunpack.c.h.b16 %v1487
    %v2672 = vunpack.c.l.b16 %v1488
    %v2673 = vunpack.c.h.b16 %v1488
    %v2674 = vunpack.c.l.b16 %v1489
    %v2675 = vunpack.c.h.b16 %v1489
    %v2676 = vunpack.c.l.b16 %v1490
    %v2677 = vunpack.c.h.b16 %v1490
    %v2678 = vunpack.c.l.b16 %v1491
    %v2679 = vunpack.c.h.b16 %v1491
    %v2680 = vunpack.c.l.b16 %v1492
    %v2681 = vunpack.c.h.b16 %v1492
    %v2682 = vunpack.c.l.b16 %v1493
    %v2683 = vunpack.c.h.b16 %v1493
    %v2684 = vunpack.c.l.b16 %v1494
    %v2685 = vunpack.c.h.b16 %v1494
    %v2686 = vunpack.c.l.b16 %v1495
    %v2687 = vunpack.c.h.b16 %v1495
    %v2688 = vunpack.c.l.b16 %v1496
    %v2689 = vunpack.c.h.b16 %v1496
    %v2690 = vunpack.c.l.b16 %v1497
    %v2691 = vunpack.c.h.b16 %v1497
    %v2692 = vunpack.c.l.b16 %v1498
    %v2693 = vunpack.c.h.b16 %v1498
    %v2694 = vunpack.c.l.b16 %v1499
    %v2695 = vunpack.c.h.b16 %v1499
    %v2696 = vunpack.c.l.b16 %v1500
    %v2697 = vunpack.c.h.b16 %v1500
    %v2698 = vunpack.c.l.b16 %v1501
    %v2699 = vunpack.c.h.b16 %v1501
    %v2700 = vunpack.c.l.b16 %v1502
    %v2701 = vunpack.c.h.b16 %v1502
    %v2702 = vunpack.c.l.b16 %v1503
    %v2703 = vunpack.c.h.b16 %v1503
    %v2704 = vunpack.c.l.b16 %v1504
    %v2705 = vunpack.c.h.b16 %v1504
    %v2706 = vunpack.c.l.b16 %v1505
    %v2707 = vunpack.c.h.b16 %v1505
    %v2708 = vunpack.c.l.b16 %v1506
    %v2709 = vunpack.c.h.b16 %v1506
    %v2710 = vunpack.c.l.b16 %v1507
    %v2711 = vunpack.c.h.b16 %v1507
    %v2712 = vunpack.c.l.b16 %v1508
    %v2713 = vunpack.c.h.b16 %v1508
    %v2714 = vunpack.c.l.b16 %v1509
    %v2715 = vunpack.c.h.b16 %v1509
    %v2716 = vunpack.c.l.b16 %v1510
    %v2717 = vunpack.c.h.b16 %v1510
    %v2718 = vunpack.c.l.b16 %v1511
    %v2719 = vunpack.c.h.b16 %v1511
    %v2720 = vunpack.c.l.b16 %v1512
    %v2721 = vunpack.c.h.b16 %v1512
    %v2722 = vunpack.c.l.b16 %v1513
    %v2723 = vunpack.c.h.b16 %v1513
    %v2724 = vunpack.c.l.b16 %v1514
    %v2725 = vunpack.c.h.b16 %v1514
    %v2726 = vunpack.c.l.b16 %v1515
    %v2727 = vunpack.c.h.b16 %v1515
    %v2728 = vunpack.c.l.b16 %v1516
    %v2729 = vunpack.c.h.b16 %v1516
    %v2730 = vunpack.c.l.b16 %v1517
    %v2731 = vunpack.c.h.b16 %v1517
    %v2732 = vunpack.c.l.b16 %v1518
    %v2733 = vunpack.c.h.b16 %v1518
    %v2734 = vunpack.c.l.b16 %v1519
    %v2735 = vunpack.c.h.b16 %v1519
    %v2736 = vunpack.c.l.b16 %v1520
    %v2737 = vunpack.c.h.b16 %v1520
    %v2738 = vunpack.c.l.b16 %v1521
    %v2739 = vunpack.c.h.b16 %v1521
    %v2740 = vpack.c.b16 %v1964, %v1956
    %v2741 = vpack.c.b16 %v1965, %v1957
    %v2742 = vpack.c.b16 %v1966, %v1958
    %v2743 = vpack.c.b16 %v1967, %v1959
    %v2744 = vpack.c.b16 %v1968, %v1960
    %v2745 = vpack.c.b16 %v1969, %v1961
    %v2746 = vpack.c.b16 %v1970, %v1962
    %v2747 = vpack.c.b16 %v1971, %v1963
    %v2748 = vpack.c.b16 %v1980, %v1972
    %v2749 = vpack.c.b16 %v1981, %v1973
    %v2750 = vpack.c.b16 %v1982, %v1974
    %v2751 = vpack.c.b16 %v1983, %v1975
    %v2752 = vpack.c.b16 %v1984, %v1976
    %v2753 = vpack.c.b16 %v1985, %v1977
    %v2754 = vpack.c.b16 %v1986, %v1978
    %v2755 = vpack.c.b16 %v1987, %v1979
    %v2756 = vpack.c.b16 %v1996, %v1988
    %v2757 = vpack.c.b16 %v1997, %v1989
    %v2758 = vpack.c.b16 %v1998, %v1990
    %v2759 = vpack.c.b16 %v1999, %v1991
    %v2760 = vpack.c.b16 %v2000, %v1992
    %v2761 = vpack.c.b16 %v2001, %v1993
    %v2762 = vpack.c.b16 %v2002, %v1994
    %v2763 = vpack.c.b16 %v2003, %v1995
    %v2764 = vpack.c.b16 %v2012, %v2004
    %v2765 = vpack.c.b16 %v2013, %v2005
    %v2766 = vpack.c.b16 %v2014, %v2006
    %v2767 = vpack.c.b16 %v2015, %v2007
    %v2768 = vpack.c.b16 %v2016, %v2008
    %v2769 = vpack.c.b16 %v2017, %v2009
    %v2770 = vpack.c.b16 %v2018, %v2010
    %v2771 = vpack.c.b16 %v2019, %v2011
    %v2772 = vpack.c.b16 %v2028, %v2020
    %v2773 = vpack.c.b16 %v2029, %v2021
    %v2774 = vpack.c.b16 %v2030, %v2022
    %v2775 = vpack.c.b16 %v2031, %v2023
    %v2776 = vpack.c.b16 %v2032, %v2024
    %v2777 = vpack.c.b16 %v2033, %v2025
    %v2778 = vpack.c.b16 %v2034, %v2026
    %v2779 = vpack.c.b16 %v2035, %v2027
    %v2780 = vpack.c.b16 %v2044, %v2036
    %v2781 = vpack.c.b16 %v2045, %v2037
    %v2782 = vpack.c.b16 %v2046, %v2038
    %v2783 = vpack.c.b16 %v2047, %v2039
    %v2784 = vpack.c.b16 %v2048, %v2040
    %v2785 = vpack.c.b16 %v2049, %v2041
    %v2786 = vpack.c.b16 %v2050, %v2042
    %v2787 = vpack.c.b16 %v2051, %v2043
    %v2788 = vpack.c.b16 %v2060, %v2052
    %v2789 = vpack.c.b16 %v2061, %v2053
    %v2790 = vpack.c.b16 %v2062, %v2054
    %v2791 = vpack.c.b16 %v2063, %v2055
    %v2792 = vpack.c.b16 %v2064, %v2056
    %v2793 = vpack.c.b16 %v2065, %v2057
    %v2794 = vpack.c.b16 %v2066, %v2058
    %v2795 = vpack.c.b16 %v2067, %v2059
    %v2796 = vpack.c.b16 %v2076, %v2068
    %v2797 = vpack.c.b16 %v2077, %v2069
    %v2798 = vpack.c.b16 %v2078, %v2070
    %v2799 = vpack.c.b16 %v2079, %v2071
    %v2800 = vpack.c.b16 %v2080, %v2072
    %v2801 = vpack.c.b16 %v2081, %v2073
    %v2802 = vpack.c.b16 %v2082, %v2074
    %v2803 = vpack.c.b16 %v2083, %v2075
    %v2804 = vpack.c.b16 %v2092, %v2084
    %v2805 = vpack.c.b16 %v2093, %v2085
    %v2806 = vpack.c.b16 %v2094, %v2086
    %v2807 = vpack.c.b16 %v2095, %v2087
    %v2808 = vpack.c.b16 %v2096, %v2088
    %v2809 = vpack.c.b16 %v2097, %v2089
    %v2810 = vpack.c.b16 %v2098, %v2090
    %v2811 = vpack.c.b16 %v2099, %v2091
    %v2812 = vpack.c.b16 %v2108, %v2100
    %v2813 = vpack.c.b16 %v2109, %v2101
    %v2814 = vpack.c.b16 %v2110, %v2102
    %v2815 = vpack.c.b16 %v2111, %v2103
    %v2816 = vpack.c.b16 %v2112, %v2104
    %v2817 = vpack.c.b16 %v2113, %v2105
    %v2818 = vpack.c.b16 %v2114, %v2106
    %v2819 = vpack.c.b16 %v2115, %v2107
    %v2820 = vpack.c.b16 %v2124, %v2116
    %v2821 = vpack.c.b16 %v2125, %v2117
    %v2822 = vpack.c.b16 %v2126, %v2118
    %v2823 = vpack.c.b16 %v2127, %v2119
    %v2824 = vpack.c.b16 %v2128, %v2120
    %v2825 = vpack.c.b16 %v2129, %v2121
    %v2826 = vpack.c.b16 %v2130, %v2122
    %v2827 = vpack.c.b16 %v2131, %v2123
    %v2828 = vpack.c.b16 %v2140, %v2132
    %v2829 = vpack.c.b16 %v2141, %v2133
    %v2830 = vpack.c.b16 %v2142, %v2134
    %v2831 = vpack.c.b16 %v2143, %v2135
    %v2832 = vpack.c.b16 %v2144, %v2136
    %v2833 = vpack.c.b16 %v2145, %v2137
    %v2834 = vpack.c.b16 %v2146, %v2138
    %v2835 = vpack.c.b16 %v2147, %v2139
    %v2836 = vpack.c.b16 %v2156, %v2148
    %v2837 = vpack.c.b16 %v2157, %v2149
    %v2838 = vpack.c.b16 %v2158, %v2150
    %v2839 = vpack.c.b16 %v2159, %v2151
    %v2840 = vpack.c.b16 %v2160, %v2152
    %v2841 = vpack.c.b16 %v2161, %v2153
    %v2842 = vpack.c.b16 %v2162, %v2154
    %v2843 = vpack.c.b16 %v2163, %v2155
    %v2844 = vpack.c.b16 %v2172, %v2164
    %v2845 = vpack.c.b16 %v2173, %v2165
    %v2846 = vpack.c.b16 %v2174, %v2166
    %v2847 = vpack.c.b16 %v2175, %v2167
    %v2848 = vpack.c.b16 %v2176, %v2168
    %v2849 = vpack.c.b16 %v2177, %v2169
    %v2850 = vpack.c.b16 %v2178, %v2170
    %v2851 = vpack.c.b16 %v2179, %v2171
    %v2852 = vpack.c.b16 %v2188, %v2180
    %v2853 = vpack.c.b16 %v2189, %v2181
    %v2854 = vpack.c.b16 %v2190, %v2182
    %v2855 = vpack.c.b16 %v2191, %v2183
    %v2856 = vpack.c.b16 %v2192, %v2184
    %v2857 = vpack.c.b16 %v2193, %v2185
    %v2858 = vpack.c.b16 %v2194, %v2186
    %v2859 = vpack.c.b16 %v2195, %v2187
    %v2860 = vpack.c.b16 %v2204, %v2196
    %v2861 = vpack.c.b16 %v2205, %v2197
    %v2862 = vpack.c.b16 %v2206, %v2198
    %v2863 = vpack.c.b16 %v2207, %v2199
    %v2864 = vpack.c.b16 %v2208, %v2200
    %v2865 = vpack.c.b16 %v2209, %v2201
    %v2866 = vpack.c.b16 %v2210, %v2202
    %v2867 = vpack.c.b16 %v2211, %v2203
    %v2868 = vpack.c.b16 %v2220, %v2212
    %v2869 = vpack.c.b16 %v2221, %v2213
    %v2870 = vpack.c.b16 %v2222, %v2214
    %v2871 = vpack.c.b16 %v2223, %v2215
    %v2872 = vpack.c.b16 %v2224, %v2216
    %v2873 = vpack.c.b16 %v2225, %v2217
    %v2874 = vpack.c.b16 %v2226, %v2218
    %v2875 = vpack.c.b16 %v2227, %v2219
    %v2876 = vpack.c.b16 %v2236, %v2228
    %v2877 = vpack.c.b16 %v2237, %v2229
    %v2878 = vpack.c.b16 %v2238, %v2230
    %v2879 = vpack.c.b16 %v2239, %v2231
    %v2880 = vpack.c.b16 %v2240, %v2232
    %v2881 = vpack.c.b16 %v2241, %v2233
    %v2882 = vpack.c.b16 %v2242, %v2234
    %v2883 = vpack.c.b16 %v2243, %v2235
    %v2884 = vpack.c.b16 %v2252, %v2244
    %v2885 = vpack.c.b16 %v2253, %v2245
    %v2886 = vpack.c.b16 %v2254, %v2246
    %v2887 = vpack.c.b16 %v2255, %v2247
    %v2888 = vpack.c.b16 %v2256, %v2248
    %v2889 = vpack.c.b16 %v2257, %v2249
    %v2890 = vpack.c.b16 %v2258, %v2250
    %v2891 = vpack.c.b16 %v2259, %v2251
    %v2892 = vpack.c.b16 %v2268, %v2260
    %v2893 = vpack.c.b16 %v2269, %v2261
    %v2894 = vpack.c.b16 %v2270, %v2262
    %v2895 = vpack.c.b16 %v2271, %v2263
    %v2896 = vpack.c.b16 %v2272, %v2264
    %v2897 = vpack.c.b16 %v2273, %v2265
    %v2898 = vpack.c.b16 %v2274, %v2266
    %v2899 = vpack.c.b16 %v2275, %v2267
    %v2900 = vpack.c.b16 %v2284, %v2276
    %v2901 = vpack.c.b16 %v2285, %v2277
    %v2902 = vpack.c.b16 %v2286, %v2278
    %v2903 = vpack.c.b16 %v2287, %v2279
    %v2904 = vpack.c.b16 %v2288, %v2280
    %v2905 = vpack.c.b16 %v2289, %v2281
    %v2906 = vpack.c.b16 %v2290, %v2282
    %v2907 = vpack.c.b16 %v2291, %v2283
    %v2908 = vpack.c.b16 %v2300, %v2292
    %v2909 = vpack.c.b16 %v2301, %v2293
    %v2910 = vpack.c.b16 %v2302, %v2294
    %v2911 = vpack.c.b16 %v2303, %v2295
    %v2912 = vpack.c.b16 %v2304, %v2296
    %v2913 = vpack.c.b16 %v2305, %v2297
    %v2914 = vpack.c.b16 %v2306, %v2298
    %v2915 = vpack.c.b16 %v2307, %v2299
    %v2916 = vpack.c.b16 %v2316, %v2308
    %v2917 = vpack.c.b16 %v2317, %v2309
    %v2918 = vpack.c.b16 %v2318, %v2310
    %v2919 = vpack.c.b16 %v2319, %v2311
    %v2920 = vpack.c.b16 %v2320, %v2312
    %v2921 = vpack.c.b16 %v2321, %v2313
    %v2922 = vpack.c.b16 %v2322, %v2314
    %v2923 = vpack.c.b16 %v2323, %v2315
    %v2924 = vpack.c.b16 %v2332, %v2324
    %v2925 = vpack.c.b16 %v2333, %v2325
    %v2926 = vpack.c.b16 %v2334, %v2326
    %v2927 = vpack.c.b16 %v2335, %v2327
    %v2928 = vpack.c.b16 %v2336, %v2328
    %v2929 = vpack.c.b16 %v2337, %v2329
    %v2930 = vpack.c.b16 %v2338, %v2330
    %v2931 = vpack.c.b16 %v2339, %v2331
    %v2932 = vpack.c.b16 %v2348, %v2340
    %v2933 = vpack.c.b16 %v2349, %v2341
    %v2934 = vpack.c.b16 %v2350, %v2342
    %v2935 = vpack.c.b16 %v2351, %v2343
    %v2936 = vpack.c.b16 %v2352, %v2344
    %v2937 = vpack.c.b16 %v2353, %v2345
    %v2938 = vpack.c.b16 %v2354, %v2346
    %v2939 = vpack.c.b16 %v2355, %v2347
    %v2940 = vpack.c.b16 %v2364, %v2356
    %v2941 = vpack.c.b16 %v2365, %v2357
    %v2942 = vpack.c.b16 %v2366, %v2358
    %v2943 = vpack.c.b16 %v2367, %v2359
    %v2944 = vpack.c.b16 %v2368, %v2360
    %v2945 = vpack.c.b16 %v2369, %v2361
    %v2946 = vpack.c.b16 %v2370, %v2362
    %v2947 = vpack.c.b16 %v2371, %v2363
    %v2948 = vpack.c.b16 %v2380, %v2372
    %v2949 = vpack.c.b16 %v2381, %v2373
    %v2950 = vpack.c.b16 %v2382, %v2374
    %v2951 = vpack.c.b16 %v2383, %v2375
    %v2952 = vpack.c.b16 %v2384, %v2376
    %v2953 = vpack.c.b16 %v2385, %v2377
    %v2954 = vpack.c.b16 %v2386, %v2378
    %v2955 = vpack.c.b16 %v2387, %v2379
    %v2956 = vpack.c.b16 %v2396, %v2388
    %v2957 = vpack.c.b16 %v2397, %v2389
    %v2958 = vpack.c.b16 %v2398, %v2390
    %v2959 = vpack.c.b16 %v2399, %v2391
    %v2960 = vpack.c.b16 %v2400, %v2392
    %v2961 = vpack.c.b16 %v2401, %v2393
    %v2962 = vpack.c.b16 %v2402, %v2394
    %v2963 = vpack.c.b16 %v2403, %v2395
    %v2964 = vpack.c.b16 %v2412, %v2404
    %v2965 = vpack.c.b16 %v2413, %v2405
    %v2966 = vpack.c.b16 %v2414, %v2406
    %v2967 = vpack.c.b16 %v2415, %v2407
    %v2968 = vpack.c.b16 %v2416, %v2408
    %v2969 = vpack.c.b16 %v2417, %v2409
    %v2970 = vpack.c.b16 %v2418, %v2410
    %v2971 = vpack.c.b16 %v2419, %v2411
    %v2972 = vpack.c.b16 %v2428, %v2420
    %v2973 = vpack.c.b16 %v2429, %v2421
    %v2974 = vpack.c.b16 %v2430, %v2422
    %v2975 = vpack.c.b16 %v2431, %v2423
    %v2976 = vpack.c.b16 %v2432, %v2424
    %v2977 = vpack.c.b16 %v2433, %v2425
    %v2978 = vpack.c.b16 %v2434, %v2426
    %v2979 = vpack.c.b16 %v2435, %v2427
    %v2980 = vpack.c.b16 %v2444, %v2436
    %v2981 = vpack.c.b16 %v2445, %v2437
    %v2982 = vpack.c.b16 %v2446, %v2438
    %v2983 = vpack.c.b16 %v2447, %v2439
    %v2984 = vpack.c.b16 %v2448, %v2440
    %v2985 = vpack.c.b16 %v2449, %v2441
    %v2986 = vpack.c.b16 %v2450, %v2442
    %v2987 = vpack.c.b16 %v2451, %v2443
    %v2988 = vpack.c.b16 %v2460, %v2452
    %v2989 = vpack.c.b16 %v2461, %v2453
    %v2990 = vpack.c.b16 %v2462, %v2454
    %v2991 = vpack.c.b16 %v2463, %v2455
    %v2992 = vpack.c.b16 %v2464, %v2456
    %v2993 = vpack.c.b16 %v2465, %v2457
    %v2994 = vpack.c.b16 %v2466, %v2458
    %v2995 = vpack.c.b16 %v2467, %v2459
    %v2996 = vpack.c.b16 %v2476, %v2468
    %v2997 = vpack.c.b16 %v2477, %v2469
    %v2998 = vpack.c.b16 %v2478, %v2470
    %v2999 = vpack.c.b16 %v2479, %v2471
    %v3000 = vpack.c.b16 %v2480, %v2472
    %v3001 = vpack.c.b16 %v2481, %v2473
    %v3002 = vpack.c.b16 %v2482, %v2474
    %v3003 = vpack.c.b16 %v2483, %v2475
    %v3004 = vpack.c.b16 %v2492, %v2484
    %v3005 = vpack.c.b16 %v2493, %v2485
    %v3006 = vpack.c.b16 %v2494, %v2486
    %v3007 = vpack.c.b16 %v2495, %v2487
    %v3008 = vpack.c.b16 %v2496, %v2488
    %v3009 = vpack.c.b16 %v2497, %v2489
    %v3010 = vpack.c.b16 %v2498, %v2490
    %v3011 = vpack.c.b16 %v2499, %v2491
    %v3012 = vpack.c.b16 %v2508, %v2500
    %v3013 = vpack.c.b16 %v2509, %v2501
    %v3014 = vpack.c.b16 %v2510, %v2502
    %v3015 = vpack.c.b16 %v2511, %v2503
    %v3016 = vpack.c.b16 %v2512, %v2504
    %v3017 = vpack.c.b16 %v2513, %v2505
    %v3018 = vpack.c.b16 %v2514, %v2506
    %v3019 = vpack.c.b16 %v2515, %v2507
    %v3020 = vpack.c.b16 %v2524, %v2516
    %v3021 = vpack.c.b16 %v2525, %v2517
    %v3022 = vpack.c.b16 %v2526, %v2518
    %v3023 = vpack.c.b16 %v2527, %v2519
    %v3024 = vpack.c.b16 %v2528, %v2520
    %v3025 = vpack.c.b16 %v2529, %v2521
    %v3026 = vpack.c.b16 %v2530, %v2522
    %v3027 = vpack.c.b16 %v2531, %v2523
    %v3028 = vpack.c.b16 %v2540, %v2532
    %v3029 = vpack.c.b16 %v2541, %v2533
    %v3030 = vpack.c.b16 %v2542, %v2534
    %v3031 = vpack.c.b16 %v2543, %v2535
    %v3032 = vpack.c.b16 %v2544, %v2536
    %v3033 = vpack.c.b16 %v2545, %v2537
    %v3034 = vpack.c.b16 %v2546, %v2538
    %v3035 = vpack.c.b16 %v2547, %v2539
    %v3036 = vpack.c.b16 %v2556, %v2548
    %v3037 = vpack.c.b16 %v2557, %v2549
    %v3038 = vpack.c.b16 %v2558, %v2550
    %v3039 = vpack.c.b16 %v2559, %v2551
    %v3040 = vpack.c.b16 %v2560, %v2552
    %v3041 = vpack.c.b16 %v2561, %v2553
    %v3042 = vpack.c.b16 %v2562, %v2554
    %v3043 = vpack.c.b16 %v2563, %v2555
    %v3044 = vpack.c.b16 %v2572, %v2564
    %v3045 = vpack.c.b16 %v2573, %v2565
    %v3046 = vpack.c.b16 %v2574, %v2566
    %v3047 = vpack.c.b16 %v2575, %v2567
    %v3048 = vpack.c.b16 %v2576, %v2568
    %v3049 = vpack.c.b16 %v2577, %v2569
    %v3050 = vpack.c.b16 %v2578, %v2570
    %v3051 = vpack.c.b16 %v2579, %v2571
    %v3052 = vpack.c.b16 %v2588, %v2580
    %v3053 = vpack.c.b16 %v2589, %v2581
    %v3054 = vpack.c.b16 %v2590, %v2582
    %v3055 = vpack.c.b16 %v2591, %v2583
    %v3056 = vpack.c.b16 %v2592, %v2584
    %v3057 = vpack.c.b16 %v2593, %v2585
    %v3058 = vpack.c.b16 %v2594, %v2586
    %v3059 = vpack.c.b16 %v2595, %v2587
    %v3060 = vpack.c.b16 %v2604, %v2596
    %v3061 = vpack.c.b16 %v2605, %v2597
    %v3062 = vpack.c.b16 %v2606, %v2598
    %v3063 = vpack.c.b16 %v2607, %v2599
    %v3064 = vpack.c.b16 %v2608, %v2600
    %v3065 = vpack.c.b16 %v2609, %v2601
    %v3066 = vpack.c.b16 %v2610, %v2602
    %v3067 = vpack.c.b16 %v2611, %v2603
    %v3068 = vpack.c.b16 %v2620, %v2612
    %v3069 = vpack.c.b16 %v2621, %v2613
    %v3070 = vpack.c.b16 %v2622, %v2614
    %v3071 = vpack.c.b16 %v2623, %v2615
    %v3072 = vpack.c.b16 %v2624, %v2616
    %v3073 = vpack.c.b16 %v2625, %v2617
    %v3074 = vpack.c.b16 %v2626, %v2618
    %v3075 = vpack.c.b16 %v2627, %v2619
    %v3076 = vpack.c.b16 %v2636, %v2628
    %v3077 = vpack.c.b16 %v2637, %v2629
    %v3078 = vpack.c.b16 %v2638, %v2630
    %v3079 = vpack.c.b16 %v2639, %v2631
    %v3080 = vpack.c.b16 %v2640, %v2632
    %v3081 = vpack.c.b16 %v2641, %v2633
    %v3082 = vpack.c.b16 %v2642, %v2634
    %v3083 = vpack.c.b16 %v2643, %v2635
    %v3084 = vpack.c.b16 %v2652, %v2644
    %v3085 = vpack.c.b16 %v2653, %v2645
    %v3086 = vpack.c.b16 %v2654, %v2646
    %v3087 = vpack.c.b16 %v2655, %v2647
    %v3088 = vpack.c.b16 %v2656, %v2648
    %v3089 = vpack.c.b16 %v2657, %v2649
    %v3090 = vpack.c.b16 %v2658, %v2650
    %v3091 = vpack.c.b16 %v2659, %v2651
    %v3092 = vpack.c.b16 %v2668, %v2660
    %v3093 = vpack.c.b16 %v2669, %v2661
    %v3094 = vpack.c.b16 %v2670, %v2662
    %v3095 = vpack.c.b16 %v2671, %v2663
    %v3096 = vpack.c.b16 %v2672, %v2664
    %v3097 = vpack.c.b16 %v2673, %v2665
    %v3098 = vpack.c.b16 %v2674, %v2666
    %v3099 = vpack.c.b16 %v2675, %v2667
    %v3100 = vpack.c.b16 %v2684, %v2676
    %v3101 = vpack.c.b16 %v2685, %v2677
    %v3102 = vpack.c.b16 %v2686, %v2678
    %v3103 = vpack.c.b16 %v2687, %v2679
    %v3104 = vpack.c.b16 %v2688, %v2680
    %v3105 = vpack.c.b16 %v2689, %v2681
    %v3106 = vpack.c.b16 %v2690, %v2682
    %v3107 = vpack.c.b16 %v2691, %v2683
    %v3108 = vpack.c.b16 %v2700, %v2692
    %v3109 = vpack.c.b16 %v2701, %v2693
    %v3110 = vpack.c.b16 %v2702, %v2694
    %v3111 = vpack.c.b16 %v2703, %v2695
    %v3112 = vpack.c.b16 %v2704, %v2696
    %v3113 = vpack.c.b16 %v2705, %v2697
    %v3114 = vpack.c.b16 %v2706, %v2698
    %v3115 = vpack.c.b16 %v2707, %v2699
    %v3116 = vpack.c.b16 %v2716, %v2708
    %v3117 = vpack.c.b16 %v2717, %v2709
    %v3118 = vpack.c.b16 %v2718, %v2710
    %v3119 = vpack.c.b16 %v2719, %v2711
    %v3120 = vpack.c.b16 %v2720, %v2712
    %v3121 = vpack.c.b16 %v2721, %v2713
    %v3122 = vpack.c.b16 %v2722, %v2714
    %v3123 = vpack.c.b16 %v2723, %v2715
    %v3124 = vpack.c.b16 %v2732, %v2724
    %v3125 = vpack.c.b16 %v2733, %v2725
    %v3126 = vpack.c.b16 %v2734, %v2726
    %v3127 = vpack.c.b16 %v2735, %v2727
    %v3128 = vpack.c.b16 %v2736, %v2728
    %v3129 = vpack.c.b16 %v2737, %v2729
    %v3130 = vpack.c.b16 %v2738, %v2730
    %v3131 = vpack.c.b16 %v2739, %v2731
    %vm3524 = vcmask 130048
    %v3526 = vsel %vm3524, %v1129, 0
    %3528 = vmatprep.subr.bf16.mxu0 %v2797
    %3529 = vmatpush1.bf16.msra.mxu0 %v2796
    %3530 = vmatprep.subr.bf16.mxu0 %v2789
    %3531 = vmatpush1.bf16.msra.mxu0 %v2788
    %3532 = vmatprep.subr.bf16.mxu0 %v2781
    %3533 = vmatpush1.bf16.msra.mxu0 %v2780
    %3534 = vmatprep.subr.bf16.mxu0 %v2773
    %3535 = vmatpush1.bf16.msra.mxu0 %v2772
    %3536 = vmatprep.subr.bf16.mxu0 %v2765
    %3537 = vmatpush1.bf16.msra.mxu0 %v2764
    %3538 = vmatprep.subr.bf16.mxu0 %v2757
    %3539 = vmatpush1.bf16.msra.mxu0 %v2756
    %3540 = vmatprep.subr.bf16.mxu0 %v2749
    %3541 = vmatpush1.bf16.msra.mxu0 %v2748
    %3542 = vmatprep.subr.bf16.mxu0 %v2741
    %3543 = vmatpush1.bf16.msra.mxu0 %v2740
    %3544 = vmatprep.subr.bf16.mxu0 %v2861
    %3545 = vmatpush2.bf16.msra.mxu0 %v2860
    %3546 = vmatprep.subr.bf16.mxu0 %v2853
    %3547 = vmatpush2.bf16.msra.mxu0 %v2852
    %3548 = vmatprep.subr.bf16.mxu0 %v2845
    %3549 = vmatpush2.bf16.msra.mxu0 %v2844
    %3550 = vmatprep.subr.bf16.mxu0 %v2837
    %3551 = vmatpush2.bf16.msra.mxu0 %v2836
    %3552 = vmatprep.subr.bf16.mxu0 %v2829
    %3553 = vmatpush2.bf16.msra.mxu0 %v2828
    %3554 = vmatprep.subr.bf16.mxu0 %v2821
    %3555 = vmatpush2.bf16.msra.mxu0 %v2820
    %3556 = vmatprep.subr.bf16.mxu0 %v2813
    %3557 = vmatpush2.bf16.msra.mxu0 %v2812
    %3558 = vmatprep.subr.bf16.mxu0 %v2805
    %3559 = vmatpush2.bf16.msra.mxu0 %v2804
    %3560 = vmatprep.mubr.bf16.mxu0 %v1124
    %3561 = vmatmul.mubr.bf16.gmra.mxu0 %v1123
    %v3562 = vpop.f32.mrf.mxu0
    %v3563 = vadd.f32 %v1527, %v3562
    %v3564 = vpop.f32.mrf.mxu0
    %v3565 = vadd.f32 %v1531, %v3564
    %v3566 = vpop.f32.mrf.mxu0
    %v3567 = vadd.f32 %v1527, %v3566
    %v3568 = vpop.f32.mrf.mxu0
    %v3569 = vadd.f32 %v1531, %v3568
    %3570 = vdwg.mxu0
    %3571 = vmatprep.subr.bf16.mxu0 %v2925
    %3572 = vmatpush1.bf16.msra.mxu0 %v2924
    %3573 = vmatprep.subr.bf16.mxu0 %v2917
    %3574 = vmatpush1.bf16.msra.mxu0 %v2916
    %3575 = vmatprep.subr.bf16.mxu0 %v2909
    %3576 = vmatpush1.bf16.msra.mxu0 %v2908
    %3577 = vmatprep.subr.bf16.mxu0 %v2901
    %3578 = vmatpush1.bf16.msra.mxu0 %v2900
    %3579 = vmatprep.subr.bf16.mxu0 %v2893
    %3580 = vmatpush1.bf16.msra.mxu0 %v2892
    %3581 = vmatprep.subr.bf16.mxu0 %v2885
    %3582 = vmatpush1.bf16.msra.mxu0 %v2884
    %3583 = vmatprep.subr.bf16.mxu0 %v2877
    %3584 = vmatpush1.bf16.msra.mxu0 %v2876
    %3585 = vmatprep.subr.bf16.mxu0 %v2869
    %3586 = vmatpush1.bf16.msra.mxu0 %v2868
    %3587 = vmatprep.subr.bf16.mxu0 %v2989
    %3588 = vmatpush2.bf16.msra.mxu0 %v2988
    %3589 = vmatprep.subr.bf16.mxu0 %v2981
    %3590 = vmatpush2.bf16.msra.mxu0 %v2980
    %3591 = vmatprep.subr.bf16.mxu0 %v2973
    %3592 = vmatpush2.bf16.msra.mxu0 %v2972
    %3593 = vmatprep.subr.bf16.mxu0 %v2965
    %3594 = vmatpush2.bf16.msra.mxu0 %v2964
    %3595 = vmatprep.subr.bf16.mxu0 %v2957
    %3596 = vmatpush2.bf16.msra.mxu0 %v2956
    %3597 = vmatprep.subr.bf16.mxu0 %v2949
    %3598 = vmatpush2.bf16.msra.mxu0 %v2948
    %3599 = vmatprep.subr.bf16.mxu0 %v2941
    %3600 = vmatpush2.bf16.msra.mxu0 %v2940
    %3601 = vmatprep.subr.bf16.mxu0 %v2933
    %3602 = vmatpush2.bf16.msra.mxu0 %v2932
    %3603 = vmatprep.mubr.bf16.mxu0 %v1126
    %3604 = vmatmul.mubr.bf16.gmra.mxu0 %v1125
    %v3605 = vpop.f32.mrf.mxu0
    %v3606 = vadd.f32 %v3563, %v3605
    %v3607 = vpop.f32.mrf.mxu0
    %v3608 = vadd.f32 %v3565, %v3607
    %v3609 = vpop.f32.mrf.mxu0
    %v3610 = vadd.f32 %v3567, %v3609
    %v3611 = vpop.f32.mrf.mxu0
    %v3612 = vadd.f32 %v3569, %v3611
    %3613 = vdwg.mxu0
    %3614 = vmatprep.subr.bf16.mxu0 %v3053
    %3615 = vmatpush1.bf16.msra.mxu0 %v3052
    %3616 = vmatprep.subr.bf16.mxu0 %v3045
    %3617 = vmatpush1.bf16.msra.mxu0 %v3044
    %3618 = vmatprep.subr.bf16.mxu0 %v3037
    %3619 = vmatpush1.bf16.msra.mxu0 %v3036
    %3620 = vmatprep.subr.bf16.mxu0 %v3029
    %3621 = vmatpush1.bf16.msra.mxu0 %v3028
    %3622 = vmatprep.subr.bf16.mxu0 %v3021
    %3623 = vmatpush1.bf16.msra.mxu0 %v3020
    %3624 = vmatprep.subr.bf16.mxu0 %v3013
    %3625 = vmatpush1.bf16.msra.mxu0 %v3012
    %3626 = vmatprep.subr.bf16.mxu0 %v3005
    %3627 = vmatpush1.bf16.msra.mxu0 %v3004
    %3628 = vmatprep.subr.bf16.mxu0 %v2997
    %3629 = vmatpush1.bf16.msra.mxu0 %v2996
    %3630 = vmatprep.subr.bf16.mxu0 %v3117
    %3631 = vmatpush2.bf16.msra.mxu0 %v3116
    %3632 = vmatprep.subr.bf16.mxu0 %v3109
    %3633 = vmatpush2.bf16.msra.mxu0 %v3108
    %3634 = vmatprep.subr.bf16.mxu0 %v3101
    %3635 = vmatpush2.bf16.msra.mxu0 %v3100
    %3636 = vmatprep.subr.bf16.mxu0 %v3093
    %3637 = vmatpush2.bf16.msra.mxu0 %v3092
    %3638 = vmatprep.subr.bf16.mxu0 %v3085
    %3639 = vmatpush2.bf16.msra.mxu0 %v3084
    %3640 = vmatprep.subr.bf16.mxu0 %v3077
    %3641 = vmatpush2.bf16.msra.mxu0 %v3076
    %3642 = vmatprep.subr.bf16.mxu0 %v3069
    %3643 = vmatpush2.bf16.msra.mxu0 %v3068
    %3644 = vmatprep.subr.bf16.mxu0 %v3061
    %3645 = vmatpush2.bf16.msra.mxu0 %v3060
    %3646 = vmatprep.mubr.bf16.mxu0 %v1128
    %3647 = vmatmul.mubr.bf16.gmra.mxu0 %v1127
    %v3648 = vpop.f32.mrf.mxu0
    %v3649 = vadd.f32 %v3606, %v3648
    %v3650 = vpop.f32.mrf.mxu0
    %v3651 = vadd.f32 %v3608, %v3650
    %v3652 = vpop.f32.mrf.mxu0
    %v3653 = vadd.f32 %v3610, %v3652
    %v3654 = vpop.f32.mrf.mxu0
    %v3655 = vadd.f32 %v3612, %v3654
    %3656 = vdwg.mxu0
    %3657 = vmatprep.subr.bf16.mxu0 0
    %3658 = vmatpush1.bf16.msra.mxu0 0
    %3659 = vmatprep.subr.bf16.mxu0 0
    %3660 = vmatpush1.bf16.msra.mxu0 0
    %3661 = vmatprep.subr.bf16.mxu0 0
    %3662 = vmatpush1.bf16.msra.mxu0 0
    %3663 = vmatprep.subr.bf16.mxu0 0
    %3664 = vmatpush1.bf16.msra.mxu0 0
    %3665 = vmatprep.subr.bf16.mxu0 0
    %3666 = vmatpush1.bf16.msra.mxu0 0
    %3667 = vmatprep.subr.bf16.mxu0 0
    %3668 = vmatpush1.bf16.msra.mxu0 0
    %3669 = vmatprep.subr.bf16.mxu0 0
    %3670 = vmatpush1.bf16.msra.mxu0 0
    %3671 = vmatprep.subr.bf16.mxu0 %v3125
    %3672 = vmatpush1.bf16.msra.mxu0 %v3124
    %3673 = vmatprep.subr.bf16.mxu0 0
    %3674 = vmatpush2.bf16.msra.mxu0 0
    %3675 = vmatprep.subr.bf16.mxu0 0
    %3676 = vmatpush2.bf16.msra.mxu0 0
    %3677 = vmatprep.subr.bf16.mxu0 0
    %3678 = vmatpush2.bf16.msra.mxu0 0
    %3679 = vmatprep.subr.bf16.mxu0 0
    %3680 = vmatpush2.bf16.msra.mxu0 0
    %3681 = vmatprep.subr.bf16.mxu0 0
    %3682 = vmatpush2.bf16.msra.mxu0 0
    %3683 = vmatprep.subr.bf16.mxu0 0
    %3684 = vmatpush2.bf16.msra.mxu0 0
    %3685 = vmatprep.subr.bf16.mxu0 0
    %3686 = vmatpush2.bf16.msra.mxu0 0
    %3687 = vmatprep.subr.bf16.mxu0 0
    %3688 = vmatpush2.bf16.msra.mxu0 0
    %3689 = vmatprep.mubr.bf16.mxu0 0
    %3690 = vmatmul.mubr.bf16.gmra.mxu0 %v3526
    %v3691 = vpop.f32.mrf.mxu0
    %v3692 = vadd.f32 %v3649, %v3691
    %v3693 = vpop.f32.mrf.mxu0
    %v3694 = vadd.f32 %v3651, %v3693
    %v3695 = vpop.f32.mrf.mxu0
    %v3696 = vadd.f32 %v3653, %v3695
    %v3697 = vpop.f32.mrf.mxu0
    %v3698 = vadd.f32 %v3655, %v3697
    %3699 = vdwg.mxu0
    %3700 = vmatprep.subr.bf16.mxu0 %v2799
    %3701 = vmatpush1.bf16.msra.mxu0 %v2798
    %3702 = vmatprep.subr.bf16.mxu0 %v2791
    %3703 = vmatpush1.bf16.msra.mxu0 %v2790
    %3704 = vmatprep.subr.bf16.mxu0 %v2783
    %3705 = vmatpush1.bf16.msra.mxu0 %v2782
    %3706 = vmatprep.subr.bf16.mxu0 %v2775
    %3707 = vmatpush1.bf16.msra.mxu0 %v2774
    %3708 = vmatprep.subr.bf16.mxu0 %v2767
    %3709 = vmatpush1.bf16.msra.mxu0 %v2766
    %3710 = vmatprep.subr.bf16.mxu0 %v2759
    %3711 = vmatpush1.bf16.msra.mxu0 %v2758
    %3712 = vmatprep.subr.bf16.mxu0 %v2751
    %3713 = vmatpush1.bf16.msra.mxu0 %v2750
    %3714 = vmatprep.subr.bf16.mxu0 %v2743
    %3715 = vmatpush1.bf16.msra.mxu0 %v2742
    %3716 = vmatprep.subr.bf16.mxu0 %v2863
    %3717 = vmatpush2.bf16.msra.mxu0 %v2862
    %3718 = vmatprep.subr.bf16.mxu0 %v2855
    %3719 = vmatpush2.bf16.msra.mxu0 %v2854
    %3720 = vmatprep.subr.bf16.mxu0 %v2847
    %3721 = vmatpush2.bf16.msra.mxu0 %v2846
    %3722 = vmatprep.subr.bf16.mxu0 %v2839
    %3723 = vmatpush2.bf16.msra.mxu0 %v2838
    %3724 = vmatprep.subr.bf16.mxu0 %v2831
    %3725 = vmatpush2.bf16.msra.mxu0 %v2830
    %3726 = vmatprep.subr.bf16.mxu0 %v2823
    %3727 = vmatpush2.bf16.msra.mxu0 %v2822
    %3728 = vmatprep.subr.bf16.mxu0 %v2815
    %3729 = vmatpush2.bf16.msra.mxu0 %v2814
    %3730 = vmatprep.subr.bf16.mxu0 %v2807
    %3731 = vmatpush2.bf16.msra.mxu0 %v2806
    %3732 = vmatprep.mubr.bf16.mxu0 %v1124
    %3733 = vmatmul.mubr.bf16.gmra.mxu0 %v1123
    %v3734 = vpop.f32.mrf.mxu0
    %v3735 = vadd.f32 %v1535, %v3734
    %v3736 = vpop.f32.mrf.mxu0
    %v3737 = vadd.f32 %v1539, %v3736
    %v3738 = vpop.f32.mrf.mxu0
    %v3739 = vadd.f32 %v1535, %v3738
    %v3740 = vpop.f32.mrf.mxu0
    %v3741 = vadd.f32 %v1539, %v3740
    %3742 = vdwg.mxu0
    %3743 = vmatprep.subr.bf16.mxu0 %v2927
    %3744 = vmatpush1.bf16.msra.mxu0 %v2926
    %3745 = vmatprep.subr.bf16.mxu0 %v2919
    %3746 = vmatpush1.bf16.msra.mxu0 %v2918
    %3747 = vmatprep.subr.bf16.mxu0 %v2911
    %3748 = vmatpush1.bf16.msra.mxu0 %v2910
    %3749 = vmatprep.subr.bf16.mxu0 %v2903
    %3750 = vmatpush1.bf16.msra.mxu0 %v2902
    %3751 = vmatprep.subr.bf16.mxu0 %v2895
    %3752 = vmatpush1.bf16.msra.mxu0 %v2894
    %3753 = vmatprep.subr.bf16.mxu0 %v2887
    %3754 = vmatpush1.bf16.msra.mxu0 %v2886
    %3755 = vmatprep.subr.bf16.mxu0 %v2879
    %3756 = vmatpush1.bf16.msra.mxu0 %v2878
    %3757 = vmatprep.subr.bf16.mxu0 %v2871
    %3758 = vmatpush1.bf16.msra.mxu0 %v2870
    %3759 = vmatprep.subr.bf16.mxu0 %v2991
    %3760 = vmatpush2.bf16.msra.mxu0 %v2990
    %3761 = vmatprep.subr.bf16.mxu0 %v2983
    %3762 = vmatpush2.bf16.msra.mxu0 %v2982
    %3763 = vmatprep.subr.bf16.mxu0 %v2975
    %3764 = vmatpush2.bf16.msra.mxu0 %v2974
    %3765 = vmatprep.subr.bf16.mxu0 %v2967
    %3766 = vmatpush2.bf16.msra.mxu0 %v2966
    %3767 = vmatprep.subr.bf16.mxu0 %v2959
    %3768 = vmatpush2.bf16.msra.mxu0 %v2958
    %3769 = vmatprep.subr.bf16.mxu0 %v2951
    %3770 = vmatpush2.bf16.msra.mxu0 %v2950
    %3771 = vmatprep.subr.bf16.mxu0 %v2943
    %3772 = vmatpush2.bf16.msra.mxu0 %v2942
    %3773 = vmatprep.subr.bf16.mxu0 %v2935
    %3774 = vmatpush2.bf16.msra.mxu0 %v2934
    %3775 = vmatprep.mubr.bf16.mxu0 %v1126
    %3776 = vmatmul.mubr.bf16.gmra.mxu0 %v1125
    %v3777 = vpop.f32.mrf.mxu0
    %v3778 = vadd.f32 %v3735, %v3777
    %v3779 = vpop.f32.mrf.mxu0
    %v3780 = vadd.f32 %v3737, %v3779
    %v3781 = vpop.f32.mrf.mxu0
    %v3782 = vadd.f32 %v3739, %v3781
    %v3783 = vpop.f32.mrf.mxu0
    %v3784 = vadd.f32 %v3741, %v3783
    %3785 = vdwg.mxu0
    %3786 = vmatprep.subr.bf16.mxu0 %v3055
    %3787 = vmatpush1.bf16.msra.mxu0 %v3054
    %3788 = vmatprep.subr.bf16.mxu0 %v3047
    %3789 = vmatpush1.bf16.msra.mxu0 %v3046
    %3790 = vmatprep.subr.bf16.mxu0 %v3039
    %3791 = vmatpush1.bf16.msra.mxu0 %v3038
    %3792 = vmatprep.subr.bf16.mxu0 %v3031
    %3793 = vmatpush1.bf16.msra.mxu0 %v3030
    %3794 = vmatprep.subr.bf16.mxu0 %v3023
    %3795 = vmatpush1.bf16.msra.mxu0 %v3022
    %3796 = vmatprep.subr.bf16.mxu0 %v3015
    %3797 = vmatpush1.bf16.msra.mxu0 %v3014
    %3798 = vmatprep.subr.bf16.mxu0 %v3007
    %3799 = vmatpush1.bf16.msra.mxu0 %v3006
    %3800 = vmatprep.subr.bf16.mxu0 %v2999
    %3801 = vmatpush1.bf16.msra.mxu0 %v2998
    %3802 = vmatprep.subr.bf16.mxu0 %v3119
    %3803 = vmatpush2.bf16.msra.mxu0 %v3118
    %3804 = vmatprep.subr.bf16.mxu0 %v3111
    %3805 = vmatpush2.bf16.msra.mxu0 %v3110
    %3806 = vmatprep.subr.bf16.mxu0 %v3103
    %3807 = vmatpush2.bf16.msra.mxu0 %v3102
    %3808 = vmatprep.subr.bf16.mxu0 %v3095
    %3809 = vmatpush2.bf16.msra.mxu0 %v3094
    %3810 = vmatprep.subr.bf16.mxu0 %v3087
    %3811 = vmatpush2.bf16.msra.mxu0 %v3086
    %3812 = vmatprep.subr.bf16.mxu0 %v3079
    %3813 = vmatpush2.bf16.msra.mxu0 %v3078
    %3814 = vmatprep.subr.bf16.mxu0 %v3071
    %3815 = vmatpush2.bf16.msra.mxu0 %v3070
    %3816 = vmatprep.subr.bf16.mxu0 %v3063
    %3817 = vmatpush2.bf16.msra.mxu0 %v3062
    %3818 = vmatprep.mubr.bf16.mxu0 %v1128
    %3819 = vmatmul.mubr.bf16.gmra.mxu0 %v1127
    %v3820 = vpop.f32.mrf.mxu0
    %v3821 = vadd.f32 %v3778, %v3820
    %v3822 = vpop.f32.mrf.mxu0
    %v3823 = vadd.f32 %v3780, %v3822
    %v3824 = vpop.f32.mrf.mxu0
    %v3825 = vadd.f32 %v3782, %v3824
    %v3826 = vpop.f32.mrf.mxu0
    %v3827 = vadd.f32 %v3784, %v3826
    %3828 = vdwg.mxu0
    %3829 = vmatprep.subr.bf16.mxu0 0
    %3830 = vmatpush1.bf16.msra.mxu0 0
    %3831 = vmatprep.subr.bf16.mxu0 0
    %3832 = vmatpush1.bf16.msra.mxu0 0
    %3833 = vmatprep.subr.bf16.mxu0 0
    %3834 = vmatpush1.bf16.msra.mxu0 0
    %3835 = vmatprep.subr.bf16.mxu0 0
    %3836 = vmatpush1.bf16.msra.mxu0 0
    %3837 = vmatprep.subr.bf16.mxu0 0
    %3838 = vmatpush1.bf16.msra.mxu0 0
    %3839 = vmatprep.subr.bf16.mxu0 0
    %3840 = vmatpush1.bf16.msra.mxu0 0
    %3841 = vmatprep.subr.bf16.mxu0 0
    %3842 = vmatpush1.bf16.msra.mxu0 0
    %3843 = vmatprep.subr.bf16.mxu0 %v3127
    %3844 = vmatpush1.bf16.msra.mxu0 %v3126
    %3845 = vmatprep.subr.bf16.mxu0 0
    %3846 = vmatpush2.bf16.msra.mxu0 0
    %3847 = vmatprep.subr.bf16.mxu0 0
    %3848 = vmatpush2.bf16.msra.mxu0 0
    %3849 = vmatprep.subr.bf16.mxu0 0
    %3850 = vmatpush2.bf16.msra.mxu0 0
    %3851 = vmatprep.subr.bf16.mxu0 0
    %3852 = vmatpush2.bf16.msra.mxu0 0
    %3853 = vmatprep.subr.bf16.mxu0 0
    %3854 = vmatpush2.bf16.msra.mxu0 0
    %3855 = vmatprep.subr.bf16.mxu0 0
    %3856 = vmatpush2.bf16.msra.mxu0 0
    %3857 = vmatprep.subr.bf16.mxu0 0
    %3858 = vmatpush2.bf16.msra.mxu0 0
    %3859 = vmatprep.subr.bf16.mxu0 0
    %3860 = vmatpush2.bf16.msra.mxu0 0
    %3861 = vmatprep.mubr.bf16.mxu0 0
    %3862 = vmatmul.mubr.bf16.gmra.mxu0 %v3526
    %v3863 = vpop.f32.mrf.mxu0
    %v3864 = vadd.f32 %v3821, %v3863
    %v3865 = vpop.f32.mrf.mxu0
    %v3866 = vadd.f32 %v3823, %v3865
    %v3867 = vpop.f32.mrf.mxu0
    %v3868 = vadd.f32 %v3825, %v3867
    %v3869 = vpop.f32.mrf.mxu0
    %v3870 = vadd.f32 %v3827, %v3869
    %3871 = vdwg.mxu0
    %3872 = vmatprep.subr.bf16.mxu0 %v2801
    %3873 = vmatpush1.bf16.msra.mxu0 %v2800
    %3874 = vmatprep.subr.bf16.mxu0 %v2793
    %3875 = vmatpush1.bf16.msra.mxu0 %v2792
    %3876 = vmatprep.subr.bf16.mxu0 %v2785
    %3877 = vmatpush1.bf16.msra.mxu0 %v2784
    %3878 = vmatprep.subr.bf16.mxu0 %v2777
    %3879 = vmatpush1.bf16.msra.mxu0 %v2776
    %3880 = vmatprep.subr.bf16.mxu0 %v2769
    %3881 = vmatpush1.bf16.msra.mxu0 %v2768
    %3882 = vmatprep.subr.bf16.mxu0 %v2761
    %3883 = vmatpush1.bf16.msra.mxu0 %v2760
    %3884 = vmatprep.subr.bf16.mxu0 %v2753
    %3885 = vmatpush1.bf16.msra.mxu0 %v2752
    %3886 = vmatprep.subr.bf16.mxu0 %v2745
    %3887 = vmatpush1.bf16.msra.mxu0 %v2744
    %3888 = vmatprep.subr.bf16.mxu0 %v2865
    %3889 = vmatpush2.bf16.msra.mxu0 %v2864
    %3890 = vmatprep.subr.bf16.mxu0 %v2857
    %3891 = vmatpush2.bf16.msra.mxu0 %v2856
    %3892 = vmatprep.subr.bf16.mxu0 %v2849
    %3893 = vmatpush2.bf16.msra.mxu0 %v2848
    %3894 = vmatprep.subr.bf16.mxu0 %v2841
    %3895 = vmatpush2.bf16.msra.mxu0 %v2840
    %3896 = vmatprep.subr.bf16.mxu0 %v2833
    %3897 = vmatpush2.bf16.msra.mxu0 %v2832
    %3898 = vmatprep.subr.bf16.mxu0 %v2825
    %3899 = vmatpush2.bf16.msra.mxu0 %v2824
    %3900 = vmatprep.subr.bf16.mxu0 %v2817
    %3901 = vmatpush2.bf16.msra.mxu0 %v2816
    %3902 = vmatprep.subr.bf16.mxu0 %v2809
    %3903 = vmatpush2.bf16.msra.mxu0 %v2808
    %3904 = vmatprep.mubr.bf16.mxu0 %v1124
    %3905 = vmatmul.mubr.bf16.gmra.mxu0 %v1123
    %v3906 = vpop.f32.mrf.mxu0
    %v3907 = vadd.f32 %v1543, %v3906
    %v3908 = vpop.f32.mrf.mxu0
    %v3909 = vadd.f32 %v1547, %v3908
    %v3910 = vpop.f32.mrf.mxu0
    %v3911 = vadd.f32 %v1543, %v3910
    %v3912 = vpop.f32.mrf.mxu0
    %v3913 = vadd.f32 %v1547, %v3912
    %3914 = vdwg.mxu0
    %3915 = vmatprep.subr.bf16.mxu0 %v2929
    %3916 = vmatpush1.bf16.msra.mxu0 %v2928
    %3917 = vmatprep.subr.bf16.mxu0 %v2921
    %3918 = vmatpush1.bf16.msra.mxu0 %v2920
    %3919 = vmatprep.subr.bf16.mxu0 %v2913
    %3920 = vmatpush1.bf16.msra.mxu0 %v2912
    %3921 = vmatprep.subr.bf16.mxu0 %v2905
    %3922 = vmatpush1.bf16.msra.mxu0 %v2904
    %3923 = vmatprep.subr.bf16.mxu0 %v2897
    %3924 = vmatpush1.bf16.msra.mxu0 %v2896
    %3925 = vmatprep.subr.bf16.mxu0 %v2889
    %3926 = vmatpush1.bf16.msra.mxu0 %v2888
    %3927 = vmatprep.subr.bf16.mxu0 %v2881
    %3928 = vmatpush1.bf16.msra.mxu0 %v2880
    %3929 = vmatprep.subr.bf16.mxu0 %v2873
    %3930 = vmatpush1.bf16.msra.mxu0 %v2872
    %3931 = vmatprep.subr.bf16.mxu0 %v2993
    %3932 = vmatpush2.bf16.msra.mxu0 %v2992
    %3933 = vmatprep.subr.bf16.mxu0 %v2985
    %3934 = vmatpush2.bf16.msra.mxu0 %v2984
    %3935 = vmatprep.subr.bf16.mxu0 %v2977
    %3936 = vmatpush2.bf16.msra.mxu0 %v2976
    %3937 = vmatprep.subr.bf16.mxu0 %v2969
    %3938 = vmatpush2.bf16.msra.mxu0 %v2968
    %3939 = vmatprep.subr.bf16.mxu0 %v2961
    %3940 = vmatpush2.bf16.msra.mxu0 %v2960
    %3941 = vmatprep.subr.bf16.mxu0 %v2953
    %3942 = vmatpush2.bf16.msra.mxu0 %v2952
    %3943 = vmatprep.subr.bf16.mxu0 %v2945
    %3944 = vmatpush2.bf16.msra.mxu0 %v2944
    %3945 = vmatprep.subr.bf16.mxu0 %v2937
    %3946 = vmatpush2.bf16.msra.mxu0 %v2936
    %3947 = vmatprep.mubr.bf16.mxu0 %v1126
    %3948 = vmatmul.mubr.bf16.gmra.mxu0 %v1125
    %v3949 = vpop.f32.mrf.mxu0
    %v3950 = vadd.f32 %v3907, %v3949
    %v3951 = vpop.f32.mrf.mxu0
    %v3952 = vadd.f32 %v3909, %v3951
    %v3953 = vpop.f32.mrf.mxu0
    %v3954 = vadd.f32 %v3911, %v3953
    %v3955 = vpop.f32.mrf.mxu0
    %v3956 = vadd.f32 %v3913, %v3955
    %3957 = vdwg.mxu0
    %3958 = vmatprep.subr.bf16.mxu0 %v3057
    %3959 = vmatpush1.bf16.msra.mxu0 %v3056
    %3960 = vmatprep.subr.bf16.mxu0 %v3049
    %3961 = vmatpush1.bf16.msra.mxu0 %v3048
    %3962 = vmatprep.subr.bf16.mxu0 %v3041
    %3963 = vmatpush1.bf16.msra.mxu0 %v3040
    %3964 = vmatprep.subr.bf16.mxu0 %v3033
    %3965 = vmatpush1.bf16.msra.mxu0 %v3032
    %3966 = vmatprep.subr.bf16.mxu0 %v3025
    %3967 = vmatpush1.bf16.msra.mxu0 %v3024
    %3968 = vmatprep.subr.bf16.mxu0 %v3017
    %3969 = vmatpush1.bf16.msra.mxu0 %v3016
    %3970 = vmatprep.subr.bf16.mxu0 %v3009
    %3971 = vmatpush1.bf16.msra.mxu0 %v3008
    %3972 = vmatprep.subr.bf16.mxu0 %v3001
    %3973 = vmatpush1.bf16.msra.mxu0 %v3000
    %3974 = vmatprep.subr.bf16.mxu0 %v3121
    %3975 = vmatpush2.bf16.msra.mxu0 %v3120
    %3976 = vmatprep.subr.bf16.mxu0 %v3113
    %3977 = vmatpush2.bf16.msra.mxu0 %v3112
    %3978 = vmatprep.subr.bf16.mxu0 %v3105
    %3979 = vmatpush2.bf16.msra.mxu0 %v3104
    %3980 = vmatprep.subr.bf16.mxu0 %v3097
    %3981 = vmatpush2.bf16.msra.mxu0 %v3096
    %3982 = vmatprep.subr.bf16.mxu0 %v3089
    %3983 = vmatpush2.bf16.msra.mxu0 %v3088
    %3984 = vmatprep.subr.bf16.mxu0 %v3081
    %3985 = vmatpush2.bf16.msra.mxu0 %v3080
    %3986 = vmatprep.subr.bf16.mxu0 %v3073
    %3987 = vmatpush2.bf16.msra.mxu0 %v3072
    %3988 = vmatprep.subr.bf16.mxu0 %v3065
    %3989 = vmatpush2.bf16.msra.mxu0 %v3064
    %3990 = vmatprep.mubr.bf16.mxu0 %v1128
    %3991 = vmatmul.mubr.bf16.gmra.mxu0 %v1127
    %v3992 = vpop.f32.mrf.mxu0
    %v3993 = vadd.f32 %v3950, %v3992
    %v3994 = vpop.f32.mrf.mxu0
    %v3995 = vadd.f32 %v3952, %v3994
    %v3996 = vpop.f32.mrf.mxu0
    %v3997 = vadd.f32 %v3954, %v3996
    %v3998 = vpop.f32.mrf.mxu0
    %v3999 = vadd.f32 %v3956, %v3998
    %4000 = vdwg.mxu0
    %4001 = vmatprep.subr.bf16.mxu0 0
    %4002 = vmatpush1.bf16.msra.mxu0 0
    %4003 = vmatprep.subr.bf16.mxu0 0
    %4004 = vmatpush1.bf16.msra.mxu0 0
    %4005 = vmatprep.subr.bf16.mxu0 0
    %4006 = vmatpush1.bf16.msra.mxu0 0
    %4007 = vmatprep.subr.bf16.mxu0 0
    %4008 = vmatpush1.bf16.msra.mxu0 0
    %4009 = vmatprep.subr.bf16.mxu0 0
    %4010 = vmatpush1.bf16.msra.mxu0 0
    %4011 = vmatprep.subr.bf16.mxu0 0
    %4012 = vmatpush1.bf16.msra.mxu0 0
    %4013 = vmatprep.subr.bf16.mxu0 0
    %4014 = vmatpush1.bf16.msra.mxu0 0
    %4015 = vmatprep.subr.bf16.mxu0 %v3129
    %4016 = vmatpush1.bf16.msra.mxu0 %v3128
    %4017 = vmatprep.subr.bf16.mxu0 0
    %4018 = vmatpush2.bf16.msra.mxu0 0
    %4019 = vmatprep.subr.bf16.mxu0 0
    %4020 = vmatpush2.bf16.msra.mxu0 0
    %4021 = vmatprep.subr.bf16.mxu0 0
    %4022 = vmatpush2.bf16.msra.mxu0 0
    %4023 = vmatprep.subr.bf16.mxu0 0
    %4024 = vmatpush2.bf16.msra.mxu0 0
    %4025 = vmatprep.subr.bf16.mxu0 0
    %4026 = vmatpush2.bf16.msra.mxu0 0
    %4027 = vmatprep.subr.bf16.mxu0 0
    %4028 = vmatpush2.bf16.msra.mxu0 0
    %4029 = vmatprep.subr.bf16.mxu0 0
    %4030 = vmatpush2.bf16.msra.mxu0 0
    %4031 = vmatprep.subr.bf16.mxu0 0
    %4032 = vmatpush2.bf16.msra.mxu0 0
    %4033 = vmatprep.mubr.bf16.mxu0 0
    %4034 = vmatmul.mubr.bf16.gmra.mxu0 %v3526
    %v4035 = vpop.f32.mrf.mxu0
    %v4036 = vadd.f32 %v3993, %v4035
    %v4037 = vpop.f32.mrf.mxu0
    %v4038 = vadd.f32 %v3995, %v4037
    %v4039 = vpop.f32.mrf.mxu0
    %v4040 = vadd.f32 %v3997, %v4039
    %v4041 = vpop.f32.mrf.mxu0
    %v4042 = vadd.f32 %v3999, %v4041
    %4043 = vdwg.mxu0
    %4044 = vmatprep.subr.bf16.mxu0 %v2803
    %4045 = vmatpush1.bf16.msra.mxu0 %v2802
    %4046 = vmatprep.subr.bf16.mxu0 %v2795
    %4047 = vmatpush1.bf16.msra.mxu0 %v2794
    %4048 = vmatprep.subr.bf16.mxu0 %v2787
    %4049 = vmatpush1.bf16.msra.mxu0 %v2786
    %4050 = vmatprep.subr.bf16.mxu0 %v2779
    %4051 = vmatpush1.bf16.msra.mxu0 %v2778
    %4052 = vmatprep.subr.bf16.mxu0 %v2771
    %4053 = vmatpush1.bf16.msra.mxu0 %v2770
    %4054 = vmatprep.subr.bf16.mxu0 %v2763
    %4055 = vmatpush1.bf16.msra.mxu0 %v2762
    %4056 = vmatprep.subr.bf16.mxu0 %v2755
    %4057 = vmatpush1.bf16.msra.mxu0 %v2754
    %4058 = vmatprep.subr.bf16.mxu0 %v2747
    %4059 = vmatpush1.bf16.msra.mxu0 %v2746
    %4060 = vmatprep.subr.bf16.mxu0 %v2867
    %4061 = vmatpush2.bf16.msra.mxu0 %v2866
    %4062 = vmatprep.subr.bf16.mxu0 %v2859
    %4063 = vmatpush2.bf16.msra.mxu0 %v2858
    %4064 = vmatprep.subr.bf16.mxu0 %v2851
    %4065 = vmatpush2.bf16.msra.mxu0 %v2850
    %4066 = vmatprep.subr.bf16.mxu0 %v2843
    %4067 = vmatpush2.bf16.msra.mxu0 %v2842
    %4068 = vmatprep.subr.bf16.mxu0 %v2835
    %4069 = vmatpush2.bf16.msra.mxu0 %v2834
    %4070 = vmatprep.subr.bf16.mxu0 %v2827
    %4071 = vmatpush2.bf16.msra.mxu0 %v2826
    %4072 = vmatprep.subr.bf16.mxu0 %v2819
    %4073 = vmatpush2.bf16.msra.mxu0 %v2818
    %4074 = vmatprep.subr.bf16.mxu0 %v2811
    %4075 = vmatpush2.bf16.msra.mxu0 %v2810
    %4076 = vmatprep.mubr.bf16.mxu0 %v1124
    %4077 = vmatmul.mubr.bf16.gmra.mxu0 %v1123
    %v4078 = vpop.f32.mrf.mxu0
    %v4079 = vadd.f32 %v1551, %v4078
    %v4080 = vpop.f32.mrf.mxu0
    %v4081 = vadd.f32 %v1555, %v4080
    %v4082 = vpop.f32.mrf.mxu0
    %v4083 = vadd.f32 %v1551, %v4082
    %v4084 = vpop.f32.mrf.mxu0
    %v4085 = vadd.f32 %v1555, %v4084
    %4086 = vdwg.mxu0
    %4087 = vmatprep.subr.bf16.mxu0 %v2931
    %4088 = vmatpush1.bf16.msra.mxu0 %v2930
    %4089 = vmatprep.subr.bf16.mxu0 %v2923
    %4090 = vmatpush1.bf16.msra.mxu0 %v2922
    %4091 = vmatprep.subr.bf16.mxu0 %v2915
    %4092 = vmatpush1.bf16.msra.mxu0 %v2914
    %4093 = vmatprep.subr.bf16.mxu0 %v2907
    %4094 = vmatpush1.bf16.msra.mxu0 %v2906
    %4095 = vmatprep.subr.bf16.mxu0 %v2899
    %4096 = vmatpush1.bf16.msra.mxu0 %v2898
    %4097 = vmatprep.subr.bf16.mxu0 %v2891
    %4098 = vmatpush1.bf16.msra.mxu0 %v2890
    %4099 = vmatprep.subr.bf16.mxu0 %v2883
    %4100 = vmatpush1.bf16.msra.mxu0 %v2882
    %4101 = vmatprep.subr.bf16.mxu0 %v2875
    %4102 = vmatpush1.bf16.msra.mxu0 %v2874
    %4103 = vmatprep.subr.bf16.mxu0 %v2995
    %4104 = vmatpush2.bf16.msra.mxu0 %v2994
    %4105 = vmatprep.subr.bf16.mxu0 %v2987
    %4106 = vmatpush2.bf16.msra.mxu0 %v2986
    %4107 = vmatprep.subr.bf16.mxu0 %v2979
    %4108 = vmatpush2.bf16.msra.mxu0 %v2978
    %4109 = vmatprep.subr.bf16.mxu0 %v2971
    %4110 = vmatpush2.bf16.msra.mxu0 %v2970
    %4111 = vmatprep.subr.bf16.mxu0 %v2963
    %4112 = vmatpush2.bf16.msra.mxu0 %v2962
    %4113 = vmatprep.subr.bf16.mxu0 %v2955
    %4114 = vmatpush2.bf16.msra.mxu0 %v2954
    %4115 = vmatprep.subr.bf16.mxu0 %v2947
    %4116 = vmatpush2.bf16.msra.mxu0 %v2946
    %4117 = vmatprep.subr.bf16.mxu0 %v2939
    %4118 = vmatpush2.bf16.msra.mxu0 %v2938
    %4119 = vmatprep.mubr.bf16.mxu0 %v1126
    %4120 = vmatmul.mubr.bf16.gmra.mxu0 %v1125
    %v4121 = vpop.f32.mrf.mxu0
    %v4122 = vadd.f32 %v4079, %v4121
    %v4123 = vpop.f32.mrf.mxu0
    %v4124 = vadd.f32 %v4081, %v4123
    %v4125 = vpop.f32.mrf.mxu0
    %v4126 = vadd.f32 %v4083, %v4125
    %v4127 = vpop.f32.mrf.mxu0
    %v4128 = vadd.f32 %v4085, %v4127
    %4129 = vdwg.mxu0
    %4130 = vmatprep.subr.bf16.mxu0 %v3059
    %4131 = vmatpush1.bf16.msra.mxu0 %v3058
    %4132 = vmatprep.subr.bf16.mxu0 %v3051
    %4133 = vmatpush1.bf16.msra.mxu0 %v3050
    %4134 = vmatprep.subr.bf16.mxu0 %v3043
    %4135 = vmatpush1.bf16.msra.mxu0 %v3042
    %4136 = vmatprep.subr.bf16.mxu0 %v3035
    %4137 = vmatpush1.bf16.msra.mxu0 %v3034
    %4138 = vmatprep.subr.bf16.mxu0 %v3027
    %4139 = vmatpush1.bf16.msra.mxu0 %v3026
    %4140 = vmatprep.subr.bf16.mxu0 %v3019
    %4141 = vmatpush1.bf16.msra.mxu0 %v3018
    %4142 = vmatprep.subr.bf16.mxu0 %v3011
    %4143 = vmatpush1.bf16.msra.mxu0 %v3010
    %4144 = vmatprep.subr.bf16.mxu0 %v3003
    %4145 = vmatpush1.bf16.msra.mxu0 %v3002
    %4146 = vmatprep.subr.bf16.mxu0 %v3123
    %4147 = vmatpush2.bf16.msra.mxu0 %v3122
    %4148 = vmatprep.subr.bf16.mxu0 %v3115
    %4149 = vmatpush2.bf16.msra.mxu0 %v3114
    %4150 = vmatprep.subr.bf16.mxu0 %v3107
    %4151 = vmatpush2.bf16.msra.mxu0 %v3106
    %4152 = vmatprep.subr.bf16.mxu0 %v3099
    %4153 = vmatpush2.bf16.msra.mxu0 %v3098
    %4154 = vmatprep.subr.bf16.mxu0 %v3091
    %4155 = vmatpush2.bf16.msra.mxu0 %v3090
    %4156 = vmatprep.subr.bf16.mxu0 %v3083
    %4157 = vmatpush2.bf16.msra.mxu0 %v3082
    %4158 = vmatprep.subr.bf16.mxu0 %v3075
    %4159 = vmatpush2.bf16.msra.mxu0 %v3074
    %4160 = vmatprep.subr.bf16.mxu0 %v3067
    %4161 = vmatpush2.bf16.msra.mxu0 %v3066
    %4162 = vmatprep.mubr.bf16.mxu0 %v1128
    %4163 = vmatmul.mubr.bf16.gmra.mxu0 %v1127
    %v4164 = vpop.f32.mrf.mxu0
    %v4165 = vadd.f32 %v4122, %v4164
    %v4166 = vpop.f32.mrf.mxu0
    %v4167 = vadd.f32 %v4124, %v4166
    %v4168 = vpop.f32.mrf.mxu0
    %v4169 = vadd.f32 %v4126, %v4168
    %v4170 = vpop.f32.mrf.mxu0
    %v4171 = vadd.f32 %v4128, %v4170
    %4172 = vdwg.mxu0
    %4173 = vmatprep.subr.bf16.mxu0 0
    %4174 = vmatpush1.bf16.msra.mxu0 0
    %4175 = vmatprep.subr.bf16.mxu0 0
    %4176 = vmatpush1.bf16.msra.mxu0 0
    %4177 = vmatprep.subr.bf16.mxu0 0
    %4178 = vmatpush1.bf16.msra.mxu0 0
    %4179 = vmatprep.subr.bf16.mxu0 0
    %4180 = vmatpush1.bf16.msra.mxu0 0
    %4181 = vmatprep.subr.bf16.mxu0 0
    %4182 = vmatpush1.bf16.msra.mxu0 0
    %4183 = vmatprep.subr.bf16.mxu0 0
    %4184 = vmatpush1.bf16.msra.mxu0 0
    %4185 = vmatprep.subr.bf16.mxu0 0
    %4186 = vmatpush1.bf16.msra.mxu0 0
    %4187 = vmatprep.subr.bf16.mxu0 %v3131
    %4188 = vmatpush1.bf16.msra.mxu0 %v3130
    %4189 = vmatprep.subr.bf16.mxu0 0
    %4190 = vmatpush2.bf16.msra.mxu0 0
    %4191 = vmatprep.subr.bf16.mxu0 0
    %4192 = vmatpush2.bf16.msra.mxu0 0
    %4193 = vmatprep.subr.bf16.mxu0 0
    %4194 = vmatpush2.bf16.msra.mxu0 0
    %4195 = vmatprep.subr.bf16.mxu0 0
    %4196 = vmatpush2.bf16.msra.mxu0 0
    %4197 = vmatprep.subr.bf16.mxu0 0
    %4198 = vmatpush2.bf16.msra.mxu0 0
    %4199 = vmatprep.subr.bf16.mxu0 0
    %4200 = vmatpush2.bf16.msra.mxu0 0
    %4201 = vmatprep.subr.bf16.mxu0 0
    %4202 = vmatpush2.bf16.msra.mxu0 0
    %4203 = vmatprep.subr.bf16.mxu0 0
    %4204 = vmatpush2.bf16.msra.mxu0 0
    %4205 = vmatprep.mubr.bf16.mxu0 0
    %4206 = vmatmul.mubr.bf16.gmra.mxu0 %v3526
    %v4207 = vpop.f32.mrf.mxu0
    %v4208 = vadd.f32 %v4165, %v4207
    %v4209 = vpop.f32.mrf.mxu0
    %v4210 = vadd.f32 %v4167, %v4209
    %v4211 = vpop.f32.mrf.mxu0
    %v4212 = vadd.f32 %v4169, %v4211
    %v4213 = vpop.f32.mrf.mxu0
    %v4214 = vadd.f32 %v4171, %v4213
    %4215 = vdwg.mxu0
    %v4216 = vmax.f32 %v3692, 0.0
    %v4217 = vmax.f32 %v3694, 0.0
    %v4218 = vmax.f32 %v3864, 0.0
    %v4219 = vmax.f32 %v3866, 0.0
    %v4220 = vmax.f32 %v4036, 0.0
    %v4221 = vmax.f32 %v4038, 0.0
    %v4222 = vmax.f32 %v4208, 0.0
    %v4223 = vmax.f32 %v4210, 0.0
    %v4224 = vmax.f32 %v3696, 0.0
    %v4225 = vmax.f32 %v3698, 0.0
    %v4226 = vmax.f32 %v3868, 0.0
    %v4227 = vmax.f32 %v3870, 0.0
    %v4228 = vmax.f32 %v4040, 0.0
    %v4229 = vmax.f32 %v4042, 0.0
    %v4230 = vmax.f32 %v4212, 0.0
    %v4231 = vmax.f32 %v4214, 0.0
    %v4232 = vpack.c.bf16 %v4224, %v4216
    %v4233 = vpack.c.bf16 %v4225, %v4217
    %v4234 = vpack.c.bf16 %v4226, %v4218
    %v4235 = vpack.c.bf16 %v4227, %v4219
    %v4236 = vpack.c.bf16 %v4228, %v4220
    %v4237 = vpack.c.bf16 %v4229, %v4221
    %v4238 = vpack.c.bf16 %v4230, %v4222
    %v4239 = vpack.c.bf16 %v4231, %v4223
    %v4240 = vld [vmem:[#allocation9] sm:$0xf]
    %v4241 = vld [vmem:[#allocation9 + $0x4] sm:$0xf]
    %v4242 = vld [vmem:[#allocation9 + $0x8] sm:$0xf]
    %v4243 = vld [vmem:[#allocation9 + $0xc] sm:$0xf]
    %v4244 = vld [vmem:[#allocation9 + $0x10] sm:$0xf]
    %v4245 = vld [vmem:[#allocation9 + $0x14] sm:$0xf]
    %v4246 = vld [vmem:[#allocation9 + $0x18] sm:$0xf]
    %v4247 = vld [vmem:[#allocation9 + $0x1c] sm:$0xf]
    %v4248 = vld [vmem:[#allocation9 + $0x20] sm:$0xf]
    %v4249 = vld [vmem:[#allocation9 + $0x24] sm:$0xf]
    %v4250 = vld [vmem:[#allocation9 + $0x28] sm:$0xf]
    %v4251 = vld [vmem:[#allocation9 + $0x2c] sm:$0xf]
    %v4252 = vld [vmem:[#allocation9 + $0x30] sm:$0xf]
    %v4253 = vld [vmem:[#allocation9 + $0x34] sm:$0xf]
    %v4254 = vld [vmem:[#allocation9 + $0x38] sm:$0xf]
    %v4255 = vld [vmem:[#allocation9 + $0x3c] sm:$0xf]
    %v4256 = vld [vmem:[#allocation9 + $0x40] sm:$0xf]
    %v4257 = vld [vmem:[#allocation9 + $0x44] sm:$0xf]
    %v4258 = vld [vmem:[#allocation9 + $0x48] sm:$0xf]
    %v4259 = vld [vmem:[#allocation9 + $0x4c] sm:$0xf]
    %v4260 = vld [vmem:[#allocation9 + $0x50] sm:$0xf]
    %v4261 = vld [vmem:[#allocation9 + $0x54] sm:$0xf]
    %v4262 = vld [vmem:[#allocation9 + $0x58] sm:$0xf]
    %v4263 = vld [vmem:[#allocation9 + $0x5c] sm:$0xf]
    %v4264 = vld [vmem:[#allocation9 + $0x60] sm:$0xf]
    %v4265 = vld [vmem:[#allocation9 + $0x64] sm:$0xf]
    %v4266 = vld [vmem:[#allocation9 + $0x68] sm:$0xf]
    %v4267 = vld [vmem:[#allocation9 + $0x6c] sm:$0xf]
    %v4268 = vld [vmem:[#allocation9 + $0x70] sm:$0xf]
    %v4269 = vld [vmem:[#allocation9 + $0x74] sm:$0xf]
    %v4270 = vld [vmem:[#allocation9 + $0x78] sm:$0xf]
    %v4271 = vld [vmem:[#allocation9 + $0x7c] sm:$0xf]
    %v4272 = vld [vmem:[#allocation9 + $0x80] sm:$0xf]
    %v4273 = vld [vmem:[#allocation9 + $0x84] sm:$0xf]
    %v4274 = vld [vmem:[#allocation9 + $0x88] sm:$0xf]
    %v4275 = vld [vmem:[#allocation9 + $0x8c] sm:$0xf]
    %v4276 = vld [vmem:[#allocation9 + $0x90] sm:$0xf]
    %v4277 = vld [vmem:[#allocation9 + $0x94] sm:$0xf]
    %v4278 = vld [vmem:[#allocation9 + $0x98] sm:$0xf]
    %v4279 = vld [vmem:[#allocation9 + $0x9c] sm:$0xf]
    %v4280 = vld [vmem:[#allocation9 + $0xa0] sm:$0xf]
    %v4281 = vld [vmem:[#allocation9 + $0xa4] sm:$0xf]
    %v4282 = vld [vmem:[#allocation9 + $0xa8] sm:$0xf]
    %v4283 = vld [vmem:[#allocation9 + $0xac] sm:$0xf]
    %v4284 = vld [vmem:[#allocation9 + $0xb0] sm:$0xf]
    %v4285 = vld [vmem:[#allocation9 + $0xb4] sm:$0xf]
    %v4286 = vld [vmem:[#allocation9 + $0xb8] sm:$0xf]
    %v4287 = vld [vmem:[#allocation9 + $0xbc] sm:$0xf]
    %v4288 = vld [vmem:[#allocation9 + $0xc0] sm:$0xf]
    %v4289 = vld [vmem:[#allocation9 + $0xc4] sm:$0xf]
    %v4290 = vld [vmem:[#allocation9 + $0xc8] sm:$0xf]
    %v4291 = vld [vmem:[#allocation9 + $0xcc] sm:$0xf]
    %v4292 = vld [vmem:[#allocation9 + $0xd0] sm:$0xf]
    %v4293 = vld [vmem:[#allocation9 + $0xd4] sm:$0xf]
    %v4294 = vld [vmem:[#allocation9 + $0xd8] sm:$0xf]
    %v4295 = vld [vmem:[#allocation9 + $0xdc] sm:$0xf]
    %v4296 = vld [vmem:[#allocation9 + $0xe0] sm:$0xf]
    %v4297 = vld [vmem:[#allocation9 + $0xe4] sm:$0xf]
    %v4298 = vld [vmem:[#allocation9 + $0xe8] sm:$0xf]
    %v4299 = vld [vmem:[#allocation9 + $0xec] sm:$0xf]
    %v4300 = vld [vmem:[#allocation9 + $0xf0] sm:$0xf]
    %v4301 = vld [vmem:[#allocation9 + $0xf4] sm:$0xf]
    %v4302 = vld [vmem:[#allocation9 + $0xf8] sm:$0xf]
    %v4303 = vld [vmem:[#allocation9 + $0xfc] sm:$0xf]
    %v4304 = vld [vmem:[#allocation9 + $0x100] sm:$0xf]
    %v4305 = vld [vmem:[#allocation9 + $0x104] sm:$0xf]
    %v4306 = vld [vmem:[#allocation9 + $0x108] sm:$0xf]
    %v4307 = vld [vmem:[#allocation9 + $0x10c] sm:$0xf]
    %v4308 = vld [vmem:[#allocation9 + $0x110] sm:$0xf]
    %v4309 = vld [vmem:[#allocation9 + $0x114] sm:$0xf]
    %v4310 = vld [vmem:[#allocation9 + $0x118] sm:$0xf]
    %v4311 = vld [vmem:[#allocation9 + $0x11c] sm:$0xf]
    %v4312 = vld [vmem:[#allocation9 + $0x120] sm:$0xf]
    %v4313 = vld [vmem:[#allocation9 + $0x124] sm:$0xf]
    %v4314 = vld [vmem:[#allocation9 + $0x128] sm:$0xf]
    %v4315 = vld [vmem:[#allocation9 + $0x12c] sm:$0xf]
    %v4316 = vld [vmem:[#allocation9 + $0x130] sm:$0xf]
    %v4317 = vld [vmem:[#allocation9 + $0x134] sm:$0xf]
    %v4318 = vld [vmem:[#allocation9 + $0x138] sm:$0xf]
    %v4319 = vld [vmem:[#allocation9 + $0x13c] sm:$0xf]
    %v4320 = vld [vmem:[#allocation9 + $0x140] sm:$0xf]
    %v4321 = vld [vmem:[#allocation9 + $0x144] sm:$0xf]
    %v4322 = vld [vmem:[#allocation9 + $0x148] sm:$0xf]
    %v4323 = vld [vmem:[#allocation9 + $0x14c] sm:$0xf]
    %v4324 = vld [vmem:[#allocation9 + $0x150] sm:$0xf]
    %v4325 = vld [vmem:[#allocation9 + $0x154] sm:$0xf]
    %v4326 = vld [vmem:[#allocation9 + $0x158] sm:$0xf]
    %v4327 = vld [vmem:[#allocation9 + $0x15c] sm:$0xf]
    %v4328 = vld [vmem:[#allocation9 + $0x160] sm:$0xf]
    %v4329 = vld [vmem:[#allocation9 + $0x164] sm:$0xf]
    %v4330 = vld [vmem:[#allocation9 + $0x168] sm:$0xf]
    %v4331 = vld [vmem:[#allocation9 + $0x16c] sm:$0xf]
    %v4332 = vld [vmem:[#allocation9 + $0x170] sm:$0xf]
    %v4333 = vld [vmem:[#allocation9 + $0x174] sm:$0xf]
    %v4334 = vld [vmem:[#allocation9 + $0x178] sm:$0xf]
    %v4335 = vld [vmem:[#allocation9 + $0x17c] sm:$0xf]
    %v4336 = vld [vmem:[#allocation9 + $0x180] sm:$0xf]
    %v4337 = vld [vmem:[#allocation9 + $0x184] sm:$0xf]
    %v4338 = vld [vmem:[#allocation9 + $0x188] sm:$0xf]
    %v4339 = vld [vmem:[#allocation9 + $0x18c] sm:$0xf]
    %v4340 = vld [vmem:[#allocation9 + $0x190] sm:$0xf]
    %v4341 = vld [vmem:[#allocation9 + $0x194] sm:$0xf]
    %v4342 = vld [vmem:[#allocation9 + $0x198] sm:$0xf]
    %v4343 = vld [vmem:[#allocation9 + $0x19c] sm:$0xf]
    %v4344 = vld [vmem:[#allocation9 + $0x1a0] sm:$0xf]
    %v4345 = vld [vmem:[#allocation9 + $0x1a4] sm:$0xf]
    %v4346 = vld [vmem:[#allocation9 + $0x1a8] sm:$0xf]
    %v4347 = vld [vmem:[#allocation9 + $0x1ac] sm:$0xf]
    %v4348 = vld [vmem:[#allocation9 + $0x1b0] sm:$0xf]
    %v4349 = vld [vmem:[#allocation9 + $0x1b4] sm:$0xf]
    %v4350 = vld [vmem:[#allocation9 + $0x1b8] sm:$0xf]
    %v4351 = vld [vmem:[#allocation9 + $0x1bc] sm:$0xf]
    %v4352 = vld [vmem:[#allocation9 + $0x1c0] sm:$0xf]
    %v4353 = vld [vmem:[#allocation9 + $0x1c4] sm:$0xf]
    %v4354 = vld [vmem:[#allocation9 + $0x1c8] sm:$0xf]
    %v4355 = vld [vmem:[#allocation9 + $0x1cc] sm:$0xf]
    %v4356 = vld [vmem:[#allocation9 + $0x1d0] sm:$0xf]
    %v4357 = vld [vmem:[#allocation9 + $0x1d4] sm:$0xf]
    %v4358 = vld [vmem:[#allocation9 + $0x1d8] sm:$0xf]
    %v4359 = vld [vmem:[#allocation9 + $0x1dc] sm:$0xf]
    %v4360 = vld [vmem:[#allocation9 + $0x1e0] sm:$0xf]
    %v4361 = vld [vmem:[#allocation9 + $0x1e4] sm:$0xf]
    %v4362 = vld [vmem:[#allocation9 + $0x1e8] sm:$0xf]
    %v4363 = vld [vmem:[#allocation9 + $0x1ec] sm:$0xf]
    %v4364 = vld [vmem:[#allocation9 + $0x1f0] sm:$0xf]
    %v4365 = vld [vmem:[#allocation9 + $0x1f4] sm:$0xf]
    %v4366 = vld [vmem:[#allocation9 + $0x1f8] sm:$0xf]
    %v4367 = vld [vmem:[#allocation9 + $0x1fc] sm:$0xf]
    %v4368 = vld [vmem:[#allocation10] sm:$0x1]
    %v4370 = vlaneseq
    %v4371 = vshrl.u32 %v4370, 7
    %v4372 = vsub.s32 0, %v4371
    %v4373 = vrot.slane %v4368, %v4372
    %v4503 = vunpack.c.l.b16 %v4240
    %v4504 = vunpack.c.l.b16 %v4241
    %v4505 = vunpack.c.l.b16 %v4242
    %v4506 = vunpack.c.l.b16 %v4243
    %v4507 = vunpack.c.l.b16 %v4244
    %v4508 = vunpack.c.l.b16 %v4245
    %v4509 = vunpack.c.l.b16 %v4246
    %v4510 = vunpack.c.l.b16 %v4247
    %v4511 = vunpack.c.l.b16 %v4248
    %v4512 = vunpack.c.l.b16 %v4249
    %v4513 = vunpack.c.l.b16 %v4250
    %v4514 = vunpack.c.l.b16 %v4251
    %v4515 = vunpack.c.l.b16 %v4252
    %v4516 = vunpack.c.l.b16 %v4253
    %v4517 = vunpack.c.l.b16 %v4254
    %v4518 = vunpack.c.l.b16 %v4255
    %v4519 = vunpack.c.l.b16 %v4256
    %v4520 = vunpack.c.l.b16 %v4257
    %v4521 = vunpack.c.l.b16 %v4258
    %v4522 = vunpack.c.l.b16 %v4259
    %v4523 = vunpack.c.l.b16 %v4260
    %v4524 = vunpack.c.l.b16 %v4261
    %v4525 = vunpack.c.l.b16 %v4262
    %v4526 = vunpack.c.l.b16 %v4263
    %v4527 = vunpack.c.l.b16 %v4264
    %v4528 = vunpack.c.l.b16 %v4265
    %v4529 = vunpack.c.l.b16 %v4266
    %v4530 = vunpack.c.l.b16 %v4267
    %v4531 = vunpack.c.l.b16 %v4268
    %v4532 = vunpack.c.l.b16 %v4269
    %v4533 = vunpack.c.l.b16 %v4270
    %v4534 = vunpack.c.l.b16 %v4271
    %v4535 = vunpack.c.l.b16 %v4272
    %v4536 = vunpack.c.l.b16 %v4273
    %v4537 = vunpack.c.l.b16 %v4274
    %v4538 = vunpack.c.l.b16 %v4275
    %v4539 = vunpack.c.l.b16 %v4276
    %v4540 = vunpack.c.l.b16 %v4277
    %v4541 = vunpack.c.l.b16 %v4278
    %v4542 = vunpack.c.l.b16 %v4279
    %v4543 = vunpack.c.l.b16 %v4280
    %v4544 = vunpack.c.l.b16 %v4281
    %v4545 = vunpack.c.l.b16 %v4282
    %v4546 = vunpack.c.l.b16 %v4283
    %v4547 = vunpack.c.l.b16 %v4284
    %v4548 = vunpack.c.l.b16 %v4285
    %v4549 = vunpack.c.l.b16 %v4286
    %v4550 = vunpack.c.l.b16 %v4287
    %v4551 = vunpack.c.l.b16 %v4288
    %v4552 = vunpack.c.l.b16 %v4289
    %v4553 = vunpack.c.l.b16 %v4290
    %v4554 = vunpack.c.l.b16 %v4291
    %v4555 = vunpack.c.l.b16 %v4292
    %v4556 = vunpack.c.l.b16 %v4293
    %v4557 = vunpack.c.l.b16 %v4294
    %v4558 = vunpack.c.l.b16 %v4295
    %v4559 = vunpack.c.l.b16 %v4296
    %v4560 = vunpack.c.l.b16 %v4297
    %v4561 = vunpack.c.l.b16 %v4298
    %v4562 = vunpack.c.l.b16 %v4299
    %v4563 = vunpack.c.l.b16 %v4300
    %v4564 = vunpack.c.l.b16 %v4301
    %v4565 = vunpack.c.l.b16 %v4302
    %v4566 = vunpack.c.l.b16 %v4303
    %v4567 = vunpack.c.l.b16 %v4304
    %v4568 = vunpack.c.l.b16 %v4305
    %v4569 = vunpack.c.l.b16 %v4306
    %v4570 = vunpack.c.l.b16 %v4307
    %v4571 = vunpack.c.l.b16 %v4308
    %v4572 = vunpack.c.l.b16 %v4309
    %v4573 = vunpack.c.l.b16 %v4310
    %v4574 = vunpack.c.l.b16 %v4311
    %v4575 = vunpack.c.l.b16 %v4312
    %v4576 = vunpack.c.l.b16 %v4313
    %v4577 = vunpack.c.l.b16 %v4314
    %v4578 = vunpack.c.l.b16 %v4315
    %v4579 = vunpack.c.l.b16 %v4316
    %v4580 = vunpack.c.l.b16 %v4317
    %v4581 = vunpack.c.l.b16 %v4318
    %v4582 = vunpack.c.l.b16 %v4319
    %v4583 = vunpack.c.l.b16 %v4320
    %v4584 = vunpack.c.l.b16 %v4321
    %v4585 = vunpack.c.l.b16 %v4322
    %v4586 = vunpack.c.l.b16 %v4323
    %v4587 = vunpack.c.l.b16 %v4324
    %v4588 = vunpack.c.l.b16 %v4325
    %v4589 = vunpack.c.l.b16 %v4326
    %v4590 = vunpack.c.l.b16 %v4327
    %v4591 = vunpack.c.l.b16 %v4328
    %v4592 = vunpack.c.l.b16 %v4329
    %v4593 = vunpack.c.l.b16 %v4330
    %v4594 = vunpack.c.l.b16 %v4331
    %v4595 = vunpack.c.l.b16 %v4332
    %v4596 = vunpack.c.l.b16 %v4333
    %v4597 = vunpack.c.l.b16 %v4334
    %v4598 = vunpack.c.l.b16 %v4335
    %v4599 = vunpack.c.l.b16 %v4336
    %v4600 = vunpack.c.l.b16 %v4337
    %v4601 = vunpack.c.l.b16 %v4338
    %v4602 = vunpack.c.l.b16 %v4339
    %v4603 = vunpack.c.l.b16 %v4340
    %v4604 = vunpack.c.l.b16 %v4341
    %v4605 = vunpack.c.l.b16 %v4342
    %v4606 = vunpack.c.l.b16 %v4343
    %v4607 = vunpack.c.l.b16 %v4344
    %v4608 = vunpack.c.l.b16 %v4345
    %v4609 = vunpack.c.l.b16 %v4346
    %v4610 = vunpack.c.l.b16 %v4347
    %v4611 = vunpack.c.l.b16 %v4348
    %v4612 = vunpack.c.l.b16 %v4349
    %v4613 = vunpack.c.l.b16 %v4350
    %v4614 = vunpack.c.l.b16 %v4351
    %v4615 = vunpack.c.l.b16 %v4352
    %v4616 = vunpack.c.l.b16 %v4353
    %v4617 = vunpack.c.l.b16 %v4354
    %v4618 = vunpack.c.l.b16 %v4355
    %v4619 = vunpack.c.l.b16 %v4356
    %v4620 = vunpack.c.l.b16 %v4357
    %v4621 = vunpack.c.l.b16 %v4358
    %v4622 = vunpack.c.l.b16 %v4359
    %v4623 = vunpack.c.l.b16 %v4360
    %v4624 = vunpack.c.l.b16 %v4361
    %v4625 = vunpack.c.l.b16 %v4362
    %v4626 = vunpack.c.l.b16 %v4363
    %v4627 = vunpack.c.l.b16 %v4364
    %v4628 = vunpack.c.l.b16 %v4365
    %v4629 = vunpack.c.l.b16 %v4366
    %v4630 = vunpack.c.l.b16 %v4367
    %v4631 = vpack.c.b16 %v4504, %v4503
    %v4632 = vpack.c.b16 %v4506, %v4505
    %v4633 = vpack.c.b16 %v4508, %v4507
    %v4634 = vpack.c.b16 %v4510, %v4509
    %v4635 = vpack.c.b16 %v4512, %v4511
    %v4636 = vpack.c.b16 %v4514, %v4513
    %v4637 = vpack.c.b16 %v4516, %v4515
    %v4638 = vpack.c.b16 %v4518, %v4517
    %v4639 = vpack.c.b16 %v4520, %v4519
    %v4640 = vpack.c.b16 %v4522, %v4521
    %v4641 = vpack.c.b16 %v4524, %v4523
    %v4642 = vpack.c.b16 %v4526, %v4525
    %v4643 = vpack.c.b16 %v4528, %v4527
    %v4644 = vpack.c.b16 %v4530, %v4529
    %v4645 = vpack.c.b16 %v4532, %v4531
    %v4646 = vpack.c.b16 %v4534, %v4533
    %v4647 = vpack.c.b16 %v4536, %v4535
    %v4648 = vpack.c.b16 %v4538, %v4537
    %v4649 = vpack.c.b16 %v4540, %v4539
    %v4650 = vpack.c.b16 %v4542, %v4541
    %v4651 = vpack.c.b16 %v4544, %v4543
    %v4652 = vpack.c.b16 %v4546, %v4545
    %v4653 = vpack.c.b16 %v4548, %v4547
    %v4654 = vpack.c.b16 %v4550, %v4549
    %v4655 = vpack.c.b16 %v4552, %v4551
    %v4656 = vpack.c.b16 %v4554, %v4553
    %v4657 = vpack.c.b16 %v4556, %v4555
    %v4658 = vpack.c.b16 %v4558, %v4557
    %v4659 = vpack.c.b16 %v4560, %v4559
    %v4660 = vpack.c.b16 %v4562, %v4561
    %v4661 = vpack.c.b16 %v4564, %v4563
    %v4662 = vpack.c.b16 %v4566, %v4565
    %v4663 = vpack.c.b16 %v4568, %v4567
    %v4664 = vpack.c.b16 %v4570, %v4569
    %v4665 = vpack.c.b16 %v4572, %v4571
    %v4666 = vpack.c.b16 %v4574, %v4573
    %v4667 = vpack.c.b16 %v4576, %v4575
    %v4668 = vpack.c.b16 %v4578, %v4577
    %v4669 = vpack.c.b16 %v4580, %v4579
    %v4670 = vpack.c.b16 %v4582, %v4581
    %v4671 = vpack.c.b16 %v4584, %v4583
    %v4672 = vpack.c.b16 %v4586, %v4585
    %v4673 = vpack.c.b16 %v4588, %v4587
    %v4674 = vpack.c.b16 %v4590, %v4589
    %v4675 = vpack.c.b16 %v4592, %v4591
    %v4676 = vpack.c.b16 %v4594, %v4593
    %v4677 = vpack.c.b16 %v4596, %v4595
    %v4678 = vpack.c.b16 %v4598, %v4597
    %v4679 = vpack.c.b16 %v4600, %v4599
    %v4680 = vpack.c.b16 %v4602, %v4601
    %v4681 = vpack.c.b16 %v4604, %v4603
    %v4682 = vpack.c.b16 %v4606, %v4605
    %v4683 = vpack.c.b16 %v4608, %v4607
    %v4684 = vpack.c.b16 %v4610, %v4609
    %v4685 = vpack.c.b16 %v4612, %v4611
    %v4686 = vpack.c.b16 %v4614, %v4613
    %v4687 = vpack.c.b16 %v4616, %v4615
    %v4688 = vpack.c.b16 %v4618, %v4617
    %v4689 = vpack.c.b16 %v4620, %v4619
    %v4690 = vpack.c.b16 %v4622, %v4621
    %v4691 = vpack.c.b16 %v4624, %v4623
    %v4692 = vpack.c.b16 %v4626, %v4625
    %v4693 = vpack.c.b16 %v4628, %v4627
    %v4694 = vpack.c.b16 %v4630, %v4629
    %4759 = vmatprep.subr.bf16.mxu0 0
    %4760 = vmatpush1.bf16.msra.mxu0 %v4638
    %4761 = vmatprep.subr.bf16.mxu0 0
    %4762 = vmatpush1.bf16.msra.mxu0 %v4637
    %4763 = vmatprep.subr.bf16.mxu0 0
    %4764 = vmatpush1.bf16.msra.mxu0 %v4636
    %4765 = vmatprep.subr.bf16.mxu0 0
    %4766 = vmatpush1.bf16.msra.mxu0 %v4635
    %4767 = vmatprep.subr.bf16.mxu0 0
    %4768 = vmatpush1.bf16.msra.mxu0 %v4634
    %4769 = vmatprep.subr.bf16.mxu0 0
    %4770 = vmatpush1.bf16.msra.mxu0 %v4633
    %4771 = vmatprep.subr.bf16.mxu0 0
    %4772 = vmatpush1.bf16.msra.mxu0 %v4632
    %4773 = vmatprep.subr.bf16.mxu0 0
    %4774 = vmatpush1.bf16.msra.mxu0 %v4631
    %4775 = vmatprep.subr.bf16.mxu0 0
    %4776 = vmatpush2.bf16.msra.mxu0 %v4646
    %4777 = vmatprep.subr.bf16.mxu0 0
    %4778 = vmatpush2.bf16.msra.mxu0 %v4645
    %4779 = vmatprep.subr.bf16.mxu0 0
    %4780 = vmatpush2.bf16.msra.mxu0 %v4644
    %4781 = vmatprep.subr.bf16.mxu0 0
    %4782 = vmatpush2.bf16.msra.mxu0 %v4643
    %4783 = vmatprep.subr.bf16.mxu0 0
    %4784 = vmatpush2.bf16.msra.mxu0 %v4642
    %4785 = vmatprep.subr.bf16.mxu0 0
    %4786 = vmatpush2.bf16.msra.mxu0 %v4641
    %4787 = vmatprep.subr.bf16.mxu0 0
    %4788 = vmatpush2.bf16.msra.mxu0 %v4640
    %4789 = vmatprep.subr.bf16.mxu0 0
    %4790 = vmatpush2.bf16.msra.mxu0 %v4639
    %4791 = vmatprep.mubr.bf16.mxu0 %v4233
    %4792 = vmatmul.mubr.bf16.gmra.mxu0 %v4232
    %v4793 = vpop.f32.mrf.mxu0
    %v4794 = vadd.f32 %v4373, %v4793
    %v4795 = vpop.f32.mrf.mxu0
    %v4796 = vpop.f32.mrf.mxu0
    %v4797 = vadd.f32 %v4373, %v4796
    %v4798 = vpop.f32.mrf.mxu0
    %4799 = vdwg.mxu0
    %4800 = vmatprep.subr.bf16.mxu0 0
    %4801 = vmatpush1.bf16.msra.mxu0 %v4654
    %4802 = vmatprep.subr.bf16.mxu0 0
    %4803 = vmatpush1.bf16.msra.mxu0 %v4653
    %4804 = vmatprep.subr.bf16.mxu0 0
    %4805 = vmatpush1.bf16.msra.mxu0 %v4652
    %4806 = vmatprep.subr.bf16.mxu0 0
    %4807 = vmatpush1.bf16.msra.mxu0 %v4651
    %4808 = vmatprep.subr.bf16.mxu0 0
    %4809 = vmatpush1.bf16.msra.mxu0 %v4650
    %4810 = vmatprep.subr.bf16.mxu0 0
    %4811 = vmatpush1.bf16.msra.mxu0 %v4649
    %4812 = vmatprep.subr.bf16.mxu0 0
    %4813 = vmatpush1.bf16.msra.mxu0 %v4648
    %4814 = vmatprep.subr.bf16.mxu0 0
    %4815 = vmatpush1.bf16.msra.mxu0 %v4647
    %4816 = vmatprep.subr.bf16.mxu0 0
    %4817 = vmatpush2.bf16.msra.mxu0 %v4662
    %4818 = vmatprep.subr.bf16.mxu0 0
    %4819 = vmatpush2.bf16.msra.mxu0 %v4661
    %4820 = vmatprep.subr.bf16.mxu0 0
    %4821 = vmatpush2.bf16.msra.mxu0 %v4660
    %4822 = vmatprep.subr.bf16.mxu0 0
    %4823 = vmatpush2.bf16.msra.mxu0 %v4659
    %4824 = vmatprep.subr.bf16.mxu0 0
    %4825 = vmatpush2.bf16.msra.mxu0 %v4658
    %4826 = vmatprep.subr.bf16.mxu0 0
    %4827 = vmatpush2.bf16.msra.mxu0 %v4657
    %4828 = vmatprep.subr.bf16.mxu0 0
    %4829 = vmatpush2.bf16.msra.mxu0 %v4656
    %4830 = vmatprep.subr.bf16.mxu0 0
    %4831 = vmatpush2.bf16.msra.mxu0 %v4655
    %4832 = vmatprep.mubr.bf16.mxu0 %v4235
    %4833 = vmatmul.mubr.bf16.gmra.mxu0 %v4234
    %v4834 = vpop.f32.mrf.mxu0
    %v4835 = vadd.f32 %v4794, %v4834
    %v4836 = vpop.f32.mrf.mxu0
    %v4837 = vpop.f32.mrf.mxu0
    %v4838 = vadd.f32 %v4797, %v4837
    %v4839 = vpop.f32.mrf.mxu0
    %4840 = vdwg.mxu0
    %4841 = vmatprep.subr.bf16.mxu0 0
    %4842 = vmatpush1.bf16.msra.mxu0 %v4670
    %4843 = vmatprep.subr.bf16.mxu0 0
    %4844 = vmatpush1.bf16.msra.mxu0 %v4669
    %4845 = vmatprep.subr.bf16.mxu0 0
    %4846 = vmatpush1.bf16.msra.mxu0 %v4668
    %4847 = vmatprep.subr.bf16.mxu0 0
    %4848 = vmatpush1.bf16.msra.mxu0 %v4667
    %4849 = vmatprep.subr.bf16.mxu0 0
    %4850 = vmatpush1.bf16.msra.mxu0 %v4666
    %4851 = vmatprep.subr.bf16.mxu0 0
    %4852 = vmatpush1.bf16.msra.mxu0 %v4665
    %4853 = vmatprep.subr.bf16.mxu0 0
    %4854 = vmatpush1.bf16.msra.mxu0 %v4664
    %4855 = vmatprep.subr.bf16.mxu0 0
    %4856 = vmatpush1.bf16.msra.mxu0 %v4663
    %4857 = vmatprep.subr.bf16.mxu0 0
    %4858 = vmatpush2.bf16.msra.mxu0 %v4678
    %4859 = vmatprep.subr.bf16.mxu0 0
    %4860 = vmatpush2.bf16.msra.mxu0 %v4677
    %4861 = vmatprep.subr.bf16.mxu0 0
    %4862 = vmatpush2.bf16.msra.mxu0 %v4676
    %4863 = vmatprep.subr.bf16.mxu0 0
    %4864 = vmatpush2.bf16.msra.mxu0 %v4675
    %4865 = vmatprep.subr.bf16.mxu0 0
    %4866 = vmatpush2.bf16.msra.mxu0 %v4674
    %4867 = vmatprep.subr.bf16.mxu0 0
    %4868 = vmatpush2.bf16.msra.mxu0 %v4673
    %4869 = vmatprep.subr.bf16.mxu0 0
    %4870 = vmatpush2.bf16.msra.mxu0 %v4672
    %4871 = vmatprep.subr.bf16.mxu0 0
    %4872 = vmatpush2.bf16.msra.mxu0 %v4671
    %4873 = vmatprep.mubr.bf16.mxu0 %v4237
    %4874 = vmatmul.mubr.bf16.gmra.mxu0 %v4236
    %v4875 = vpop.f32.mrf.mxu0
    %v4876 = vadd.f32 %v4835, %v4875
    %v4877 = vpop.f32.mrf.mxu0
    %v4878 = vpop.f32.mrf.mxu0
    %v4879 = vadd.f32 %v4838, %v4878
    %v4880 = vpop.f32.mrf.mxu0
    %4881 = vdwg.mxu0
    %4882 = vmatprep.subr.bf16.mxu0 0
    %4883 = vmatpush1.bf16.msra.mxu0 %v4686
    %4884 = vmatprep.subr.bf16.mxu0 0
    %4885 = vmatpush1.bf16.msra.mxu0 %v4685
    %4886 = vmatprep.subr.bf16.mxu0 0
    %4887 = vmatpush1.bf16.msra.mxu0 %v4684
    %4888 = vmatprep.subr.bf16.mxu0 0
    %4889 = vmatpush1.bf16.msra.mxu0 %v4683
    %4890 = vmatprep.subr.bf16.mxu0 0
    %4891 = vmatpush1.bf16.msra.mxu0 %v4682
    %4892 = vmatprep.subr.bf16.mxu0 0
    %4893 = vmatpush1.bf16.msra.mxu0 %v4681
    %4894 = vmatprep.subr.bf16.mxu0 0
    %4895 = vmatpush1.bf16.msra.mxu0 %v4680
    %4896 = vmatprep.subr.bf16.mxu0 0
    %4897 = vmatpush1.bf16.msra.mxu0 %v4679
    %4898 = vmatprep.subr.bf16.mxu0 0
    %4899 = vmatpush2.bf16.msra.mxu0 %v4694
    %4900 = vmatprep.subr.bf16.mxu0 0
    %4901 = vmatpush2.bf16.msra.mxu0 %v4693
    %4902 = vmatprep.subr.bf16.mxu0 0
    %4903 = vmatpush2.bf16.msra.mxu0 %v4692
    %4904 = vmatprep.subr.bf16.mxu0 0
    %4905 = vmatpush2.bf16.msra.mxu0 %v4691
    %4906 = vmatprep.subr.bf16.mxu0 0
    %4907 = vmatpush2.bf16.msra.mxu0 %v4690
    %4908 = vmatprep.subr.bf16.mxu0 0
    %4909 = vmatpush2.bf16.msra.mxu0 %v4689
    %4910 = vmatprep.subr.bf16.mxu0 0
    %4911 = vmatpush2.bf16.msra.mxu0 %v4688
    %4912 = vmatprep.subr.bf16.mxu0 0
    %4913 = vmatpush2.bf16.msra.mxu0 %v4687
    %4914 = vmatprep.mubr.bf16.mxu0 %v4239
    %4915 = vmatmul.mubr.bf16.gmra.mxu0 %v4238
    %v4916 = vpop.f32.mrf.mxu0
    %v4917 = vadd.f32 %v4876, %v4916
    %v4918 = vpop.f32.mrf.mxu0
    %v4919 = vpop.f32.mrf.mxu0
    %v4920 = vadd.f32 %v4879, %v4919
    %v4921 = vpop.f32.mrf.mxu0
    %4922 = vdwg.mxu0
    %4923 = vst [vmem:[%s7] sm:$0xff] %v4917
    %4924 = vst [vmem:[%s7 + $0x8] sm:$0xff] %v4920
    // Predicated region
    $region54: #{engine_classifier_forward.1} parent=1 // pred_check
      _
    $region55: #{engine_classifier_forward.1} parent=1 // pred_check_branch
      %4926 = sbr.rel (0) target = $region57
    $region56: #{engine_classifier_forward.1} parent=1 // pred_region
      _
    $region57: #{engine_classifier_forward.1} parent=1 // pred_fallthru
      _
    // Predicated region
    $region58: #{engine_classifier_forward.1} parent=1 // pred_check
      _
    $region59: #{engine_classifier_forward.1} parent=1 // pred_check_branch
      %4928 = sbr.rel (0) target = $region61
    $region60: #{engine_classifier_forward.1} parent=1 // pred_region
      _
    $region61: #{engine_classifier_forward.1} parent=1 // pred_fallthru
      _
    %4929 = vsyncpa [#allocation3], 1
    %4930 = vsyncpa [#allocation5], 1
    %4931 = vsyncpa [#allocation8], 1
    %4932 = vsyncpa [#allocation11], 1

</llo_original>
